<compile_context>
chip_gen: v6e
topology: v6e:2x2x1
jax: 0.10.0
libtpu: 0.0.40
codegen_flags: <defaults>
</compile_context>

<pallas_src>
import functools
import math

import jax
import jax.numpy as jnp
from jax.experimental import pallas as pl
from jax.experimental.pallas import tpu as pltpu

_INV_SQRT2 = 0.7071067811865476


def _layer_norm(v, gamma, beta, eps=1e-12):
    mu = jnp.mean(v, axis=-1, keepdims=True)
    c = v - mu
    var = jnp.mean(c * c, axis=-1, keepdims=True)
    return c * jax.lax.rsqrt(var + eps) * gamma + beta


# ---------------------------------------------------------------------------
# Fused InteractLayer kernel: one grid step per batch element.
# ---------------------------------------------------------------------------
def _interact_layer_kernel(
    x_ref, g_ref, mask_ref,
    wq_ref, bq_ref, wk_ref, bk_ref, wv_ref, bv_ref, wo_ref, bo_ref,
    ln1g_ref, ln1b_ref,
    w1_ref, b1_ref, w2_ref, b2_ref,
    ln2g_ref, ln2b_ref,
    o_ref, *, num_heads):
    f32 = jnp.float32
    x = x_ref[0].astype(f32)          # [S, D]
    g = g_ref[0].astype(f32)          # [G, D]
    m = mask_ref[0]                   # [1, G]  (lane-dense row, broadcast over S)

    # QKV projections: weights pre-transposed to [Din, Dout] -> lane-dense RHS, no .T.
    q = jnp.dot(x, wq_ref[...], preferred_element_type=f32) + bq_ref[...]   # [S, D]
    k = jnp.dot(g, wk_ref[...], preferred_element_type=f32) + bk_ref[...]   # [G, D]
    v = jnp.dot(g, wv_ref[...], preferred_element_type=f32) + bv_ref[...]   # [G, D]

    D = x.shape[-1]
    dk = D // num_heads
    scale = 1.0 / math.sqrt(dk)
    neg = jnp.float32(-1e9)

    # Multi-head cross attention; heads are contiguous lane slices (static unrolled loop).
    ctx_parts = []
    for h in range(num_heads):
        lo = h * dk
        qh = q[:, lo:lo + dk]                               # [S, dk]
        kh = k[:, lo:lo + dk]                               # [G, dk]
        vh = v[:, lo:lo + dk]                               # [G, dk]
        # Contract last dims directly (q @ k^T) without an in-kernel transpose.
        s = jax.lax.dot_general(qh, kh, (((1,), (1,)), ((), ())),
                                preferred_element_type=f32) * scale        # [S, G]
        s = jnp.where(m > 0.0, s, neg)                      # mask==0 -> blocked key
        s = s - jnp.max(s, axis=-1, keepdims=True)
        p = jnp.exp(s)
        p = p / jnp.sum(p, axis=-1, keepdims=True)
        ctx_parts.append(jnp.dot(p, vh, preferred_element_type=f32))       # [S, dk]
    ctx = jnp.concatenate(ctx_parts, axis=-1)                              # [S, D]

    attn = jnp.dot(ctx, wo_ref[...], preferred_element_type=f32) + bo_ref[...]
    # TODO(synk): nn.Dropout layers are identity (eval mode); training dropout not applied.
    h1 = _layer_norm(attn + x, ln1g_ref[...], ln1b_ref[...])               # LN_pre

    # PositionwiseFeedForward: Linear -> GELU(exact erf) -> Linear, then residual + LN_post.
    u = jnp.dot(h1, w1_ref[...], preferred_element_type=f32) + b1_ref[...]  # [S, 4D]
    u = 0.5 * u * (1.0 + jax.lax.erf(u * _INV_SQRT2))
    f = jnp.dot(u, w2_ref[...], preferred_element_type=f32) + b2_ref[...]   # [S, D]
    out = _layer_norm(f + h1, ln2g_ref[...], ln2b_ref[...])                 # LN_post

    o_ref[0] = out.astype(o_ref.dtype)


def interact_layer(params, num_heads, x, global_x, mask):
    B, S, D = x.shape
    G = global_x.shape[1]
    Dff = params["w1"].shape[1]
    mask3 = mask.reshape(B, 1, G).astype(jnp.float32)

    def shared(shape):
        return pl.BlockSpec(shape, lambda b: (0,) * len(shape))

    kernel = functools.partial(_interact_layer_kernel, num_heads=num_heads)

    return pl.pallas_call(
        kernel,
        out_shape=jax.ShapeDtypeStruct((B, S, D), x.dtype),
        grid_spec=pltpu.PrefetchScalarGridSpec(
            num_scalar_prefetch=0,
            grid=(B,),
            in_specs=[
                pl.BlockSpec((1, S, D), lambda b: (b, 0, 0)),   # x
                pl.BlockSpec((1, G, D), lambda b: (b, 0, 0)),   # global_x
                pl.BlockSpec((1, 1, G), lambda b: (b, 0, 0)),   # mask (lane-dense row)
                shared((D, D)), shared((1, D)),                 # wq, bq   (pre-transposed)
                shared((D, D)), shared((1, D)),                 # wk, bk
                shared((D, D)), shared((1, D)),                 # wv, bv
                shared((D, D)), shared((1, D)),                 # wo, bo
                shared((1, D)), shared((1, D)),                 # LN_pre gamma, beta
                shared((D, Dff)), shared((1, Dff)),             # ffn w1, b1
                shared((Dff, D)), shared((1, D)),               # ffn w2, b2
                shared((1, D)), shared((1, D)),                 # LN_post gamma, beta
            ],
            out_specs=pl.BlockSpec((1, S, D), lambda b: (b, 0, 0)),
        ),
        compiler_params=pltpu.CompilerParams(
            dimension_semantics=("parallel",)),   # batch axis -> sharded across TCs on v7x
    )(x, global_x, mask3,
      params["wq"], params["bq"], params["wk"], params["bk"],
      params["wv"], params["bv"], params["wo"], params["bo"],
      params["ln1_g"], params["ln1_b"],
      params["w1"], params["b1"], params["w2"], params["b2"],
      params["ln2_g"], params["ln2_b"])


# ---------------------------------------------------------------------------
# Module wrapper (nn.Linear-style init; weights stored pre-transposed [in, out])
# ---------------------------------------------------------------------------
class InteractLayerPallas:
    def __init__(self, d_model, num_heads, dropout=0.1, key=None):
        head_size = d_model // num_heads
        assert head_size * num_heads == d_model
        self.num_heads = num_heads
        self.dropout = dropout          # identity in eval mode
        d_ff = 4 * d_model
        key = jax.random.PRNGKey(0) if key is None else key

        def linear(k, din, dout):
            kw, kb = jax.random.split(k)
            bound = 1.0 / math.sqrt(din)
            w = jax.random.uniform(kw, (din, dout), jnp.float32, -bound, bound)
            b = jax.random.uniform(kb, (1, dout), jnp.float32, -bound, bound)
            return w, b

        ks = jax.random.split(key, 6)
        wq, bq = linear(ks[0], d_model, d_model)
        wk, bk = linear(ks[1], d_model, d_model)
        wv, bv = linear(ks[2], d_model, d_model)
        wo, bo = linear(ks[3], d_model, d_model)
        w1, b1 = linear(ks[4], d_model, d_ff)
        w2, b2 = linear(ks[5], d_ff, d_model)
        ones = jnp.ones((1, d_model), jnp.float32)
        zeros = jnp.zeros((1, d_model), jnp.float32)
        self.params = dict(
            wq=wq, bq=bq, wk=wk, bk=bk, wv=wv, bv=bv, wo=wo, bo=bo,
            ln1_g=ones, ln1_b=zeros,
            w1=w1, b1=b1, w2=w2, b2=b2,
            ln2_g=ones, ln2_b=zeros,
        )

    def __call__(self, x, global_x, mask, sentence_length=None):
        # sentence_length is unused by InteractLayer.forward (kept for signature parity).
        return interact_layer(self.params, self.num_heads, x, global_x, mask)


# ---------------------------------------------------------------------------
# Pure-JAX reference for a sanity check
# ---------------------------------------------------------------------------
def _reference(params, num_heads, x, g, mask):
    P = jax.lax.Precision.HIGHEST
    B, S, D = x.shape
    G = g.shape[1]
    dk = D // num_heads
    q = jnp.matmul(x, params["wq"], precision=P) + params["bq"]
    k = jnp.matmul(g, params["wk"], precision=P) + params["bk"]
    v = jnp.matmul(g, params["wv"], precision=P) + params["bv"]
    qh = q.reshape(B, S, num_heads, dk)
    kh = k.reshape(B, G, num_heads, dk)
    vh = v.reshape(B, G, num_heads, dk)
    s = jnp.einsum("bshd,bghd->bhsg", qh, kh, precision=P) / math.sqrt(dk)
    s = jnp.where(mask[:, None, None, :] > 0.0, s, -1e9)
    s = s - jnp.max(s, axis=-1, keepdims=True)
    p = jnp.exp(s)
    p = p / jnp.sum(p, axis=-1, keepdims=True)
    ctx = jnp.einsum("bhsg,bghd->bshd", p, vh, precision=P).reshape(B, S, D)
    attn = jnp.matmul(ctx, params["wo"], precision=P) + params["bo"]
    h1 = _layer_norm(attn + x, params["ln1_g"], params["ln1_b"])
    u = jnp.matmul(h1, params["w1"], precision=P) + params["b1"]
    u = 0.5 * u * (1.0 + jax.lax.erf(u * _INV_SQRT2))
    f = jnp.matmul(u, params["w2"], precision=P) + params["b2"]
    return _layer_norm(f + h1, params["ln2_g"], params["ln2_b"])


if __name__ == "__main__":
    B, S, G = 2, 16, 8                 # batch, local seq, global seq
    d_model, num_heads = 128, 4        # d_model multiple of 128 -> lane-dense blocks

    key = jax.random.PRNGKey(0)
    kx, kg, km, kp = jax.random.split(key, 4)
    x = jax.random.normal(kx, (B, S, d_model), jnp.float32)
    global_x = jax.random.normal(kg, (B, G, d_model), jnp.float32)
    mask = (jax.random.uniform(km, (B, G)) > 0.25).astype(jnp.float32)
    mask = mask.at[:, 0].set(1.0)      # ensure at least one attendable global position

    model = InteractLayerPallas(d_model, num_heads, dropout=0.1, key=kp)
    sentence_length = jnp.full((B,), S, jnp.int32)

    out = model(x, global_x, mask, sentence_length)
    out = jax.block_until_ready(out)

    ref = _reference(model.params, num_heads, x, global_x, mask)
    assert out.shape == (B, S, d_model)
    err = float(jnp.max(jnp.abs(out - ref)))
    assert err < 2e-3, f"max abs err {err}"

    print("KERNEL_OK")
</pallas_src>

<mosaic_0001>
module attributes {stable_mosaic.version = 11 : i64} {
  func.func @_interact_layer_kernel(%arg0: i32, %arg1: memref<1x16x128xf32, #tpu.memory_space<vmem>>, %arg2: memref<1x8x128xf32, #tpu.memory_space<vmem>>, %arg3: memref<1x1x8xf32, #tpu.memory_space<vmem>>, %arg4: memref<128x128xf32, #tpu.memory_space<vmem>>, %arg5: memref<1x128xf32, #tpu.memory_space<vmem>>, %arg6: memref<128x128xf32, #tpu.memory_space<vmem>>, %arg7: memref<1x128xf32, #tpu.memory_space<vmem>>, %arg8: memref<128x128xf32, #tpu.memory_space<vmem>>, %arg9: memref<1x128xf32, #tpu.memory_space<vmem>>, %arg10: memref<128x128xf32, #tpu.memory_space<vmem>>, %arg11: memref<1x128xf32, #tpu.memory_space<vmem>>, %arg12: memref<1x128xf32, #tpu.memory_space<vmem>>, %arg13: memref<1x128xf32, #tpu.memory_space<vmem>>, %arg14: memref<128x512xf32, #tpu.memory_space<vmem>>, %arg15: memref<1x512xf32, #tpu.memory_space<vmem>>, %arg16: memref<512x128xf32, #tpu.memory_space<vmem>>, %arg17: memref<1x128xf32, #tpu.memory_space<vmem>>, %arg18: memref<1x128xf32, #tpu.memory_space<vmem>>, %arg19: memref<1x128xf32, #tpu.memory_space<vmem>>, %arg20: memref<1x16x128xf32, #tpu.memory_space<vmem>>) attributes {dimension_semantics = [#tpu.dimension_semantics<parallel>], iteration_bounds = array<i64: 2>, scalar_prefetch = 0 : i64, scratch_operands = 0 : i64, tpu.core_type = #tpu.core_type<tc>, window_params = [{transform_indices = @transform_0, window_bounds = array<i64: 1, 16, 128>}, {transform_indices = @transform_1, window_bounds = array<i64: 1, 8, 128>}, {transform_indices = @transform_2, window_bounds = array<i64: 1, 1, 8>}, {pipeline_mode = #tpu.pipeline_mode<synchronous>, transform_indices = @transform_3, window_bounds = array<i64: 128, 128>}, {pipeline_mode = #tpu.pipeline_mode<synchronous>, transform_indices = @transform_4, window_bounds = array<i64: 1, 128>}, {pipeline_mode = #tpu.pipeline_mode<synchronous>, transform_indices = @transform_5, window_bounds = array<i64: 128, 128>}, {pipeline_mode = #tpu.pipeline_mode<synchronous>, transform_indices = @transform_6, window_bounds = array<i64: 1, 128>}, {pipeline_mode = #tpu.pipeline_mode<synchronous>, transform_indices = @transform_7, window_bounds = array<i64: 128, 128>}, {pipeline_mode = #tpu.pipeline_mode<synchronous>, transform_indices = @transform_8, window_bounds = array<i64: 1, 128>}, {pipeline_mode = #tpu.pipeline_mode<synchronous>, transform_indices = @transform_9, window_bounds = array<i64: 128, 128>}, {pipeline_mode = #tpu.pipeline_mode<synchronous>, transform_indices = @transform_10, window_bounds = array<i64: 1, 128>}, {pipeline_mode = #tpu.pipeline_mode<synchronous>, transform_indices = @transform_11, window_bounds = array<i64: 1, 128>}, {pipeline_mode = #tpu.pipeline_mode<synchronous>, transform_indices = @transform_12, window_bounds = array<i64: 1, 128>}, {pipeline_mode = #tpu.pipeline_mode<synchronous>, transform_indices = @transform_13, window_bounds = array<i64: 128, 512>}, {pipeline_mode = #tpu.pipeline_mode<synchronous>, transform_indices = @transform_14, window_bounds = array<i64: 1, 512>}, {pipeline_mode = #tpu.pipeline_mode<synchronous>, transform_indices = @transform_15, window_bounds = array<i64: 512, 128>}, {pipeline_mode = #tpu.pipeline_mode<synchronous>, transform_indices = @transform_16, window_bounds = array<i64: 1, 128>}, {pipeline_mode = #tpu.pipeline_mode<synchronous>, transform_indices = @transform_17, window_bounds = array<i64: 1, 128>}, {pipeline_mode = #tpu.pipeline_mode<synchronous>, transform_indices = @transform_18, window_bounds = array<i64: 1, 128>}, {transform_indices = @transform_19, window_bounds = array<i64: 1, 16, 128>}]} {
    %c0 = arith.constant 0 : index
    %c0_0 = arith.constant 0 : index
    %c0_1 = arith.constant 0 : index
    %0 = vector.load %arg1[%c0, %c0_0, %c0_1] : memref<1x16x128xf32, #tpu.memory_space<vmem>>, vector<1x16x128xf32>
    %1 = vector.shape_cast %0 : vector<1x16x128xf32> to vector<16x128xf32>
    %c0_2 = arith.constant 0 : index
    %c0_3 = arith.constant 0 : index
    %c0_4 = arith.constant 0 : index
    %2 = vector.load %arg2[%c0_2, %c0_3, %c0_4] : memref<1x8x128xf32, #tpu.memory_space<vmem>>, vector<1x8x128xf32>
    %3 = vector.shape_cast %2 : vector<1x8x128xf32> to vector<8x128xf32>
    %c0_5 = arith.constant 0 : index
    %c0_6 = arith.constant 0 : index
    %c0_7 = arith.constant 0 : index
    %4 = vector.load %arg3[%c0_5, %c0_6, %c0_7] : memref<1x1x8xf32, #tpu.memory_space<vmem>>, vector<1x1x8xf32>
    %5 = vector.shape_cast %4 : vector<1x1x8xf32> to vector<1x8xf32>
    %c0_8 = arith.constant 0 : index
    %c0_9 = arith.constant 0 : index
    %6 = vector.load %arg4[%c0_8, %c0_9] : memref<128x128xf32, #tpu.memory_space<vmem>>, vector<128x128xf32>
    %cst = arith.constant dense<0.000000e+00> : vector<16x128xf32>
    %7 = tpu.matmul %1, %6, %cst {dimension_numbers = #tpu.dot_dimension_numbers<[1], [0], [0], [1], [0, 0, 1, 1], [], []>} : vector<16x128xf32>, vector<128x128xf32>, vector<16x128xf32> -> vector<16x128xf32>
    %c0_10 = arith.constant 0 : index
    %c0_11 = arith.constant 0 : index
    %8 = vector.load %arg5[%c0_10, %c0_11] : memref<1x128xf32, #tpu.memory_space<vmem>>, vector<1x128xf32>
    %9 = vector.broadcast %8 : vector<1x128xf32> to vector<16x128xf32>
    %10 = arith.addf %7, %9 : vector<16x128xf32>
    %c0_12 = arith.constant 0 : index
    %c0_13 = arith.constant 0 : index
    %11 = vector.load %arg6[%c0_12, %c0_13] : memref<128x128xf32, #tpu.memory_space<vmem>>, vector<128x128xf32>
    %cst_14 = arith.constant dense<0.000000e+00> : vector<8x128xf32>
    %12 = tpu.matmul %3, %11, %cst_14 {dimension_numbers = #tpu.dot_dimension_numbers<[1], [0], [0], [1], [0, 0, 1, 1], [], []>} : vector<8x128xf32>, vector<128x128xf32>, vector<8x128xf32> -> vector<8x128xf32>
    %c0_15 = arith.constant 0 : index
    %c0_16 = arith.constant 0 : index
    %13 = vector.load %arg7[%c0_15, %c0_16] : memref<1x128xf32, #tpu.memory_space<vmem>>, vector<1x128xf32>
    %14 = vector.broadcast %13 : vector<1x128xf32> to vector<8x128xf32>
    %15 = arith.addf %12, %14 : vector<8x128xf32>
    %c0_17 = arith.constant 0 : index
    %c0_18 = arith.constant 0 : index
    %16 = vector.load %arg8[%c0_17, %c0_18] : memref<128x128xf32, #tpu.memory_space<vmem>>, vector<128x128xf32>
    %cst_19 = arith.constant dense<0.000000e+00> : vector<8x128xf32>
    %17 = tpu.matmul %3, %16, %cst_19 {dimension_numbers = #tpu.dot_dimension_numbers<[1], [0], [0], [1], [0, 0, 1, 1], [], []>} : vector<8x128xf32>, vector<128x128xf32>, vector<8x128xf32> -> vector<8x128xf32>
    %c0_20 = arith.constant 0 : index
    %c0_21 = arith.constant 0 : index
    %18 = vector.load %arg9[%c0_20, %c0_21] : memref<1x128xf32, #tpu.memory_space<vmem>>, vector<1x128xf32>
    %19 = vector.broadcast %18 : vector<1x128xf32> to vector<8x128xf32>
    %20 = arith.addf %17, %19 : vector<8x128xf32>
    %21 = vector.extract_strided_slice %10 {offsets = [0, 0], sizes = [16, 32], strides = [1, 1]} : vector<16x128xf32> to vector<16x32xf32>
    %22 = vector.extract_strided_slice %15 {offsets = [0, 0], sizes = [8, 32], strides = [1, 1]} : vector<8x128xf32> to vector<8x32xf32>
    %23 = vector.extract_strided_slice %20 {offsets = [0, 0], sizes = [8, 32], strides = [1, 1]} : vector<8x128xf32> to vector<8x32xf32>
    %cst_22 = arith.constant dense<0.000000e+00> : vector<16x8xf32>
    %24 = tpu.matmul %21, %22, %cst_22 {dimension_numbers = #tpu.dot_dimension_numbers<[1], [1], [0], [0], [0, 0, 1, 0], [], []>} : vector<16x32xf32>, vector<8x32xf32>, vector<16x8xf32> -> vector<16x8xf32>
    %cst_23 = arith.constant 0.176776692 : f32
    %25 = vector.broadcast %cst_23 : f32 to vector<16x8xf32>
    %26 = arith.mulf %24, %25 : vector<16x8xf32>
    %cst_24 = arith.constant 0.000000e+00 : f32
    %27 = vector.broadcast %cst_24 : f32 to vector<1x8xf32>
    %28 = arith.cmpf ogt, %5, %27 : vector<1x8xf32>
    %cst_25 = arith.constant -1.000000e+09 : f32
    %29 = vector.shape_cast %28 : vector<1x8xi1> to vector<1x8xi1>
    %30 = vector.broadcast %29 : vector<1x8xi1> to vector<16x8xi1>
    %31 = vector.broadcast %cst_25 : f32 to vector<16x8xf32>
    %32 = arith.select %30, %26, %31 : vector<16x8xi1>, vector<16x8xf32>
    %cst_26 = arith.constant dense<0xFF800000> : vector<16xf32>
    %33 = vector.multi_reduction <maximumf>, %32, %cst_26 [1] : vector<16x8xf32> to vector<16xf32>
    %34 = vector.shape_cast %33 : vector<16xf32> to vector<16x1xf32>
    %35 = vector.broadcast %34 : vector<16x1xf32> to vector<16x8xf32>
    %36 = arith.subf %32, %35 : vector<16x8xf32>
    %37 = math.exp %36 : vector<16x8xf32>
    %cst_27 = arith.constant dense<0.000000e+00> : vector<16xf32>
    %38 = vector.multi_reduction <add>, %37, %cst_27 [1] : vector<16x8xf32> to vector<16xf32>
    %39 = vector.shape_cast %38 : vector<16xf32> to vector<16x1xf32>
    %40 = vector.broadcast %39 : vector<16x1xf32> to vector<16x8xf32>
    %41 = arith.divf %37, %40 : vector<16x8xf32>
    %cst_28 = arith.constant dense<0.000000e+00> : vector<16x32xf32>
    %42 = tpu.matmul %41, %23, %cst_28 {dimension_numbers = #tpu.dot_dimension_numbers<[1], [0], [0], [1], [0, 0, 1, 1], [], []>} : vector<16x8xf32>, vector<8x32xf32>, vector<16x32xf32> -> vector<16x32xf32>
    %43 = vector.extract_strided_slice %10 {offsets = [0, 32], sizes = [16, 32], strides = [1, 1]} : vector<16x128xf32> to vector<16x32xf32>
    %44 = vector.extract_strided_slice %15 {offsets = [0, 32], sizes = [8, 32], strides = [1, 1]} : vector<8x128xf32> to vector<8x32xf32>
    %45 = vector.extract_strided_slice %20 {offsets = [0, 32], sizes = [8, 32], strides = [1, 1]} : vector<8x128xf32> to vector<8x32xf32>
    %cst_29 = arith.constant dense<0.000000e+00> : vector<16x8xf32>
    %46 = tpu.matmul %43, %44, %cst_29 {dimension_numbers = #tpu.dot_dimension_numbers<[1], [1], [0], [0], [0, 0, 1, 0], [], []>} : vector<16x32xf32>, vector<8x32xf32>, vector<16x8xf32> -> vector<16x8xf32>
    %cst_30 = arith.constant 0.176776692 : f32
    %47 = vector.broadcast %cst_30 : f32 to vector<16x8xf32>
    %48 = arith.mulf %46, %47 : vector<16x8xf32>
    %cst_31 = arith.constant 0.000000e+00 : f32
    %49 = vector.broadcast %cst_31 : f32 to vector<1x8xf32>
    %50 = arith.cmpf ogt, %5, %49 : vector<1x8xf32>
    %cst_32 = arith.constant -1.000000e+09 : f32
    %51 = vector.shape_cast %50 : vector<1x8xi1> to vector<1x8xi1>
    %52 = vector.broadcast %51 : vector<1x8xi1> to vector<16x8xi1>
    %53 = vector.broadcast %cst_32 : f32 to vector<16x8xf32>
    %54 = arith.select %52, %48, %53 : vector<16x8xi1>, vector<16x8xf32>
    %cst_33 = arith.constant dense<0xFF800000> : vector<16xf32>
    %55 = vector.multi_reduction <maximumf>, %54, %cst_33 [1] : vector<16x8xf32> to vector<16xf32>
    %56 = vector.shape_cast %55 : vector<16xf32> to vector<16x1xf32>
    %57 = vector.broadcast %56 : vector<16x1xf32> to vector<16x8xf32>
    %58 = arith.subf %54, %57 : vector<16x8xf32>
    %59 = math.exp %58 : vector<16x8xf32>
    %cst_34 = arith.constant dense<0.000000e+00> : vector<16xf32>
    %60 = vector.multi_reduction <add>, %59, %cst_34 [1] : vector<16x8xf32> to vector<16xf32>
    %61 = vector.shape_cast %60 : vector<16xf32> to vector<16x1xf32>
    %62 = vector.broadcast %61 : vector<16x1xf32> to vector<16x8xf32>
    %63 = arith.divf %59, %62 : vector<16x8xf32>
    %cst_35 = arith.constant dense<0.000000e+00> : vector<16x32xf32>
    %64 = tpu.matmul %63, %45, %cst_35 {dimension_numbers = #tpu.dot_dimension_numbers<[1], [0], [0], [1], [0, 0, 1, 1], [], []>} : vector<16x8xf32>, vector<8x32xf32>, vector<16x32xf32> -> vector<16x32xf32>
    %65 = vector.extract_strided_slice %10 {offsets = [0, 64], sizes = [16, 32], strides = [1, 1]} : vector<16x128xf32> to vector<16x32xf32>
    %66 = vector.extract_strided_slice %15 {offsets = [0, 64], sizes = [8, 32], strides = [1, 1]} : vector<8x128xf32> to vector<8x32xf32>
    %67 = vector.extract_strided_slice %20 {offsets = [0, 64], sizes = [8, 32], strides = [1, 1]} : vector<8x128xf32> to vector<8x32xf32>
    %cst_36 = arith.constant dense<0.000000e+00> : vector<16x8xf32>
    %68 = tpu.matmul %65, %66, %cst_36 {dimension_numbers = #tpu.dot_dimension_numbers<[1], [1], [0], [0], [0, 0, 1, 0], [], []>} : vector<16x32xf32>, vector<8x32xf32>, vector<16x8xf32> -> vector<16x8xf32>
    %cst_37 = arith.constant 0.176776692 : f32
    %69 = vector.broadcast %cst_37 : f32 to vector<16x8xf32>
    %70 = arith.mulf %68, %69 : vector<16x8xf32>
    %cst_38 = arith.constant 0.000000e+00 : f32
    %71 = vector.broadcast %cst_38 : f32 to vector<1x8xf32>
    %72 = arith.cmpf ogt, %5, %71 : vector<1x8xf32>
    %cst_39 = arith.constant -1.000000e+09 : f32
    %73 = vector.shape_cast %72 : vector<1x8xi1> to vector<1x8xi1>
    %74 = vector.broadcast %73 : vector<1x8xi1> to vector<16x8xi1>
    %75 = vector.broadcast %cst_39 : f32 to vector<16x8xf32>
    %76 = arith.select %74, %70, %75 : vector<16x8xi1>, vector<16x8xf32>
    %cst_40 = arith.constant dense<0xFF800000> : vector<16xf32>
    %77 = vector.multi_reduction <maximumf>, %76, %cst_40 [1] : vector<16x8xf32> to vector<16xf32>
    %78 = vector.shape_cast %77 : vector<16xf32> to vector<16x1xf32>
    %79 = vector.broadcast %78 : vector<16x1xf32> to vector<16x8xf32>
    %80 = arith.subf %76, %79 : vector<16x8xf32>
    %81 = math.exp %80 : vector<16x8xf32>
    %cst_41 = arith.constant dense<0.000000e+00> : vector<16xf32>
    %82 = vector.multi_reduction <add>, %81, %cst_41 [1] : vector<16x8xf32> to vector<16xf32>
    %83 = vector.shape_cast %82 : vector<16xf32> to vector<16x1xf32>
    %84 = vector.broadcast %83 : vector<16x1xf32> to vector<16x8xf32>
    %85 = arith.divf %81, %84 : vector<16x8xf32>
    %cst_42 = arith.constant dense<0.000000e+00> : vector<16x32xf32>
    %86 = tpu.matmul %85, %67, %cst_42 {dimension_numbers = #tpu.dot_dimension_numbers<[1], [0], [0], [1], [0, 0, 1, 1], [], []>} : vector<16x8xf32>, vector<8x32xf32>, vector<16x32xf32> -> vector<16x32xf32>
    %87 = vector.extract_strided_slice %10 {offsets = [0, 96], sizes = [16, 32], strides = [1, 1]} : vector<16x128xf32> to vector<16x32xf32>
    %88 = vector.extract_strided_slice %15 {offsets = [0, 96], sizes = [8, 32], strides = [1, 1]} : vector<8x128xf32> to vector<8x32xf32>
    %89 = vector.extract_strided_slice %20 {offsets = [0, 96], sizes = [8, 32], strides = [1, 1]} : vector<8x128xf32> to vector<8x32xf32>
    %cst_43 = arith.constant dense<0.000000e+00> : vector<16x8xf32>
    %90 = tpu.matmul %87, %88, %cst_43 {dimension_numbers = #tpu.dot_dimension_numbers<[1], [1], [0], [0], [0, 0, 1, 0], [], []>} : vector<16x32xf32>, vector<8x32xf32>, vector<16x8xf32> -> vector<16x8xf32>
    %cst_44 = arith.constant 0.176776692 : f32
    %91 = vector.broadcast %cst_44 : f32 to vector<16x8xf32>
    %92 = arith.mulf %90, %91 : vector<16x8xf32>
    %cst_45 = arith.constant 0.000000e+00 : f32
    %93 = vector.broadcast %cst_45 : f32 to vector<1x8xf32>
    %94 = arith.cmpf ogt, %5, %93 : vector<1x8xf32>
    %cst_46 = arith.constant -1.000000e+09 : f32
    %95 = vector.shape_cast %94 : vector<1x8xi1> to vector<1x8xi1>
    %96 = vector.broadcast %95 : vector<1x8xi1> to vector<16x8xi1>
    %97 = vector.broadcast %cst_46 : f32 to vector<16x8xf32>
    %98 = arith.select %96, %92, %97 : vector<16x8xi1>, vector<16x8xf32>
    %cst_47 = arith.constant dense<0xFF800000> : vector<16xf32>
    %99 = vector.multi_reduction <maximumf>, %98, %cst_47 [1] : vector<16x8xf32> to vector<16xf32>
    %100 = vector.shape_cast %99 : vector<16xf32> to vector<16x1xf32>
    %101 = vector.broadcast %100 : vector<16x1xf32> to vector<16x8xf32>
    %102 = arith.subf %98, %101 : vector<16x8xf32>
    %103 = math.exp %102 : vector<16x8xf32>
    %cst_48 = arith.constant dense<0.000000e+00> : vector<16xf32>
    %104 = vector.multi_reduction <add>, %103, %cst_48 [1] : vector<16x8xf32> to vector<16xf32>
    %105 = vector.shape_cast %104 : vector<16xf32> to vector<16x1xf32>
    %106 = vector.broadcast %105 : vector<16x1xf32> to vector<16x8xf32>
    %107 = arith.divf %103, %106 : vector<16x8xf32>
    %cst_49 = arith.constant dense<0.000000e+00> : vector<16x32xf32>
    %108 = tpu.matmul %107, %89, %cst_49 {dimension_numbers = #tpu.dot_dimension_numbers<[1], [0], [0], [1], [0, 0, 1, 1], [], []>} : vector<16x8xf32>, vector<8x32xf32>, vector<16x32xf32> -> vector<16x32xf32>
    %109 = tpu.concatenate %42, %64, %86, %108 in 1 : vector<16x32xf32>, vector<16x32xf32>, vector<16x32xf32>, vector<16x32xf32> -> vector<16x128xf32>
    %c0_50 = arith.constant 0 : index
    %c0_51 = arith.constant 0 : index
    %110 = vector.load %arg10[%c0_50, %c0_51] : memref<128x128xf32, #tpu.memory_space<vmem>>, vector<128x128xf32>
    %cst_52 = arith.constant dense<0.000000e+00> : vector<16x128xf32>
    %111 = tpu.matmul %109, %110, %cst_52 {dimension_numbers = #tpu.dot_dimension_numbers<[1], [0], [0], [1], [0, 0, 1, 1], [], []>} : vector<16x128xf32>, vector<128x128xf32>, vector<16x128xf32> -> vector<16x128xf32>
    %c0_53 = arith.constant 0 : index
    %c0_54 = arith.constant 0 : index
    %112 = vector.load %arg11[%c0_53, %c0_54] : memref<1x128xf32, #tpu.memory_space<vmem>>, vector<1x128xf32>
    %113 = vector.broadcast %112 : vector<1x128xf32> to vector<16x128xf32>
    %114 = arith.addf %111, %113 : vector<16x128xf32>
    %115 = arith.addf %114, %1 : vector<16x128xf32>
    %c0_55 = arith.constant 0 : index
    %c0_56 = arith.constant 0 : index
    %116 = vector.load %arg12[%c0_55, %c0_56] : memref<1x128xf32, #tpu.memory_space<vmem>>, vector<1x128xf32>
    %c0_57 = arith.constant 0 : index
    %c0_58 = arith.constant 0 : index
    %117 = vector.load %arg13[%c0_57, %c0_58] : memref<1x128xf32, #tpu.memory_space<vmem>>, vector<1x128xf32>
    %cst_59 = arith.constant dense<0.000000e+00> : vector<16xf32>
    %118 = vector.multi_reduction <add>, %115, %cst_59 [1] : vector<16x128xf32> to vector<16xf32>
    %119 = vector.shape_cast %118 : vector<16xf32> to vector<16x1xf32>
    %cst_60 = arith.constant 1.280000e+02 : f32
    %120 = vector.broadcast %cst_60 : f32 to vector<16x1xf32>
    %121 = arith.divf %119, %120 : vector<16x1xf32>
    %122 = vector.broadcast %121 : vector<16x1xf32> to vector<16x128xf32>
    %123 = arith.subf %115, %122 : vector<16x128xf32>
    %124 = arith.mulf %123, %123 : vector<16x128xf32>
    %cst_61 = arith.constant dense<0.000000e+00> : vector<16xf32>
    %125 = vector.multi_reduction <add>, %124, %cst_61 [1] : vector<16x128xf32> to vector<16xf32>
    %126 = vector.shape_cast %125 : vector<16xf32> to vector<16x1xf32>
    %cst_62 = arith.constant 1.280000e+02 : f32
    %127 = vector.broadcast %cst_62 : f32 to vector<16x1xf32>
    %128 = arith.divf %126, %127 : vector<16x1xf32>
    %cst_63 = arith.constant 9.99999996E-13 : f32
    %129 = vector.broadcast %cst_63 : f32 to vector<16x1xf32>
    %130 = arith.addf %128, %129 : vector<16x1xf32>
    %131 = math.rsqrt %130 : vector<16x1xf32>
    %132 = vector.broadcast %131 : vector<16x1xf32> to vector<16x128xf32>
    %133 = arith.mulf %123, %132 : vector<16x128xf32>
    %134 = vector.broadcast %116 : vector<1x128xf32> to vector<16x128xf32>
    %135 = arith.mulf %133, %134 : vector<16x128xf32>
    %136 = vector.broadcast %117 : vector<1x128xf32> to vector<16x128xf32>
    %137 = arith.addf %135, %136 : vector<16x128xf32>
    %c0_64 = arith.constant 0 : index
    %c0_65 = arith.constant 0 : index
    %138 = vector.load %arg14[%c0_64, %c0_65] : memref<128x512xf32, #tpu.memory_space<vmem>>, vector<128x512xf32>
    %cst_66 = arith.constant dense<0.000000e+00> : vector<16x512xf32>
    %139 = tpu.matmul %137, %138, %cst_66 {dimension_numbers = #tpu.dot_dimension_numbers<[1], [0], [0], [1], [0, 0, 1, 1], [], []>} : vector<16x128xf32>, vector<128x512xf32>, vector<16x512xf32> -> vector<16x512xf32>
    %c0_67 = arith.constant 0 : index
    %c0_68 = arith.constant 0 : index
    %140 = vector.load %arg15[%c0_67, %c0_68] : memref<1x512xf32, #tpu.memory_space<vmem>>, vector<1x512xf32>
    %141 = vector.broadcast %140 : vector<1x512xf32> to vector<16x512xf32>
    %142 = arith.addf %139, %141 : vector<16x512xf32>
    %cst_69 = arith.constant 5.000000e-01 : f32
    %143 = vector.broadcast %cst_69 : f32 to vector<16x512xf32>
    %144 = arith.mulf %143, %142 : vector<16x512xf32>
    %cst_70 = arith.constant 0.707106769 : f32
    %145 = vector.broadcast %cst_70 : f32 to vector<16x512xf32>
    %146 = arith.mulf %142, %145 : vector<16x512xf32>
    %147 = math.erf %146 : vector<16x512xf32>
    %cst_71 = arith.constant 1.000000e+00 : f32
    %148 = vector.broadcast %cst_71 : f32 to vector<16x512xf32>
    %149 = arith.addf %148, %147 : vector<16x512xf32>
    %150 = arith.mulf %144, %149 : vector<16x512xf32>
    %c0_72 = arith.constant 0 : index
    %c0_73 = arith.constant 0 : index
    %151 = vector.load %arg16[%c0_72, %c0_73] : memref<512x128xf32, #tpu.memory_space<vmem>>, vector<512x128xf32>
    %cst_74 = arith.constant dense<0.000000e+00> : vector<16x128xf32>
    %152 = tpu.matmul %150, %151, %cst_74 {dimension_numbers = #tpu.dot_dimension_numbers<[1], [0], [0], [1], [0, 0, 1, 1], [], []>} : vector<16x512xf32>, vector<512x128xf32>, vector<16x128xf32> -> vector<16x128xf32>
    %c0_75 = arith.constant 0 : index
    %c0_76 = arith.constant 0 : index
    %153 = vector.load %arg17[%c0_75, %c0_76] : memref<1x128xf32, #tpu.memory_space<vmem>>, vector<1x128xf32>
    %154 = vector.broadcast %153 : vector<1x128xf32> to vector<16x128xf32>
    %155 = arith.addf %152, %154 : vector<16x128xf32>
    %156 = arith.addf %155, %137 : vector<16x128xf32>
    %c0_77 = arith.constant 0 : index
    %c0_78 = arith.constant 0 : index
    %157 = vector.load %arg18[%c0_77, %c0_78] : memref<1x128xf32, #tpu.memory_space<vmem>>, vector<1x128xf32>
    %c0_79 = arith.constant 0 : index
    %c0_80 = arith.constant 0 : index
    %158 = vector.load %arg19[%c0_79, %c0_80] : memref<1x128xf32, #tpu.memory_space<vmem>>, vector<1x128xf32>
    %cst_81 = arith.constant dense<0.000000e+00> : vector<16xf32>
    %159 = vector.multi_reduction <add>, %156, %cst_81 [1] : vector<16x128xf32> to vector<16xf32>
    %160 = vector.shape_cast %159 : vector<16xf32> to vector<16x1xf32>
    %cst_82 = arith.constant 1.280000e+02 : f32
    %161 = vector.broadcast %cst_82 : f32 to vector<16x1xf32>
    %162 = arith.divf %160, %161 : vector<16x1xf32>
    %163 = vector.broadcast %162 : vector<16x1xf32> to vector<16x128xf32>
    %164 = arith.subf %156, %163 : vector<16x128xf32>
    %165 = arith.mulf %164, %164 : vector<16x128xf32>
    %cst_83 = arith.constant dense<0.000000e+00> : vector<16xf32>
    %166 = vector.multi_reduction <add>, %165, %cst_83 [1] : vector<16x128xf32> to vector<16xf32>
    %167 = vector.shape_cast %166 : vector<16xf32> to vector<16x1xf32>
    %cst_84 = arith.constant 1.280000e+02 : f32
    %168 = vector.broadcast %cst_84 : f32 to vector<16x1xf32>
    %169 = arith.divf %167, %168 : vector<16x1xf32>
    %cst_85 = arith.constant 9.99999996E-13 : f32
    %170 = vector.broadcast %cst_85 : f32 to vector<16x1xf32>
    %171 = arith.addf %169, %170 : vector<16x1xf32>
    %172 = math.rsqrt %171 : vector<16x1xf32>
    %173 = vector.broadcast %172 : vector<16x1xf32> to vector<16x128xf32>
    %174 = arith.mulf %164, %173 : vector<16x128xf32>
    %175 = vector.broadcast %157 : vector<1x128xf32> to vector<16x128xf32>
    %176 = arith.mulf %174, %175 : vector<16x128xf32>
    %177 = vector.broadcast %158 : vector<1x128xf32> to vector<16x128xf32>
    %178 = arith.addf %176, %177 : vector<16x128xf32>
    %c0_86 = arith.constant 0 : index
    %c0_87 = arith.constant 0 : index
    %c0_88 = arith.constant 0 : index
    %179 = vector.load %arg20[%c0_86, %c0_87, %c0_88] : memref<1x16x128xf32, #tpu.memory_space<vmem>>, vector<1x16x128xf32>
    %180 = vector.shape_cast %179 : vector<1x16x128xf32> to vector<16x128xf32>
    %181 = vector.shape_cast %178 : vector<16x128xf32> to vector<1x16x128xf32>
    tpu.vector_store %arg20[%c0_86, %c0_87, %c0_88], %181 {strides = array<i32>} : memref<1x16x128xf32, #tpu.memory_space<vmem>>, vector<1x16x128xf32>,
    return
  }
  func.func @transform_0(%arg0: i32) -> (i32, i32, i32) {
    %c0_i32 = arith.constant 0 : i32
    %c0_i32_0 = arith.constant 0 : i32
    %c0_i32_1 = arith.constant 0 : i32
    return %arg0, %c0_i32, %c0_i32_0 : i32, i32, i32
  }
  func.func @transform_1(%arg0: i32) -> (i32, i32, i32) {
    %c0_i32 = arith.constant 0 : i32
    %c0_i32_0 = arith.constant 0 : i32
    %c0_i32_1 = arith.constant 0 : i32
    return %arg0, %c0_i32, %c0_i32_0 : i32, i32, i32
  }
  func.func @transform_2(%arg0: i32) -> (i32, i32, i32) {
    %c0_i32 = arith.constant 0 : i32
    %c0_i32_0 = arith.constant 0 : i32
    %c0_i32_1 = arith.constant 0 : i32
    return %arg0, %c0_i32, %c0_i32_0 : i32, i32, i32
  }
  func.func @transform_3(%arg0: i32) -> (i32, i32) {
    %c0_i32 = arith.constant 0 : i32
    %c0_i32_0 = arith.constant 0 : i32
    %c0_i32_1 = arith.constant 0 : i32
    return %c0_i32, %c0_i32_0 : i32, i32
  }
  func.func @transform_4(%arg0: i32) -> (i32, i32) {
    %c0_i32 = arith.constant 0 : i32
    %c0_i32_0 = arith.constant 0 : i32
    %c0_i32_1 = arith.constant 0 : i32
    return %c0_i32, %c0_i32_0 : i32, i32
  }
  func.func @transform_5(%arg0: i32) -> (i32, i32) {
    %c0_i32 = arith.constant 0 : i32
    %c0_i32_0 = arith.constant 0 : i32
    %c0_i32_1 = arith.constant 0 : i32
    return %c0_i32, %c0_i32_0 : i32, i32
  }
  func.func @transform_6(%arg0: i32) -> (i32, i32) {
    %c0_i32 = arith.constant 0 : i32
    %c0_i32_0 = arith.constant 0 : i32
    %c0_i32_1 = arith.constant 0 : i32
    return %c0_i32, %c0_i32_0 : i32, i32
  }
  func.func @transform_7(%arg0: i32) -> (i32, i32) {
    %c0_i32 = arith.constant 0 : i32
    %c0_i32_0 = arith.constant 0 : i32
    %c0_i32_1 = arith.constant 0 : i32
    return %c0_i32, %c0_i32_0 : i32, i32
  }
  func.func @transform_8(%arg0: i32) -> (i32, i32) {
    %c0_i32 = arith.constant 0 : i32
    %c0_i32_0 = arith.constant 0 : i32
    %c0_i32_1 = arith.constant 0 : i32
    return %c0_i32, %c0_i32_0 : i32, i32
  }
  func.func @transform_9(%arg0: i32) -> (i32, i32) {
    %c0_i32 = arith.constant 0 : i32
    %c0_i32_0 = arith.constant 0 : i32
    %c0_i32_1 = arith.constant 0 : i32
    return %c0_i32, %c0_i32_0 : i32, i32
  }
  func.func @transform_10(%arg0: i32) -> (i32, i32) {
    %c0_i32 = arith.constant 0 : i32
    %c0_i32_0 = arith.constant 0 : i32
    %c0_i32_1 = arith.constant 0 : i32
    return %c0_i32, %c0_i32_0 : i32, i32
  }
  func.func @transform_11(%arg0: i32) -> (i32, i32) {
    %c0_i32 = arith.constant 0 : i32
    %c0_i32_0 = arith.constant 0 : i32
    %c0_i32_1 = arith.constant 0 : i32
    return %c0_i32, %c0_i32_0 : i32, i32
  }
  func.func @transform_12(%arg0: i32) -> (i32, i32) {
    %c0_i32 = arith.constant 0 : i32
    %c0_i32_0 = arith.constant 0 : i32
    %c0_i32_1 = arith.constant 0 : i32
    return %c0_i32, %c0_i32_0 : i32, i32
  }
  func.func @transform_13(%arg0: i32) -> (i32, i32) {
    %c0_i32 = arith.constant 0 : i32
    %c0_i32_0 = arith.constant 0 : i32
    %c0_i32_1 = arith.constant 0 : i32
    return %c0_i32, %c0_i32_0 : i32, i32
  }
  func.func @transform_14(%arg0: i32) -> (i32, i32) {
    %c0_i32 = arith.constant 0 : i32
    %c0_i32_0 = arith.constant 0 : i32
    %c0_i32_1 = arith.constant 0 : i32
    return %c0_i32, %c0_i32_0 : i32, i32
  }
  func.func @transform_15(%arg0: i32) -> (i32, i32) {
    %c0_i32 = arith.constant 0 : i32
    %c0_i32_0 = arith.constant 0 : i32
    %c0_i32_1 = arith.constant 0 : i32
    return %c0_i32, %c0_i32_0 : i32, i32
  }
  func.func @transform_16(%arg0: i32) -> (i32, i32) {
    %c0_i32 = arith.constant 0 : i32
    %c0_i32_0 = arith.constant 0 : i32
    %c0_i32_1 = arith.constant 0 : i32
    return %c0_i32, %c0_i32_0 : i32, i32
  }
  func.func @transform_17(%arg0: i32) -> (i32, i32) {
    %c0_i32 = arith.constant 0 : i32
    %c0_i32_0 = arith.constant 0 : i32
    %c0_i32_1 = arith.constant 0 : i32
    return %c0_i32, %c0_i32_0 : i32, i32
  }
  func.func @transform_18(%arg0: i32) -> (i32, i32) {
    %c0_i32 = arith.constant 0 : i32
    %c0_i32_0 = arith.constant 0 : i32
    %c0_i32_1 = arith.constant 0 : i32
    return %c0_i32, %c0_i32_0 : i32, i32
  }
  func.func @transform_19(%arg0: i32) -> (i32, i32, i32) {
    %c0_i32 = arith.constant 0 : i32
    %c0_i32_0 = arith.constant 0 : i32
    %c0_i32_1 = arith.constant 0 : i32
    return %arg0, %c0_i32, %c0_i32_0 : i32, i32, i32
  }
}

</mosaic_0001>

<llo_original>
// kernel: tpu_custom_call.1
$region0: #{tpu_custom_call.1}
  #allocation0 [shape = 'u32[]', space=smem, size = 0x4, offset = 0x4, fixed_abs, tag = 'smem constant byte address 0x4 - core index']
  #allocation1 [shape = 'u32[144,128]{1,0:T(1,128)}', space=vmem, size = 0x12000, scoped, tag = 'internal scratch']
  %s0 = inlined_call_operand.hbm [shape: f32[2,16,128], index: 0, kind: input, shape index: {}]
  %s1 = inlined_call_operand.hbm [shape: f32[2,8,128], index: 1, kind: input, shape index: {}]
  %s2 = inlined_call_operand.vmem [shape: f32[2,1,8], index: 2, kind: input, shape index: {}]
  %s3 = inlined_call_operand.hbm [shape: f32[128,128], index: 3, kind: input, shape index: {}]
  %s4 = inlined_call_operand.vmem [shape: f32[1,128], index: 4, kind: input, shape index: {}]
  %s5 = inlined_call_operand.hbm [shape: f32[128,128], index: 5, kind: input, shape index: {}]
  %s6 = inlined_call_operand.vmem [shape: f32[1,128], index: 6, kind: input, shape index: {}]
  %s7 = inlined_call_operand.hbm [shape: f32[128,128], index: 7, kind: input, shape index: {}]
  %s8 = inlined_call_operand.vmem [shape: f32[1,128], index: 8, kind: input, shape index: {}]
  %s9 = inlined_call_operand.hbm [shape: f32[128,128], index: 9, kind: input, shape index: {}]
  %s10 = inlined_call_operand.vmem [shape: f32[1,128], index: 10, kind: input, shape index: {}]
  %s11 = inlined_call_operand.vmem [shape: f32[1,128], index: 11, kind: input, shape index: {}]
  %s12 = inlined_call_operand.vmem [shape: f32[1,128], index: 12, kind: input, shape index: {}]
  %s13 = inlined_call_operand.hbm [shape: f32[128,512], index: 13, kind: input, shape index: {}]
  %s14 = inlined_call_operand.vmem [shape: f32[1,512], index: 14, kind: input, shape index: {}]
  %s15 = inlined_call_operand.hbm [shape: f32[512,128], index: 15, kind: input, shape index: {}]
  %s16 = inlined_call_operand.vmem [shape: f32[1,128], index: 16, kind: input, shape index: {}]
  %s17 = inlined_call_operand.vmem [shape: f32[1,128], index: 17, kind: input, shape index: {}]
  %s18 = inlined_call_operand.vmem [shape: f32[1,128], index: 18, kind: input, shape index: {}]
  %s19 = inlined_call_operand.hbm [shape: f32[2,16,128], index: 19, kind: output, shape index: {}]
  %s20 = sld [smem:[#allocation0]]
  $region141: #{tpu_custom_call.1} parent=0
    _
  %s22 = ssub.s32 1, %s20
  %s23 = scalar_select 0, %s22, %s20
  $region1: #{tpu_custom_call.1} parent=0
    #allocation2 [shape = 'u8[16384]{0}', space=vmem, size = 0x4000, scoped, tag = 'input window, operand 0']
    #allocation3 [shape = 's32[2]{0}', space=sflag, size = 0x8, scoped, tag = 'scoped memory for tpu_custom_call.1']
    #allocation4 [shape = 's32[2]{0}', space=sflag, size = 0x8, scoped, tag = 'scoped memory for tpu_custom_call.1']
    #allocation5 [shape = 'u8[8192]{0}', space=vmem, size = 0x2000, scoped, tag = 'input window, operand 1']
    #allocation6 [shape = 's32[2]{0}', space=sflag, size = 0x8, scoped, tag = 'scoped memory for tpu_custom_call.1']
    #allocation7 [shape = 'u8[65536]{0}', space=vmem, size = 0x10000, scoped, tag = 'input window, operand 3, single buffered']
    #allocation8 [shape = 'u8[65536]{0}', space=vmem, size = 0x10000, scoped, tag = 'input window, operand 5, single buffered']
    #allocation9 [shape = 's32[1]{0}', space=sflag, size = 0x4, scoped, tag = 'scoped memory for tpu_custom_call.1']
    #allocation10 [shape = 'u8[65536]{0}', space=vmem, size = 0x10000, scoped, tag = 'input window, operand 7, single buffered']
    #allocation11 [shape = 'u8[65536]{0}', space=vmem, size = 0x10000, scoped, tag = 'input window, operand 9, single buffered']
    #allocation12 [shape = 's32[1]{0}', space=sflag, size = 0x4, scoped, tag = 'scoped memory for tpu_custom_call.1']
    #allocation13 [shape = 'u8[262144]{0}', space=vmem, size = 0x40000, scoped, tag = 'input window, operand 13, single buffered']
    #allocation14 [shape = 'u8[262144]{0}', space=vmem, size = 0x40000, scoped, tag = 'input window, operand 15, single buffered']
    #allocation15 [shape = 's32[1]{0}', space=sflag, size = 0x4, scoped, tag = 'scoped memory for tpu_custom_call.1']
    #allocation16 [shape = 'u8[16384]{0}', space=vmem, size = 0x4000, scoped, tag = 'output window, operand 0']
    %24 = vsyncpa [#allocation3], 0
    %s25 = scalar_lea.sflag [#allocation3], 1
    %26 = vsyncpa %s25, 0
    %27 = vsyncpa [#allocation6], 0
    %s28 = scalar_lea.sflag [#allocation6], 1
    %29 = vsyncpa %s28, 0
    %30 = vsyncpa [#allocation9], 0
    %31 = vsyncpa [#allocation12], 0
    %32 = vsyncpa [#allocation15], 0
    %33 = vsyncpa [#allocation4], 0
    %s34 = scalar_lea.sflag [#allocation4], 1
    %35 = vsyncpa %s34, 0
    loop: start=0, step=1, limit=4
    $region2: #{tpu_custom_call.1} parent=1 // loop_pre_header
      _
    $region3: #{tpu_custom_call.1} parent=1 // loop_header
      %s37 = sphi 0, %s41
      %p38 = scmp.ge.s32.totalorder %s37, 4
      %s47 = sphi 0, %s49
      %s50 = sphi 0, %s47
      %s51 = sphi 0, %s50
      %s67 = sphi 0, %s51
      %s73 = sphi 0, %s75
      %s76 = sphi 0, %s73
      %s77 = sphi 0, %s76
      %s93 = sphi 0, %s77
      %s99 = sphi 0, %s101
      %s102 = sphi 0, %s99
      %s103 = sphi 0, %s102
      %s119 = sphi 0, %s103
      %s123 = sphi 0, %s123
      %s125 = sphi 0, %s123
      %s126 = sphi 0, %s125
      %s140 = sphi 0, %s126
      %s144 = sphi 0, %s144
      %s146 = sphi 0, %s144
      %s147 = sphi 0, %s146
      %s161 = sphi 0, %s147
      %s165 = sphi 0, %s165
      %s167 = sphi 0, %s165
      %s168 = sphi 0, %s167
      %s182 = sphi 0, %s168
      %s186 = sphi 0, %s186
      %s188 = sphi 0, %s186
      %s189 = sphi 0, %s188
      %s203 = sphi 0, %s189
      %s207 = sphi 0, %s207
      %s209 = sphi 0, %s207
      %s210 = sphi 0, %s209
      %s224 = sphi 0, %s210
      %s228 = sphi 0, %s228
      %s230 = sphi 0, %s228
      %s231 = sphi 0, %s230
      %s245 = sphi 0, %s231
      %s249 = sphi 0, %s249
      %s251 = sphi 0, %s249
      %s252 = sphi 0, %s251
      %s266 = sphi 0, %s252
      %s270 = sphi 0, %s270
      %s272 = sphi 0, %s270
      %s273 = sphi 0, %s272
      %s287 = sphi 0, %s273
      %s291 = sphi 0, %s291
      %s293 = sphi 0, %s291
      %s294 = sphi 0, %s293
      %s308 = sphi 0, %s294
      %s312 = sphi 0, %s312
      %s314 = sphi 0, %s312
      %s315 = sphi 0, %s314
      %s329 = sphi 0, %s315
      %s333 = sphi 0, %s333
      %s335 = sphi 0, %s333
      %s336 = sphi 0, %s335
      %s350 = sphi 0, %s336
      %s354 = sphi 0, %s354
      %s356 = sphi 0, %s354
      %s357 = sphi 0, %s356
      %s371 = sphi 0, %s357
      %s375 = sphi 0, %s375
      %s377 = sphi 0, %s375
      %s378 = sphi 0, %s377
      %s392 = sphi 0, %s378
      %s396 = sphi 0, %s396
      %s398 = sphi 0, %s396
      %s399 = sphi 0, %s398
      %s413 = sphi 0, %s399
      %s417 = sphi 0, %s417
      %s419 = sphi 0, %s417
      %s420 = sphi 0, %s419
      %s434 = sphi 0, %s420
      %s438 = sphi 0, %s438
      %s440 = sphi 0, %s438
      %s441 = sphi 0, %s440
      %s455 = sphi 0, %s441
      %s461 = sphi 0, %s463
      %s464 = sphi 0, %s461
      %s465 = sphi 0, %s464
      %s481 = sphi 0, %s465
    $region4: #{tpu_custom_call.1} parent=1 // loop_header_branch
      %40 = sbr.rel (%p38) target = $region8
    $region5: #{tpu_custom_call.1} parent=1 // loop_body
      %s42 = ssub.s32 %s37, 1
      %s43 = ssub.s32 %s37, 2
      %s44 = sadd.s32 %s37, 1
      %s45 = ssub.s32 %s37, %s44
      %p46 = scmp.eq.s32.totalorder %s45, 0
      %s48 = sadd.s32 %s47, 1
      %s49 = scalar_select %p46, %s47, %s48
      %p52 = pneg %p46
      %p53 = scmp.eq.s32.totalorder %s37, 1
      %p54 = por %p52, %p53
      %p55 = scmp.ne.s32.totalorder %s47, %s50
      %p56 = scmp.eq.s32.totalorder %s37, 0
      %p57 = por %p55, %p56
      %p58 = scmp.ne.s32.totalorder %s47, %s50
      %p59 = scmp.eq.s32.totalorder %s42, 1
      %p60 = por %p58, %p59
      %p61 = scmp.ne.s32.totalorder %s50, %s51
      %p62 = scmp.eq.s32.totalorder %s42, 0
      %p63 = por %p61, %p62
      %p64 = scmp.ne.s32.totalorder %s50, %s51
      %p65 = scmp.eq.s32.totalorder %s43, 1
      %p66 = por %p64, %p65
      %p68 = scmp.ne.s32.totalorder %s51, %s67
      %p69 = scmp.eq.s32.totalorder %s43, 0
      %p70 = por %p68, %p69
      %s71 = ssub.s32 %s37, %s44
      %p72 = scmp.eq.s32.totalorder %s71, 0
      %s74 = sadd.s32 %s73, 1
      %s75 = scalar_select %p72, %s73, %s74
      %p78 = pneg %p72
      %p79 = scmp.eq.s32.totalorder %s37, 1
      %p80 = por %p78, %p79
      %p81 = scmp.ne.s32.totalorder %s73, %s76
      %p82 = scmp.eq.s32.totalorder %s37, 0
      %p83 = por %p81, %p82
      %p84 = scmp.ne.s32.totalorder %s73, %s76
      %p85 = scmp.eq.s32.totalorder %s42, 1
      %p86 = por %p84, %p85
      %p87 = scmp.ne.s32.totalorder %s76, %s77
      %p88 = scmp.eq.s32.totalorder %s42, 0
      %p89 = por %p87, %p88
      %p90 = scmp.ne.s32.totalorder %s76, %s77
      %p91 = scmp.eq.s32.totalorder %s43, 1
      %p92 = por %p90, %p91
      %p94 = scmp.ne.s32.totalorder %s77, %s93
      %p95 = scmp.eq.s32.totalorder %s43, 0
      %p96 = por %p94, %p95
      %s97 = ssub.s32 %s37, %s44
      %p98 = scmp.eq.s32.totalorder %s97, 0
      %s100 = sadd.s32 %s99, 1
      %s101 = scalar_select %p98, %s99, %s100
      %p104 = pneg %p98
      %p105 = scmp.eq.s32.totalorder %s37, 1
      %p106 = por %p104, %p105
      %p107 = scmp.ne.s32.totalorder %s99, %s102
      %p108 = scmp.eq.s32.totalorder %s37, 0
      %p109 = por %p107, %p108
      %p110 = scmp.ne.s32.totalorder %s99, %s102
      %p111 = scmp.eq.s32.totalorder %s42, 1
      %p112 = por %p110, %p111
      %p113 = scmp.ne.s32.totalorder %s102, %s103
      %p114 = scmp.eq.s32.totalorder %s42, 0
      %p115 = por %p113, %p114
      %p116 = scmp.ne.s32.totalorder %s102, %s103
      %p117 = scmp.eq.s32.totalorder %s43, 1
      %p118 = por %p116, %p117
      %p120 = scmp.ne.s32.totalorder %s103, %s119
      %p121 = scmp.eq.s32.totalorder %s43, 0
      %p122 = por %p120, %p121
      %s124 = sadd.s32 %s123, 1
      %p127 = scmp.eq.s32.totalorder %s37, 1
      %p128 = scmp.ne.s32.totalorder %s123, %s125
      %p129 = scmp.eq.s32.totalorder %s37, 0
      %p130 = por %p128, %p129
      %p131 = scmp.ne.s32.totalorder %s123, %s125
      %p132 = scmp.eq.s32.totalorder %s42, 1
      %p133 = por %p131, %p132
      %p134 = scmp.ne.s32.totalorder %s125, %s126
      %p135 = scmp.eq.s32.totalorder %s42, 0
      %p136 = por %p134, %p135
      %p137 = scmp.ne.s32.totalorder %s125, %s126
      %p138 = scmp.eq.s32.totalorder %s43, 1
      %p139 = por %p137, %p138
      %p141 = scmp.ne.s32.totalorder %s126, %s140
      %p142 = scmp.eq.s32.totalorder %s43, 0
      %p143 = por %p141, %p142
      %s145 = sadd.s32 %s144, 1
      %p148 = scmp.eq.s32.totalorder %s37, 1
      %p149 = scmp.ne.s32.totalorder %s144, %s146
      %p150 = scmp.eq.s32.totalorder %s37, 0
      %p151 = por %p149, %p150
      %p152 = scmp.ne.s32.totalorder %s144, %s146
      %p153 = scmp.eq.s32.totalorder %s42, 1
      %p154 = por %p152, %p153
      %p155 = scmp.ne.s32.totalorder %s146, %s147
      %p156 = scmp.eq.s32.totalorder %s42, 0
      %p157 = por %p155, %p156
      %p158 = scmp.ne.s32.totalorder %s146, %s147
      %p159 = scmp.eq.s32.totalorder %s43, 1
      %p160 = por %p158, %p159
      %p162 = scmp.ne.s32.totalorder %s147, %s161
      %p163 = scmp.eq.s32.totalorder %s43, 0
      %p164 = por %p162, %p163
      %s166 = sadd.s32 %s165, 1
      %p169 = scmp.eq.s32.totalorder %s37, 1
      %p170 = scmp.ne.s32.totalorder %s165, %s167
      %p171 = scmp.eq.s32.totalorder %s37, 0
      %p172 = por %p170, %p171
      %p173 = scmp.ne.s32.totalorder %s165, %s167
      %p174 = scmp.eq.s32.totalorder %s42, 1
      %p175 = por %p173, %p174
      %p176 = scmp.ne.s32.totalorder %s167, %s168
      %p177 = scmp.eq.s32.totalorder %s42, 0
      %p178 = por %p176, %p177
      %p179 = scmp.ne.s32.totalorder %s167, %s168
      %p180 = scmp.eq.s32.totalorder %s43, 1
      %p181 = por %p179, %p180
      %p183 = scmp.ne.s32.totalorder %s168, %s182
      %p184 = scmp.eq.s32.totalorder %s43, 0
      %p185 = por %p183, %p184
      %s187 = sadd.s32 %s186, 1
      %p190 = scmp.eq.s32.totalorder %s37, 1
      %p191 = scmp.ne.s32.totalorder %s186, %s188
      %p192 = scmp.eq.s32.totalorder %s37, 0
      %p193 = por %p191, %p192
      %p194 = scmp.ne.s32.totalorder %s186, %s188
      %p195 = scmp.eq.s32.totalorder %s42, 1
      %p196 = por %p194, %p195
      %p197 = scmp.ne.s32.totalorder %s188, %s189
      %p198 = scmp.eq.s32.totalorder %s42, 0
      %p199 = por %p197, %p198
      %p200 = scmp.ne.s32.totalorder %s188, %s189
      %p201 = scmp.eq.s32.totalorder %s43, 1
      %p202 = por %p200, %p201
      %p204 = scmp.ne.s32.totalorder %s189, %s203
      %p205 = scmp.eq.s32.totalorder %s43, 0
      %p206 = por %p204, %p205
      %s208 = sadd.s32 %s207, 1
      %p211 = scmp.eq.s32.totalorder %s37, 1
      %p212 = scmp.ne.s32.totalorder %s207, %s209
      %p213 = scmp.eq.s32.totalorder %s37, 0
      %p214 = por %p212, %p213
      %p215 = scmp.ne.s32.totalorder %s207, %s209
      %p216 = scmp.eq.s32.totalorder %s42, 1
      %p217 = por %p215, %p216
      %p218 = scmp.ne.s32.totalorder %s209, %s210
      %p219 = scmp.eq.s32.totalorder %s42, 0
      %p220 = por %p218, %p219
      %p221 = scmp.ne.s32.totalorder %s209, %s210
      %p222 = scmp.eq.s32.totalorder %s43, 1
      %p223 = por %p221, %p222
      %p225 = scmp.ne.s32.totalorder %s210, %s224
      %p226 = scmp.eq.s32.totalorder %s43, 0
      %p227 = por %p225, %p226
      %s229 = sadd.s32 %s228, 1
      %p232 = scmp.eq.s32.totalorder %s37, 1
      %p233 = scmp.ne.s32.totalorder %s228, %s230
      %p234 = scmp.eq.s32.totalorder %s37, 0
      %p235 = por %p233, %p234
      %p236 = scmp.ne.s32.totalorder %s228, %s230
      %p237 = scmp.eq.s32.totalorder %s42, 1
      %p238 = por %p236, %p237
      %p239 = scmp.ne.s32.totalorder %s230, %s231
      %p240 = scmp.eq.s32.totalorder %s42, 0
      %p241 = por %p239, %p240
      %p242 = scmp.ne.s32.totalorder %s230, %s231
      %p243 = scmp.eq.s32.totalorder %s43, 1
      %p244 = por %p242, %p243
      %p246 = scmp.ne.s32.totalorder %s231, %s245
      %p247 = scmp.eq.s32.totalorder %s43, 0
      %p248 = por %p246, %p247
      %s250 = sadd.s32 %s249, 1
      %p253 = scmp.eq.s32.totalorder %s37, 1
      %p254 = scmp.ne.s32.totalorder %s249, %s251
      %p255 = scmp.eq.s32.totalorder %s37, 0
      %p256 = por %p254, %p255
      %p257 = scmp.ne.s32.totalorder %s249, %s251
      %p258 = scmp.eq.s32.totalorder %s42, 1
      %p259 = por %p257, %p258
      %p260 = scmp.ne.s32.totalorder %s251, %s252
      %p261 = scmp.eq.s32.totalorder %s42, 0
      %p262 = por %p260, %p261
      %p263 = scmp.ne.s32.totalorder %s251, %s252
      %p264 = scmp.eq.s32.totalorder %s43, 1
      %p265 = por %p263, %p264
      %p267 = scmp.ne.s32.totalorder %s252, %s266
      %p268 = scmp.eq.s32.totalorder %s43, 0
      %p269 = por %p267, %p268
      %s271 = sadd.s32 %s270, 1
      %p274 = scmp.eq.s32.totalorder %s37, 1
      %p275 = scmp.ne.s32.totalorder %s270, %s272
      %p276 = scmp.eq.s32.totalorder %s37, 0
      %p277 = por %p275, %p276
      %p278 = scmp.ne.s32.totalorder %s270, %s272
      %p279 = scmp.eq.s32.totalorder %s42, 1
      %p280 = por %p278, %p279
      %p281 = scmp.ne.s32.totalorder %s272, %s273
      %p282 = scmp.eq.s32.totalorder %s42, 0
      %p283 = por %p281, %p282
      %p284 = scmp.ne.s32.totalorder %s272, %s273
      %p285 = scmp.eq.s32.totalorder %s43, 1
      %p286 = por %p284, %p285
      %p288 = scmp.ne.s32.totalorder %s273, %s287
      %p289 = scmp.eq.s32.totalorder %s43, 0
      %p290 = por %p288, %p289
      %s292 = sadd.s32 %s291, 1
      %p295 = scmp.eq.s32.totalorder %s37, 1
      %p296 = scmp.ne.s32.totalorder %s291, %s293
      %p297 = scmp.eq.s32.totalorder %s37, 0
      %p298 = por %p296, %p297
      %p299 = scmp.ne.s32.totalorder %s291, %s293
      %p300 = scmp.eq.s32.totalorder %s42, 1
      %p301 = por %p299, %p300
      %p302 = scmp.ne.s32.totalorder %s293, %s294
      %p303 = scmp.eq.s32.totalorder %s42, 0
      %p304 = por %p302, %p303
      %p305 = scmp.ne.s32.totalorder %s293, %s294
      %p306 = scmp.eq.s32.totalorder %s43, 1
      %p307 = por %p305, %p306
      %p309 = scmp.ne.s32.totalorder %s294, %s308
      %p310 = scmp.eq.s32.totalorder %s43, 0
      %p311 = por %p309, %p310
      %s313 = sadd.s32 %s312, 1
      %p316 = scmp.eq.s32.totalorder %s37, 1
      %p317 = scmp.ne.s32.totalorder %s312, %s314
      %p318 = scmp.eq.s32.totalorder %s37, 0
      %p319 = por %p317, %p318
      %p320 = scmp.ne.s32.totalorder %s312, %s314
      %p321 = scmp.eq.s32.totalorder %s42, 1
      %p322 = por %p320, %p321
      %p323 = scmp.ne.s32.totalorder %s314, %s315
      %p324 = scmp.eq.s32.totalorder %s42, 0
      %p325 = por %p323, %p324
      %p326 = scmp.ne.s32.totalorder %s314, %s315
      %p327 = scmp.eq.s32.totalorder %s43, 1
      %p328 = por %p326, %p327
      %p330 = scmp.ne.s32.totalorder %s315, %s329
      %p331 = scmp.eq.s32.totalorder %s43, 0
      %p332 = por %p330, %p331
      %s334 = sadd.s32 %s333, 1
      %p337 = scmp.eq.s32.totalorder %s37, 1
      %p338 = scmp.ne.s32.totalorder %s333, %s335
      %p339 = scmp.eq.s32.totalorder %s37, 0
      %p340 = por %p338, %p339
      %p341 = scmp.ne.s32.totalorder %s333, %s335
      %p342 = scmp.eq.s32.totalorder %s42, 1
      %p343 = por %p341, %p342
      %p344 = scmp.ne.s32.totalorder %s335, %s336
      %p345 = scmp.eq.s32.totalorder %s42, 0
      %p346 = por %p344, %p345
      %p347 = scmp.ne.s32.totalorder %s335, %s336
      %p348 = scmp.eq.s32.totalorder %s43, 1
      %p349 = por %p347, %p348
      %p351 = scmp.ne.s32.totalorder %s336, %s350
      %p352 = scmp.eq.s32.totalorder %s43, 0
      %p353 = por %p351, %p352
      %s355 = sadd.s32 %s354, 1
      %p358 = scmp.eq.s32.totalorder %s37, 1
      %p359 = scmp.ne.s32.totalorder %s354, %s356
      %p360 = scmp.eq.s32.totalorder %s37, 0
      %p361 = por %p359, %p360
      %p362 = scmp.ne.s32.totalorder %s354, %s356
      %p363 = scmp.eq.s32.totalorder %s42, 1
      %p364 = por %p362, %p363
      %p365 = scmp.ne.s32.totalorder %s356, %s357
      %p366 = scmp.eq.s32.totalorder %s42, 0
      %p367 = por %p365, %p366
      %p368 = scmp.ne.s32.totalorder %s356, %s357
      %p369 = scmp.eq.s32.totalorder %s43, 1
      %p370 = por %p368, %p369
      %p372 = scmp.ne.s32.totalorder %s357, %s371
      %p373 = scmp.eq.s32.totalorder %s43, 0
      %p374 = por %p372, %p373
      %s376 = sadd.s32 %s375, 1
      %p379 = scmp.eq.s32.totalorder %s37, 1
      %p380 = scmp.ne.s32.totalorder %s375, %s377
      %p381 = scmp.eq.s32.totalorder %s37, 0
      %p382 = por %p380, %p381
      %p383 = scmp.ne.s32.totalorder %s375, %s377
      %p384 = scmp.eq.s32.totalorder %s42, 1
      %p385 = por %p383, %p384
      %p386 = scmp.ne.s32.totalorder %s377, %s378
      %p387 = scmp.eq.s32.totalorder %s42, 0
      %p388 = por %p386, %p387
      %p389 = scmp.ne.s32.totalorder %s377, %s378
      %p390 = scmp.eq.s32.totalorder %s43, 1
      %p391 = por %p389, %p390
      %p393 = scmp.ne.s32.totalorder %s378, %s392
      %p394 = scmp.eq.s32.totalorder %s43, 0
      %p395 = por %p393, %p394
      %s397 = sadd.s32 %s396, 1
      %p400 = scmp.eq.s32.totalorder %s37, 1
      %p401 = scmp.ne.s32.totalorder %s396, %s398
      %p402 = scmp.eq.s32.totalorder %s37, 0
      %p403 = por %p401, %p402
      %p404 = scmp.ne.s32.totalorder %s396, %s398
      %p405 = scmp.eq.s32.totalorder %s42, 1
      %p406 = por %p404, %p405
      %p407 = scmp.ne.s32.totalorder %s398, %s399
      %p408 = scmp.eq.s32.totalorder %s42, 0
      %p409 = por %p407, %p408
      %p410 = scmp.ne.s32.totalorder %s398, %s399
      %p411 = scmp.eq.s32.totalorder %s43, 1
      %p412 = por %p410, %p411
      %p414 = scmp.ne.s32.totalorder %s399, %s413
      %p415 = scmp.eq.s32.totalorder %s43, 0
      %p416 = por %p414, %p415
      %s418 = sadd.s32 %s417, 1
      %p421 = scmp.eq.s32.totalorder %s37, 1
      %p422 = scmp.ne.s32.totalorder %s417, %s419
      %p423 = scmp.eq.s32.totalorder %s37, 0
      %p424 = por %p422, %p423
      %p425 = scmp.ne.s32.totalorder %s417, %s419
      %p426 = scmp.eq.s32.totalorder %s42, 1
      %p427 = por %p425, %p426
      %p428 = scmp.ne.s32.totalorder %s419, %s420
      %p429 = scmp.eq.s32.totalorder %s42, 0
      %p430 = por %p428, %p429
      %p431 = scmp.ne.s32.totalorder %s419, %s420
      %p432 = scmp.eq.s32.totalorder %s43, 1
      %p433 = por %p431, %p432
      %p435 = scmp.ne.s32.totalorder %s420, %s434
      %p436 = scmp.eq.s32.totalorder %s43, 0
      %p437 = por %p435, %p436
      %s439 = sadd.s32 %s438, 1
      %p442 = scmp.eq.s32.totalorder %s37, 1
      %p443 = scmp.ne.s32.totalorder %s438, %s440
      %p444 = scmp.eq.s32.totalorder %s37, 0
      %p445 = por %p443, %p444
      %p446 = scmp.ne.s32.totalorder %s438, %s440
      %p447 = scmp.eq.s32.totalorder %s42, 1
      %p448 = por %p446, %p447
      %p449 = scmp.ne.s32.totalorder %s440, %s441
      %p450 = scmp.eq.s32.totalorder %s42, 0
      %p451 = por %p449, %p450
      %p452 = scmp.ne.s32.totalorder %s440, %s441
      %p453 = scmp.eq.s32.totalorder %s43, 1
      %p454 = por %p452, %p453
      %p456 = scmp.ne.s32.totalorder %s441, %s455
      %p457 = scmp.eq.s32.totalorder %s43, 0
      %p458 = por %p456, %p457
      %s459 = ssub.s32 %s37, %s44
      %p460 = scmp.eq.s32.totalorder %s459, 0
      %s462 = sadd.s32 %s461, 1
      %s463 = scalar_select %p460, %s461, %s462
      %p466 = pneg %p460
      %p467 = scmp.eq.s32.totalorder %s37, 1
      %p468 = por %p466, %p467
      %p469 = scmp.ne.s32.totalorder %s461, %s464
      %p470 = scmp.eq.s32.totalorder %s37, 0
      %p471 = por %p469, %p470
      %p472 = scmp.ne.s32.totalorder %s461, %s464
      %p473 = scmp.eq.s32.totalorder %s42, 1
      %p474 = por %p472, %p473
      %p475 = scmp.ne.s32.totalorder %s464, %s465
      %p476 = scmp.eq.s32.totalorder %s42, 0
      %p477 = por %p475, %p476
      %p478 = scmp.ne.s32.totalorder %s464, %s465
      %p479 = scmp.eq.s32.totalorder %s43, 1
      %p480 = por %p478, %p479
      %p482 = scmp.ne.s32.totalorder %s465, %s481
      %p483 = scmp.eq.s32.totalorder %s43, 0
      %p484 = por %p482, %p483
      %p485 = scmp.le.s32.totalorder 1, %s37
      %p486 = scmp.lt.s32.totalorder %s37, 3
      %p487 = pnand %p485, %p486
      %p488 = pneg %p487
      // Predicated region
      $region9: #{tpu_custom_call.1} parent=5 // pred_check
        _
      $region10: #{tpu_custom_call.1} parent=5 // pred_check_branch
        %490 = sbr.rel (%p487) target = $region12
      $region11: #{tpu_custom_call.1} parent=5 // pred_region
        %s491 = ssub.s32 %s37, 1
        // Predicated region
        $region13: #{tpu_custom_call.1} parent=11 // pred_check
          %p492 = pneg %p136
        $region14: #{tpu_custom_call.1} parent=11 // pred_check_branch
          %494 = sbr.rel (%p492) target = $region16
        $region15: #{tpu_custom_call.1} parent=11 // pred_region
          %s496 = ssub.s32 2048, 2048
          %497 = vsyncadd [#allocation6], %s496
          %s498 = sshll.u32 [#allocation7], 4
          %s499 = int_to_ptr.vmem [resolvable:$true] %s498
          %504 = dma.hbm_to_vmem [thread:$0]  %s3, 2048, %s499, [#allocation6], 128, 128, 8
        $region16: #{tpu_custom_call.1} parent=11 // pred_fallthru
          _
        // Predicated region
        $region17: #{tpu_custom_call.1} parent=11 // pred_check
          %p505 = pneg %p157
        $region18: #{tpu_custom_call.1} parent=11 // pred_check_branch
          %507 = sbr.rel (%p505) target = $region20
        $region19: #{tpu_custom_call.1} parent=11 // pred_region
          _
        $region20: #{tpu_custom_call.1} parent=11 // pred_fallthru
          _
        // Predicated region
        $region21: #{tpu_custom_call.1} parent=11 // pred_check
          %p508 = pneg %p178
        $region22: #{tpu_custom_call.1} parent=11 // pred_check_branch
          %510 = sbr.rel (%p508) target = $region24
        $region23: #{tpu_custom_call.1} parent=11 // pred_region
          %s512 = ssub.s32 2048, 2048
          %513 = vsyncadd [#allocation9], %s512
          %s514 = sshll.u32 [#allocation8], 4
          %s515 = int_to_ptr.vmem [resolvable:$true] %s514
          %520 = dma.hbm_to_vmem [thread:$0]  %s5, 2048, %s515, [#allocation9], 128, 128, 8
        $region24: #{tpu_custom_call.1} parent=11 // pred_fallthru
          _
        // Predicated region
        $region25: #{tpu_custom_call.1} parent=11 // pred_check
          %p521 = pneg %p199
        $region26: #{tpu_custom_call.1} parent=11 // pred_check_branch
          %523 = sbr.rel (%p521) target = $region28
        $region27: #{tpu_custom_call.1} parent=11 // pred_region
          _
        $region28: #{tpu_custom_call.1} parent=11 // pred_fallthru
          _
        // Predicated region
        $region29: #{tpu_custom_call.1} parent=11 // pred_check
          %p524 = pneg %p220
        $region30: #{tpu_custom_call.1} parent=11 // pred_check_branch
          %526 = sbr.rel (%p524) target = $region32
        $region31: #{tpu_custom_call.1} parent=11 // pred_region
          %s528 = ssub.s32 2048, 2048
          %529 = vsyncadd [#allocation9], %s528
          %s530 = sshll.u32 [#allocation10], 4
          %s531 = int_to_ptr.vmem [resolvable:$true] %s530
          %536 = dma.hbm_to_vmem [thread:$0]  %s7, 2048, %s531, [#allocation9], 128, 128, 8
        $region32: #{tpu_custom_call.1} parent=11 // pred_fallthru
          _
        // Predicated region
        $region33: #{tpu_custom_call.1} parent=11 // pred_check
          %p537 = pneg %p241
        $region34: #{tpu_custom_call.1} parent=11 // pred_check_branch
          %539 = sbr.rel (%p537) target = $region36
        $region35: #{tpu_custom_call.1} parent=11 // pred_region
          _
        $region36: #{tpu_custom_call.1} parent=11 // pred_fallthru
          _
        // Predicated region
        $region37: #{tpu_custom_call.1} parent=11 // pred_check
          %p540 = pneg %p262
        $region38: #{tpu_custom_call.1} parent=11 // pred_check_branch
          %542 = sbr.rel (%p540) target = $region40
        $region39: #{tpu_custom_call.1} parent=11 // pred_region
          %s544 = ssub.s32 2048, 2048
          %545 = vsyncadd [#allocation12], %s544
          %s546 = sshll.u32 [#allocation11], 4
          %s547 = int_to_ptr.vmem [resolvable:$true] %s546
          %552 = dma.hbm_to_vmem [thread:$0]  %s9, 2048, %s547, [#allocation12], 128, 128, 8
        $region40: #{tpu_custom_call.1} parent=11 // pred_fallthru
          _
        // Predicated region
        $region41: #{tpu_custom_call.1} parent=11 // pred_check
          %p553 = pneg %p283
        $region42: #{tpu_custom_call.1} parent=11 // pred_check_branch
          %555 = sbr.rel (%p553) target = $region44
        $region43: #{tpu_custom_call.1} parent=11 // pred_region
          _
        $region44: #{tpu_custom_call.1} parent=11 // pred_fallthru
          _
        // Predicated region
        $region45: #{tpu_custom_call.1} parent=11 // pred_check
          %p556 = pneg %p304
        $region46: #{tpu_custom_call.1} parent=11 // pred_check_branch
          %558 = sbr.rel (%p556) target = $region48
        $region47: #{tpu_custom_call.1} parent=11 // pred_region
          _
        $region48: #{tpu_custom_call.1} parent=11 // pred_fallthru
          _
        // Predicated region
        $region49: #{tpu_custom_call.1} parent=11 // pred_check
          %p559 = pneg %p325
        $region50: #{tpu_custom_call.1} parent=11 // pred_check_branch
          %561 = sbr.rel (%p559) target = $region52
        $region51: #{tpu_custom_call.1} parent=11 // pred_region
          _
        $region52: #{tpu_custom_call.1} parent=11 // pred_fallthru
          _
        // Predicated region
        $region53: #{tpu_custom_call.1} parent=11 // pred_check
          %p562 = pneg %p346
        $region54: #{tpu_custom_call.1} parent=11 // pred_check_branch
          %564 = sbr.rel (%p562) target = $region56
        $region55: #{tpu_custom_call.1} parent=11 // pred_region
          %s566 = ssub.s32 8192, 8192
          %567 = vsyncadd [#allocation12], %s566
          %s568 = sshll.u32 [#allocation13], 4
          %s569 = int_to_ptr.vmem [resolvable:$true] %s568
          %574 = dma.hbm_to_vmem [thread:$0]  %s13, 8192, %s569, [#allocation12], 512, 512, 32
        $region56: #{tpu_custom_call.1} parent=11 // pred_fallthru
          _
        // Predicated region
        $region57: #{tpu_custom_call.1} parent=11 // pred_check
          %p575 = pneg %p367
        $region58: #{tpu_custom_call.1} parent=11 // pred_check_branch
          %577 = sbr.rel (%p575) target = $region60
        $region59: #{tpu_custom_call.1} parent=11 // pred_region
          _
        $region60: #{tpu_custom_call.1} parent=11 // pred_fallthru
          _
        // Predicated region
        $region61: #{tpu_custom_call.1} parent=11 // pred_check
          %p578 = pneg %p388
        $region62: #{tpu_custom_call.1} parent=11 // pred_check_branch
          %580 = sbr.rel (%p578) target = $region64
        $region63: #{tpu_custom_call.1} parent=11 // pred_region
          %s582 = ssub.s32 8192, 8192
          %583 = vsyncadd [#allocation15], %s582
          %s584 = sshll.u32 [#allocation14], 4
          %s585 = int_to_ptr.vmem [resolvable:$true] %s584
          %590 = dma.hbm_to_vmem [thread:$0]  %s15, 8192, %s585, [#allocation15], 128, 128, 8
        $region64: #{tpu_custom_call.1} parent=11 // pred_fallthru
          _
        // Predicated region
        $region65: #{tpu_custom_call.1} parent=11 // pred_check
          %p591 = pneg %p409
        $region66: #{tpu_custom_call.1} parent=11 // pred_check_branch
          %593 = sbr.rel (%p591) target = $region68
        $region67: #{tpu_custom_call.1} parent=11 // pred_region
          _
        $region68: #{tpu_custom_call.1} parent=11 // pred_fallthru
          _
        // Predicated region
        $region69: #{tpu_custom_call.1} parent=11 // pred_check
          %p594 = pneg %p430
        $region70: #{tpu_custom_call.1} parent=11 // pred_check_branch
          %596 = sbr.rel (%p594) target = $region72
        $region71: #{tpu_custom_call.1} parent=11 // pred_region
          _
        $region72: #{tpu_custom_call.1} parent=11 // pred_fallthru
          _
        // Predicated region
        $region73: #{tpu_custom_call.1} parent=11 // pred_check
          %p597 = pneg %p451
        $region74: #{tpu_custom_call.1} parent=11 // pred_check_branch
          %599 = sbr.rel (%p597) target = $region76
        $region75: #{tpu_custom_call.1} parent=11 // pred_region
          _
        $region76: #{tpu_custom_call.1} parent=11 // pred_fallthru
          _
      $region12: #{tpu_custom_call.1} parent=5 // pred_fallthru
        _
      %p600 = scmp.lt.s32.totalorder %s37, 2
      // Predicated region
      $region77: #{tpu_custom_call.1} parent=5 // pred_check
        %p601 = pneg %p600
      $region78: #{tpu_custom_call.1} parent=5 // pred_check_branch
        %603 = sbr.rel (%p601) target = $region80
      $region79: #{tpu_custom_call.1} parent=5 // pred_region
        // Predicated region
        $region81: #{tpu_custom_call.1} parent=79 // pred_check
          %p604 = pneg %p57
        $region82: #{tpu_custom_call.1} parent=79 // pred_check_branch
          %606 = sbr.rel (%p604) target = $region84
        $region83: #{tpu_custom_call.1} parent=79 // pred_region
          %s607 = sand.u32 %s47, 1
          %s608 = scalar_lea.sflag [#allocation3], %s607
          %s609 = sand.u32 %s47, 1
          %s610 = smul.addr %s609, 16
          %s611 = scalar_lea.vmem [#allocation2], %s610
          %s613 = ssub.s32 256, 256
          %614 = vsyncadd %s608, %s613
          %s615 = smul.addr %s37, 2
          %s616 = smul.addr %s615, 128
          %s617 = scalar_lea.hbm %s0, %s616
          %s618 = sshll.u32 %s611, 4
          %s619 = int_to_ptr.vmem [resolvable:$true] %s618
          %624 = dma.hbm_to_vmem [thread:$0]  %s617, 256, %s619, %s608, 128, 128, 8
        $region84: #{tpu_custom_call.1} parent=79 // pred_fallthru
          _
        // Predicated region
        $region85: #{tpu_custom_call.1} parent=79 // pred_check
          %p625 = pneg %p83
        $region86: #{tpu_custom_call.1} parent=79 // pred_check_branch
          %627 = sbr.rel (%p625) target = $region88
        $region87: #{tpu_custom_call.1} parent=79 // pred_region
          %s628 = sand.u32 %s37, 1
          %s629 = scalar_lea.sflag [#allocation6], %s628
          %s630 = sand.u32 %s73, 1
          %s631 = smul.addr %s630, 8
          %s632 = scalar_lea.vmem [#allocation5], %s631
          %s634 = ssub.s32 128, 128
          %635 = vsyncadd %s629, %s634
          %s636 = smul.addr %s37, 128
          %s637 = scalar_lea.hbm %s1, %s636
          %s639 = sshll.u32 %s632, 4
          %s640 = int_to_ptr.vmem [resolvable:$true] %s639
          %642 = dma.hbm_to_vmem [thread:$0]  %s637, 128, %s640, %s629
        $region88: #{tpu_custom_call.1} parent=79 // pred_fallthru
          _
        // Predicated region
        $region89: #{tpu_custom_call.1} parent=79 // pred_check
          %p643 = pneg %p109
        $region90: #{tpu_custom_call.1} parent=79 // pred_check_branch
          %645 = sbr.rel (%p643) target = $region92
        $region91: #{tpu_custom_call.1} parent=79 // pred_region
          %p646 = scmp.lt.s32.totalorder %s37, 1
          %s647 = scalar_select %p646, %s37, 1
          %s648 = scalar_lea.vmem %s2, %s647
        $region92: #{tpu_custom_call.1} parent=79 // pred_fallthru
          _
      $region80: #{tpu_custom_call.1} parent=5 // pred_fallthru
        _
      %p649 = scmp.le.s32.totalorder 1, %s37
      %p650 = scmp.lt.s32.totalorder %s37, 3
      %p651 = pnand %p649, %p650
      %p652 = pneg %p651
      // Predicated region
      $region93: #{tpu_custom_call.1} parent=5 // pred_check
        _
      $region94: #{tpu_custom_call.1} parent=5 // pred_check_branch
        %654 = sbr.rel (%p651) target = $region96
      $region95: #{tpu_custom_call.1} parent=5 // pred_region
        %s655 = ssub.s32 %s37, 1
        %s656 = sand.u32 %s50, 1
        %s657 = scalar_lea.sflag [#allocation3], %s656
        %s658 = sand.u32 %s50, 1
        %s659 = smul.addr %s658, 16
        %s660 = scalar_lea.vmem [#allocation2], %s659
        // Predicated region
        $region97: #{tpu_custom_call.1} parent=95 // pred_check
          %p661 = pneg %p63
        $region98: #{tpu_custom_call.1} parent=95 // pred_check_branch
          %663 = sbr.rel (%p661) target = $region100
        $region99: #{tpu_custom_call.1} parent=95 // pred_region
          %664 = dma.done %s657, 256
        $region100: #{tpu_custom_call.1} parent=95 // pred_fallthru
          _
        %s665 = sand.u32 %s42, 1
        %s666 = scalar_lea.sflag [#allocation6], %s665
        %s667 = sand.u32 %s76, 1
        %s668 = smul.addr %s667, 8
        %s669 = scalar_lea.vmem [#allocation5], %s668
        // Predicated region
        $region101: #{tpu_custom_call.1} parent=95 // pred_check
          %p670 = pneg %p89
        $region102: #{tpu_custom_call.1} parent=95 // pred_check_branch
          %672 = sbr.rel (%p670) target = $region104
        $region103: #{tpu_custom_call.1} parent=95 // pred_region
          %673 = dma.done %s666, 128
        $region104: #{tpu_custom_call.1} parent=95 // pred_fallthru
          _
        // Predicated region
        $region105: #{tpu_custom_call.1} parent=95 // pred_check
          %p674 = pneg %p136
        $region106: #{tpu_custom_call.1} parent=95 // pred_check_branch
          %676 = sbr.rel (%p674) target = $region108
        $region107: #{tpu_custom_call.1} parent=95 // pred_region
          %677 = dma.done [#allocation6], 2048
        $region108: #{tpu_custom_call.1} parent=95 // pred_fallthru
          _
        // Predicated region
        $region109: #{tpu_custom_call.1} parent=95 // pred_check
          %p678 = pneg %p178
        $region110: #{tpu_custom_call.1} parent=95 // pred_check_branch
          %680 = sbr.rel (%p678) target = $region112
        $region111: #{tpu_custom_call.1} parent=95 // pred_region
          %681 = dma.done [#allocation9], 2048
        $region112: #{tpu_custom_call.1} parent=95 // pred_fallthru
          _
        // Predicated region
        $region113: #{tpu_custom_call.1} parent=95 // pred_check
          %p682 = pneg %p220
        $region114: #{tpu_custom_call.1} parent=95 // pred_check_branch
          %684 = sbr.rel (%p682) target = $region116
        $region115: #{tpu_custom_call.1} parent=95 // pred_region
          %685 = dma.done [#allocation9], 2048
        $region116: #{tpu_custom_call.1} parent=95 // pred_fallthru
          _
        // Predicated region
        $region117: #{tpu_custom_call.1} parent=95 // pred_check
          %p686 = pneg %p262
        $region118: #{tpu_custom_call.1} parent=95 // pred_check_branch
          %688 = sbr.rel (%p686) target = $region120
        $region119: #{tpu_custom_call.1} parent=95 // pred_region
          %689 = dma.done [#allocation12], 2048
        $region120: #{tpu_custom_call.1} parent=95 // pred_fallthru
          _
        // Predicated region
        $region121: #{tpu_custom_call.1} parent=95 // pred_check
          %p690 = pneg %p346
        $region122: #{tpu_custom_call.1} parent=95 // pred_check_branch
          %692 = sbr.rel (%p690) target = $region124
        $region123: #{tpu_custom_call.1} parent=95 // pred_region
          %693 = dma.done [#allocation12], 8192
        $region124: #{tpu_custom_call.1} parent=95 // pred_fallthru
          _
        // Predicated region
        $region125: #{tpu_custom_call.1} parent=95 // pred_check
          %p694 = pneg %p388
        $region126: #{tpu_custom_call.1} parent=95 // pred_check_branch
          %696 = sbr.rel (%p694) target = $region128
        $region127: #{tpu_custom_call.1} parent=95 // pred_region
          %697 = dma.done [#allocation15], 8192
        $region128: #{tpu_custom_call.1} parent=95 // pred_fallthru
          _
        %s698 = sand.u32 %s50, 1
        %s699 = scalar_lea.sflag [#allocation3], %s698
        %s700 = sand.u32 %s50, 1
        %s701 = smul.addr %s700, 16
        %s702 = scalar_lea.vmem [#allocation2], %s701
        %p703 = pneg %p63
        %p704 = pneg %p60
        %s705 = sand.u32 %s42, 1
        %s706 = scalar_lea.sflag [#allocation6], %s705
        %s707 = sand.u32 %s76, 1
        %s708 = smul.addr %s707, 8
        %s709 = scalar_lea.vmem [#allocation5], %s708
        %p710 = pneg %p89
        %p711 = pneg %p86
        %p712 = scmp.lt.s32.totalorder %s42, 1
        %s713 = scalar_select %p712, %s42, 1
        %s714 = scalar_lea.vmem %s2, %s713
        %p715 = pneg %p115
        %p716 = pneg %p112
        %p717 = pneg %p136
        %p718 = pneg %p133
        %p719 = pneg %p157
        %p720 = pneg %p154
        %p721 = pneg %p178
        %p722 = pneg %p175
        %p723 = pneg %p199
        %p724 = pneg %p196
        %p725 = pneg %p220
        %p726 = pneg %p217
        %p727 = pneg %p241
        %p728 = pneg %p238
        %p729 = pneg %p262
        %p730 = pneg %p259
        %p731 = pneg %p283
        %p732 = pneg %p280
        %p733 = pneg %p304
        %p734 = pneg %p301
        %p735 = pneg %p325
        %p736 = pneg %p322
        %p737 = pneg %p346
        %p738 = pneg %p343
        %p739 = pneg %p367
        %p740 = pneg %p364
        %p741 = pneg %p388
        %p742 = pneg %p385
        %p743 = pneg %p409
        %p744 = pneg %p406
        %p745 = pneg %p430
        %p746 = pneg %p427
        %p747 = pneg %p451
        %p748 = pneg %p448
        %p749 = pneg %p477
        %p750 = pneg %p474
        %s751 = sand.u32 %s464, 1
        %s752 = scalar_lea.sflag [#allocation4], %s751
        %s753 = sand.u32 %s464, 1
        %s754 = smul.addr %s753, 16
        %s755 = scalar_lea.vmem [#allocation16], %s754
        %p756 = scmp.lt.s32.totalorder %s42, 1
        %s757 = scalar_select %p756, %s42, 1
        %s758 = scalar_lea.vmem %s2, %s757
        %v759 = vld [vmem:[%s660] sm:$0xff]
        %v760 = vld [vmem:[%s660 + $0x8] sm:$0xff]
        %v761 = vld [vmem:[%s669] sm:$0xff]
        %v762 = vld [vmem:[%s758] sm:$0x1]
        %v763 = vld [vmem:[#allocation7] sm:$0xff]
        %v764 = vld [vmem:[#allocation7 + $0x8] sm:$0xff]
        %v765 = vld [vmem:[#allocation7 + $0x10] sm:$0xff]
        %v766 = vld [vmem:[#allocation7 + $0x18] sm:$0xff]
        %v767 = vld [vmem:[#allocation7 + $0x20] sm:$0xff]
        %v768 = vld [vmem:[#allocation7 + $0x28] sm:$0xff]
        %v769 = vld [vmem:[#allocation7 + $0x30] sm:$0xff]
        %v770 = vld [vmem:[#allocation7 + $0x38] sm:$0xff]
        %v771 = vld [vmem:[#allocation7 + $0x40] sm:$0xff]
        %v772 = vld [vmem:[#allocation7 + $0x48] sm:$0xff]
        %v773 = vld [vmem:[#allocation7 + $0x50] sm:$0xff]
        %v774 = vld [vmem:[#allocation7 + $0x58] sm:$0xff]
        %v775 = vld [vmem:[#allocation7 + $0x60] sm:$0xff]
        %v776 = vld [vmem:[#allocation7 + $0x68] sm:$0xff]
        %v777 = vld [vmem:[#allocation7 + $0x70] sm:$0xff]
        %v778 = vld [vmem:[#allocation7 + $0x78] sm:$0xff]
        %v779 = vld [vmem:[%s4] sm:$0x1]
        %v781 = vlaneseq
        %v782 = vshrl.u32 %v781, 7
        %v783 = vsub.s32 0, %v782
        %v784 = vrot.slane %v779, %v783
        %786 = vmatprep.subr.mxu0 0.0
        %787 = vmatpush1.msra.mxu0 %v778
        %788 = vmatprep.subr.mxu0 0.0
        %789 = vmatpush1.msra.mxu0 %v777
        %790 = vmatprep.subr.mxu0 0.0
        %791 = vmatpush1.msra.mxu0 %v776
        %792 = vmatprep.subr.mxu0 0.0
        %793 = vmatpush1.msra.mxu0 %v775
        %794 = vmatprep.subr.mxu0 0.0
        %795 = vmatpush1.msra.mxu0 %v774
        %796 = vmatprep.subr.mxu0 0.0
        %797 = vmatpush1.msra.mxu0 %v773
        %798 = vmatprep.subr.mxu0 0.0
        %799 = vmatpush1.msra.mxu0 %v772
        %800 = vmatprep.subr.mxu0 0.0
        %801 = vmatpush1.msra.mxu0 %v771
        %802 = vmatprep.subr.mxu0 0.0
        %803 = vmatpush1.msra.mxu0 %v770
        %804 = vmatprep.subr.mxu0 0.0
        %805 = vmatpush1.msra.mxu0 %v769
        %806 = vmatprep.subr.mxu0 0.0
        %807 = vmatpush1.msra.mxu0 %v768
        %808 = vmatprep.subr.mxu0 0.0
        %809 = vmatpush1.msra.mxu0 %v767
        %810 = vmatprep.subr.mxu0 0.0
        %811 = vmatpush1.msra.mxu0 %v766
        %812 = vmatprep.subr.mxu0 0.0
        %813 = vmatpush1.msra.mxu0 %v765
        %814 = vmatprep.subr.mxu0 0.0
        %815 = vmatpush1.msra.mxu0 %v764
        %816 = vmatprep.subr.mxu0 0.0
        %817 = vmatpush1.msra.mxu0 %v763
        %818 = vmatprep.subr.mxu0 0.0
        %819 = vmatpush2.msra.mxu0 0.0
        %820 = vmatprep.subr.mxu0 0.0
        %821 = vmatpush2.msra.mxu0 0.0
        %822 = vmatprep.subr.mxu0 0.0
        %823 = vmatpush2.msra.mxu0 0.0
        %824 = vmatprep.subr.mxu0 0.0
        %825 = vmatpush2.msra.mxu0 0.0
        %826 = vmatprep.subr.mxu0 0.0
        %827 = vmatpush2.msra.mxu0 0.0
        %828 = vmatprep.subr.mxu0 0.0
        %829 = vmatpush2.msra.mxu0 0.0
        %830 = vmatprep.subr.mxu0 0.0
        %831 = vmatpush2.msra.mxu0 0.0
        %832 = vmatprep.subr.mxu0 0.0
        %833 = vmatpush2.msra.mxu0 0.0
        %834 = vmatprep.subr.mxu0 0.0
        %835 = vmatpush2.msra.mxu0 0.0
        %836 = vmatprep.subr.mxu0 0.0
        %837 = vmatpush2.msra.mxu0 0.0
        %838 = vmatprep.subr.mxu0 0.0
        %839 = vmatpush2.msra.mxu0 0.0
        %840 = vmatprep.subr.mxu0 0.0
        %841 = vmatpush2.msra.mxu0 0.0
        %842 = vmatprep.subr.mxu0 0.0
        %843 = vmatpush2.msra.mxu0 0.0
        %844 = vmatprep.subr.mxu0 0.0
        %845 = vmatpush2.msra.mxu0 0.0
        %846 = vmatprep.subr.mxu0 0.0
        %847 = vmatpush2.msra.mxu0 0.0
        %848 = vmatprep.subr.mxu0 0.0
        %849 = vmatpush2.msra.mxu0 0.0
        %850 = vmatprep.mubr.f32.mxu0 0.0
        %851 = vmatmul.mubr.f32.gmra.mxu0 %v759
        %v852 = vpop.f32.mrf.mxu0
        %v853 = vadd.f32 %v784, %v852
        %v854 = vpop.f32.mrf.mxu0
        %855 = vmatprep.mubr.f32.mxu0 0.0
        %856 = vmatmul.mubr.f32.gmra.mxu0 %v760
        %v857 = vpop.f32.mrf.mxu0
        %v858 = vadd.f32 %v784, %v857
        %v859 = vpop.f32.mrf.mxu0
        %860 = vdwg.mxu0
        %v861 = vld [vmem:[#allocation8] sm:$0xff]
        %v862 = vld [vmem:[#allocation8 + $0x8] sm:$0xff]
        %v863 = vld [vmem:[#allocation8 + $0x10] sm:$0xff]
        %v864 = vld [vmem:[#allocation8 + $0x18] sm:$0xff]
        %v865 = vld [vmem:[#allocation8 + $0x20] sm:$0xff]
        %v866 = vld [vmem:[#allocation8 + $0x28] sm:$0xff]
        %v867 = vld [vmem:[#allocation8 + $0x30] sm:$0xff]
        %v868 = vld [vmem:[#allocation8 + $0x38] sm:$0xff]
        %v869 = vld [vmem:[#allocation8 + $0x40] sm:$0xff]
        %v870 = vld [vmem:[#allocation8 + $0x48] sm:$0xff]
        %v871 = vld [vmem:[#allocation8 + $0x50] sm:$0xff]
        %v872 = vld [vmem:[#allocation8 + $0x58] sm:$0xff]
        %v873 = vld [vmem:[#allocation8 + $0x60] sm:$0xff]
        %v874 = vld [vmem:[#allocation8 + $0x68] sm:$0xff]
        %v875 = vld [vmem:[#allocation8 + $0x70] sm:$0xff]
        %v876 = vld [vmem:[#allocation8 + $0x78] sm:$0xff]
        %v877 = vld [vmem:[%s6] sm:$0x1]
        %v879 = vlaneseq
        %v880 = vshrl.u32 %v879, 7
        %v881 = vsub.s32 0, %v880
        %v882 = vrot.slane %v877, %v881
        %884 = vmatprep.subr.mxu0 0.0
        %885 = vmatpush1.msra.mxu0 %v876
        %886 = vmatprep.subr.mxu0 0.0
        %887 = vmatpush1.msra.mxu0 %v875
        %888 = vmatprep.subr.mxu0 0.0
        %889 = vmatpush1.msra.mxu0 %v874
        %890 = vmatprep.subr.mxu0 0.0
        %891 = vmatpush1.msra.mxu0 %v873
        %892 = vmatprep.subr.mxu0 0.0
        %893 = vmatpush1.msra.mxu0 %v872
        %894 = vmatprep.subr.mxu0 0.0
        %895 = vmatpush1.msra.mxu0 %v871
        %896 = vmatprep.subr.mxu0 0.0
        %897 = vmatpush1.msra.mxu0 %v870
        %898 = vmatprep.subr.mxu0 0.0
        %899 = vmatpush1.msra.mxu0 %v869
        %900 = vmatprep.subr.mxu0 0.0
        %901 = vmatpush1.msra.mxu0 %v868
        %902 = vmatprep.subr.mxu0 0.0
        %903 = vmatpush1.msra.mxu0 %v867
        %904 = vmatprep.subr.mxu0 0.0
        %905 = vmatpush1.msra.mxu0 %v866
        %906 = vmatprep.subr.mxu0 0.0
        %907 = vmatpush1.msra.mxu0 %v865
        %908 = vmatprep.subr.mxu0 0.0
        %909 = vmatpush1.msra.mxu0 %v864
        %910 = vmatprep.subr.mxu0 0.0
        %911 = vmatpush1.msra.mxu0 %v863
        %912 = vmatprep.subr.mxu0 0.0
        %913 = vmatpush1.msra.mxu0 %v862
        %914 = vmatprep.subr.mxu0 0.0
        %915 = vmatpush1.msra.mxu0 %v861
        %916 = vmatprep.subr.mxu0 0.0
        %917 = vmatpush2.msra.mxu0 0.0
        %918 = vmatprep.subr.mxu0 0.0
        %919 = vmatpush2.msra.mxu0 0.0
        %920 = vmatprep.subr.mxu0 0.0
        %921 = vmatpush2.msra.mxu0 0.0
        %922 = vmatprep.subr.mxu0 0.0
        %923 = vmatpush2.msra.mxu0 0.0
        %924 = vmatprep.subr.mxu0 0.0
        %925 = vmatpush2.msra.mxu0 0.0
        %926 = vmatprep.subr.mxu0 0.0
        %927 = vmatpush2.msra.mxu0 0.0
        %928 = vmatprep.subr.mxu0 0.0
        %929 = vmatpush2.msra.mxu0 0.0
        %930 = vmatprep.subr.mxu0 0.0
        %931 = vmatpush2.msra.mxu0 0.0
        %932 = vmatprep.subr.mxu0 0.0
        %933 = vmatpush2.msra.mxu0 0.0
        %934 = vmatprep.subr.mxu0 0.0
        %935 = vmatpush2.msra.mxu0 0.0
        %936 = vmatprep.subr.mxu0 0.0
        %937 = vmatpush2.msra.mxu0 0.0
        %938 = vmatprep.subr.mxu0 0.0
        %939 = vmatpush2.msra.mxu0 0.0
        %940 = vmatprep.subr.mxu0 0.0
        %941 = vmatpush2.msra.mxu0 0.0
        %942 = vmatprep.subr.mxu0 0.0
        %943 = vmatpush2.msra.mxu0 0.0
        %944 = vmatprep.subr.mxu0 0.0
        %945 = vmatpush2.msra.mxu0 0.0
        %946 = vmatprep.subr.mxu0 0.0
        %947 = vmatpush2.msra.mxu0 0.0
        %948 = vmatprep.mubr.f32.mxu0 0.0
        %949 = vmatmul.mubr.f32.gmra.mxu0 %v761
        %v950 = vpop.f32.mrf.mxu0
        %v951 = vadd.f32 %v882, %v950
        %v952 = vpop.f32.mrf.mxu0
        %953 = vdwg.mxu0
        %v954 = vld [vmem:[#allocation10] sm:$0xff]
        %v955 = vld [vmem:[#allocation10 + $0x8] sm:$0xff]
        %v956 = vld [vmem:[#allocation10 + $0x10] sm:$0xff]
        %v957 = vld [vmem:[#allocation10 + $0x18] sm:$0xff]
        %v958 = vld [vmem:[#allocation10 + $0x20] sm:$0xff]
        %v959 = vld [vmem:[#allocation10 + $0x28] sm:$0xff]
        %v960 = vld [vmem:[#allocation10 + $0x30] sm:$0xff]
        %v961 = vld [vmem:[#allocation10 + $0x38] sm:$0xff]
        %v962 = vld [vmem:[#allocation10 + $0x40] sm:$0xff]
        %v963 = vld [vmem:[#allocation10 + $0x48] sm:$0xff]
        %v964 = vld [vmem:[#allocation10 + $0x50] sm:$0xff]
        %v965 = vld [vmem:[#allocation10 + $0x58] sm:$0xff]
        %v966 = vld [vmem:[#allocation10 + $0x60] sm:$0xff]
        %v967 = vld [vmem:[#allocation10 + $0x68] sm:$0xff]
        %v968 = vld [vmem:[#allocation10 + $0x70] sm:$0xff]
        %v969 = vld [vmem:[#allocation10 + $0x78] sm:$0xff]
        %v970 = vld [vmem:[%s8] sm:$0x1]
        %v972 = vlaneseq
        %v973 = vshrl.u32 %v972, 7
        %v974 = vsub.s32 0, %v973
        %v975 = vrot.slane %v970, %v974
        %977 = vmatprep.subr.mxu0 0.0
        %978 = vmatpush1.msra.mxu0 %v969
        %979 = vmatprep.subr.mxu0 0.0
        %980 = vmatpush1.msra.mxu0 %v968
        %981 = vmatprep.subr.mxu0 0.0
        %982 = vmatpush1.msra.mxu0 %v967
        %983 = vmatprep.subr.mxu0 0.0
        %984 = vmatpush1.msra.mxu0 %v966
        %985 = vmatprep.subr.mxu0 0.0
        %986 = vmatpush1.msra.mxu0 %v965
        %987 = vmatprep.subr.mxu0 0.0
        %988 = vmatpush1.msra.mxu0 %v964
        %989 = vmatprep.subr.mxu0 0.0
        %990 = vmatpush1.msra.mxu0 %v963
        %991 = vmatprep.subr.mxu0 0.0
        %992 = vmatpush1.msra.mxu0 %v962
        %993 = vmatprep.subr.mxu0 0.0
        %994 = vmatpush1.msra.mxu0 %v961
        %995 = vmatprep.subr.mxu0 0.0
        %996 = vmatpush1.msra.mxu0 %v960
        %997 = vmatprep.subr.mxu0 0.0
        %998 = vmatpush1.msra.mxu0 %v959
        %999 = vmatprep.subr.mxu0 0.0
        %1000 = vmatpush1.msra.mxu0 %v958
        %1001 = vmatprep.subr.mxu0 0.0
        %1002 = vmatpush1.msra.mxu0 %v957
        %1003 = vmatprep.subr.mxu0 0.0
        %1004 = vmatpush1.msra.mxu0 %v956
        %1005 = vmatprep.subr.mxu0 0.0
        %1006 = vmatpush1.msra.mxu0 %v955
        %1007 = vmatprep.subr.mxu0 0.0
        %1008 = vmatpush1.msra.mxu0 %v954
        %1009 = vmatprep.subr.mxu0 0.0
        %1010 = vmatpush2.msra.mxu0 0.0
        %1011 = vmatprep.subr.mxu0 0.0
        %1012 = vmatpush2.msra.mxu0 0.0
        %1013 = vmatprep.subr.mxu0 0.0
        %1014 = vmatpush2.msra.mxu0 0.0
        %1015 = vmatprep.subr.mxu0 0.0
        %1016 = vmatpush2.msra.mxu0 0.0
        %1017 = vmatprep.subr.mxu0 0.0
        %1018 = vmatpush2.msra.mxu0 0.0
        %1019 = vmatprep.subr.mxu0 0.0
        %1020 = vmatpush2.msra.mxu0 0.0
        %1021 = vmatprep.subr.mxu0 0.0
        %1022 = vmatpush2.msra.mxu0 0.0
        %1023 = vmatprep.subr.mxu0 0.0
        %1024 = vmatpush2.msra.mxu0 0.0
        %1025 = vmatprep.subr.mxu0 0.0
        %1026 = vmatpush2.msra.mxu0 0.0
        %1027 = vmatprep.subr.mxu0 0.0
        %1028 = vmatpush2.msra.mxu0 0.0
        %1029 = vmatprep.subr.mxu0 0.0
        %1030 = vmatpush2.msra.mxu0 0.0
        %1031 = vmatprep.subr.mxu0 0.0
        %1032 = vmatpush2.msra.mxu0 0.0
        %1033 = vmatprep.subr.mxu0 0.0
        %1034 = vmatpush2.msra.mxu0 0.0
        %1035 = vmatprep.subr.mxu0 0.0
        %1036 = vmatpush2.msra.mxu0 0.0
        %1037 = vmatprep.subr.mxu0 0.0
        %1038 = vmatpush2.msra.mxu0 0.0
        %1039 = vmatprep.subr.mxu0 0.0
        %1040 = vmatpush2.msra.mxu0 0.0
        %1041 = vmatprep.mubr.f32.mxu0 0.0
        %1042 = vmatmul.mubr.f32.gmra.mxu0 %v761
        %v1043 = vpop.f32.mrf.mxu0
        %v1044 = vadd.f32 %v975, %v1043
        %v1045 = vpop.f32.mrf.mxu0
        %1046 = vdwg.mxu0
        %vm1047 = vcmask 261120
        %v1049 = vsel %vm1047, %v853, 0
        %v1052 = vsel %vm1047, %v858, 0
        %v1055 = vsel %vm1047, %v951, 0
        %1057 = vmatprep.subr.mxu0 0.0
        %1058 = vmatpush1.xpose.msra.mxu0 0.0
        %1059 = vmatprep.subr.mxu0 0.0
        %1060 = vmatpush1.xpose.msra.mxu0 0.0
        %1061 = vmatprep.subr.mxu0 0.0
        %1062 = vmatpush1.xpose.msra.mxu0 0.0
        %1063 = vmatprep.subr.mxu0 0.0
        %1064 = vmatpush1.xpose.msra.mxu0 0.0
        %1065 = vmatprep.subr.mxu0 0.0
        %1066 = vmatpush1.xpose.msra.mxu0 0.0
        %1067 = vmatprep.subr.mxu0 0.0
        %1068 = vmatpush1.xpose.msra.mxu0 0.0
        %1069 = vmatprep.subr.mxu0 0.0
        %1070 = vmatpush1.xpose.msra.mxu0 0.0
        %1071 = vmatprep.subr.mxu0 0.0
        %1072 = vmatpush1.xpose.msra.mxu0 0.0
        %1073 = vmatprep.subr.mxu0 0.0
        %1074 = vmatpush1.xpose.msra.mxu0 0.0
        %1075 = vmatprep.subr.mxu0 0.0
        %1076 = vmatpush1.xpose.msra.mxu0 0.0
        %1077 = vmatprep.subr.mxu0 0.0
        %1078 = vmatpush1.xpose.msra.mxu0 0.0
        %1079 = vmatprep.subr.mxu0 0.0
        %1080 = vmatpush1.xpose.msra.mxu0 0.0
        %1081 = vmatprep.subr.mxu0 0.0
        %1082 = vmatpush1.xpose.msra.mxu0 0.0
        %1083 = vmatprep.subr.mxu0 0.0
        %1084 = vmatpush1.xpose.msra.mxu0 0.0
        %1085 = vmatprep.subr.mxu0 0.0
        %1086 = vmatpush1.xpose.msra.mxu0 0.0
        %1087 = vmatprep.subr.mxu0 0.0
        %1088 = vmatpush1.xpose.msra.mxu0 %v1055
        %1089 = vmatprep.subr.mxu0 0.0
        %1090 = vmatpush2.xpose.msra.mxu0 0.0
        %1091 = vmatprep.subr.mxu0 0.0
        %1092 = vmatpush2.xpose.msra.mxu0 0.0
        %1093 = vmatprep.subr.mxu0 0.0
        %1094 = vmatpush2.xpose.msra.mxu0 0.0
        %1095 = vmatprep.subr.mxu0 0.0
        %1096 = vmatpush2.xpose.msra.mxu0 0.0
        %1097 = vmatprep.subr.mxu0 0.0
        %1098 = vmatpush2.xpose.msra.mxu0 0.0
        %1099 = vmatprep.subr.mxu0 0.0
        %1100 = vmatpush2.xpose.msra.mxu0 0.0
        %1101 = vmatprep.subr.mxu0 0.0
        %1102 = vmatpush2.xpose.msra.mxu0 0.0
        %1103 = vmatprep.subr.mxu0 0.0
        %1104 = vmatpush2.xpose.msra.mxu0 0.0
        %1105 = vmatprep.subr.mxu0 0.0
        %1106 = vmatpush2.xpose.msra.mxu0 0.0
        %1107 = vmatprep.subr.mxu0 0.0
        %1108 = vmatpush2.xpose.msra.mxu0 0.0
        %1109 = vmatprep.subr.mxu0 0.0
        %1110 = vmatpush2.xpose.msra.mxu0 0.0
        %1111 = vmatprep.subr.mxu0 0.0
        %1112 = vmatpush2.xpose.msra.mxu0 0.0
        %1113 = vmatprep.subr.mxu0 0.0
        %1114 = vmatpush2.xpose.msra.mxu0 0.0
        %1115 = vmatprep.subr.mxu0 0.0
        %1116 = vmatpush2.xpose.msra.mxu0 0.0
        %1117 = vmatprep.subr.mxu0 0.0
        %1118 = vmatpush2.xpose.msra.mxu0 0.0
        %1119 = vmatprep.subr.mxu0 0.0
        %1120 = vmatpush2.xpose.msra.mxu0 0.0
        %1121 = vmatprep.mubr.f32.mxu0 0.0
        %1122 = vmatmul.mubr.f32.gmra.mxu0 %v1049
        %v1123 = vpop.f32.mrf.mxu0
        %v1124 = vadd.f32 0.0, %v1123
        %v1125 = vpop.f32.mrf.mxu0
        %1126 = vmatprep.mubr.f32.mxu0 0.0
        %1127 = vmatmul.mubr.f32.gmra.mxu0 %v1052
        %v1128 = vpop.f32.mrf.mxu0
        %v1129 = vadd.f32 0.0, %v1128
        %v1130 = vpop.f32.mrf.mxu0
        %1131 = vdwg.mxu0
        %v1132 = vmul.f32 %v1124, 0.17677669
        %v1133 = vmul.f32 %v1129, 0.17677669
        %vm1134 = vcmp.gt.f32.partialorder %v762, 0.0
        %v1135 = vsel %vm1134, 1, 0
        %v1136 = vlaneseq
        %v1137 = vshrl.u32 %v1136, 7
        %v1138 = vsub.s32 0, %v1137
        %v1139 = vrot.slane %v1135, %v1138
        %vm1140 = vcmp.eq.s32.totalorder %v1139, 1
        %v1141 = vsel %vm1140, %v1132, -1e+09
        %v1142 = vsel %vm1140, %v1133, -1e+09
        %vm1143 = vcmask 64512
        %v1144 = vsel %vm1143, %v1141, -inf
        %1145 = vmax.xlane.f32.xlu0 %v1144
        %v1146 = vpop.xlane.xlu0 %1145
        %v1147 = vsel %vm1143, %v1142, -inf
        %1148 = vmax.xlane.f32.xlu0 %v1147
        %v1149 = vpop.xlane.xlu0 %1148
        %v1150 = vsub.f32 %v1141, %v1146
        %v1151 = vsub.f32 %v1142, %v1149
        %v1152 = vmul.f32 %v1150, 1.442695
        %v1153 = vpow.pop %v1152
        %v1154 = vmul.f32 %v1151, 1.442695
        %v1155 = vpow.pop %v1154
        %v1156 = vsel %vm1143, %v1153, 0.0
        %1157 = vadd.xlane.f32.xlu0 %v1156
        %v1158 = vpop.xlane.xlu0 %1157
        %v1159 = vsel %vm1143, %v1155, 0.0
        %1160 = vadd.xlane.f32.xlu0 %v1159
        %v1161 = vpop.xlane.xlu0 %1160
        %v1162 = vrcp.pop %v1158
        %v1163 = vmul.f32 %v1153, %v1162
        %v1164 = vrcp.pop %v1161
        %v1165 = vmul.f32 %v1155, %v1164
        %v1167 = vsel %vm1143, %v1163, 0
        %v1170 = vsel %vm1143, %v1165, 0
        %1172 = vmatprep.subr.mxu0 0.0
        %1173 = vmatpush1.msra.mxu0 0.0
        %1174 = vmatprep.subr.mxu0 0.0
        %1175 = vmatpush1.msra.mxu0 0.0
        %1176 = vmatprep.subr.mxu0 0.0
        %1177 = vmatpush1.msra.mxu0 0.0
        %1178 = vmatprep.subr.mxu0 0.0
        %1179 = vmatpush1.msra.mxu0 0.0
        %1180 = vmatprep.subr.mxu0 0.0
        %1181 = vmatpush1.msra.mxu0 0.0
        %1182 = vmatprep.subr.mxu0 0.0
        %1183 = vmatpush1.msra.mxu0 0.0
        %1184 = vmatprep.subr.mxu0 0.0
        %1185 = vmatpush1.msra.mxu0 0.0
        %1186 = vmatprep.subr.mxu0 0.0
        %1187 = vmatpush1.msra.mxu0 0.0
        %1188 = vmatprep.subr.mxu0 0.0
        %1189 = vmatpush1.msra.mxu0 0.0
        %1190 = vmatprep.subr.mxu0 0.0
        %1191 = vmatpush1.msra.mxu0 0.0
        %1192 = vmatprep.subr.mxu0 0.0
        %1193 = vmatpush1.msra.mxu0 0.0
        %1194 = vmatprep.subr.mxu0 0.0
        %1195 = vmatpush1.msra.mxu0 0.0
        %1196 = vmatprep.subr.mxu0 0.0
        %1197 = vmatpush1.msra.mxu0 0.0
        %1198 = vmatprep.subr.mxu0 0.0
        %1199 = vmatpush1.msra.mxu0 0.0
        %1200 = vmatprep.subr.mxu0 0.0
        %1201 = vmatpush1.msra.mxu0 0.0
        %1202 = vmatprep.subr.mxu0 0.0
        %1203 = vmatpush1.msra.mxu0 %v1044
        %1204 = vmatprep.subr.mxu0 0.0
        %1205 = vmatpush2.msra.mxu0 0.0
        %1206 = vmatprep.subr.mxu0 0.0
        %1207 = vmatpush2.msra.mxu0 0.0
        %1208 = vmatprep.subr.mxu0 0.0
        %1209 = vmatpush2.msra.mxu0 0.0
        %1210 = vmatprep.subr.mxu0 0.0
        %1211 = vmatpush2.msra.mxu0 0.0
        %1212 = vmatprep.subr.mxu0 0.0
        %1213 = vmatpush2.msra.mxu0 0.0
        %1214 = vmatprep.subr.mxu0 0.0
        %1215 = vmatpush2.msra.mxu0 0.0
        %1216 = vmatprep.subr.mxu0 0.0
        %1217 = vmatpush2.msra.mxu0 0.0
        %1218 = vmatprep.subr.mxu0 0.0
        %1219 = vmatpush2.msra.mxu0 0.0
        %1220 = vmatprep.subr.mxu0 0.0
        %1221 = vmatpush2.msra.mxu0 0.0
        %1222 = vmatprep.subr.mxu0 0.0
        %1223 = vmatpush2.msra.mxu0 0.0
        %1224 = vmatprep.subr.mxu0 0.0
        %1225 = vmatpush2.msra.mxu0 0.0
        %1226 = vmatprep.subr.mxu0 0.0
        %1227 = vmatpush2.msra.mxu0 0.0
        %1228 = vmatprep.subr.mxu0 0.0
        %1229 = vmatpush2.msra.mxu0 0.0
        %1230 = vmatprep.subr.mxu0 0.0
        %1231 = vmatpush2.msra.mxu0 0.0
        %1232 = vmatprep.subr.mxu0 0.0
        %1233 = vmatpush2.msra.mxu0 0.0
        %1234 = vmatprep.subr.mxu0 0.0
        %1235 = vmatpush2.msra.mxu0 0.0
        %1236 = vmatprep.mubr.f32.mxu0 0.0
        %1237 = vmatmul.mubr.f32.gmra.mxu0 %v1167
        %v1238 = vpop.f32.mrf.mxu0
        %v1239 = vadd.f32 0.0, %v1238
        %v1240 = vpop.f32.mrf.mxu0
        %1241 = vmatprep.mubr.f32.mxu0 0.0
        %1242 = vmatmul.mubr.f32.gmra.mxu0 %v1170
        %v1243 = vpop.f32.mrf.mxu0
        %v1244 = vadd.f32 0.0, %v1243
        %v1245 = vpop.f32.mrf.mxu0
        %1246 = vdwg.mxu0
        %1247 = vrot.lane.b32.xlu0 %v853, 96
        %v1248 = vpop.permute.xlu0 %1247
        %1249 = vrot.lane.b32.xlu0 %v858, 96
        %v1250 = vpop.permute.xlu0 %1249
        %1251 = vrot.lane.b32.xlu0 %v951, 96
        %v1252 = vpop.permute.xlu0 %1251
        %v1253 = vsel %vm1047, %v1248, 0
        %v1255 = vsel %vm1047, %v1250, 0
        %v1257 = vsel %vm1047, %v1252, 0
        %1259 = vmatprep.subr.mxu0 0.0
        %1260 = vmatpush1.xpose.msra.mxu0 0.0
        %1261 = vmatprep.subr.mxu0 0.0
        %1262 = vmatpush1.xpose.msra.mxu0 0.0
        %1263 = vmatprep.subr.mxu0 0.0
        %1264 = vmatpush1.xpose.msra.mxu0 0.0
        %1265 = vmatprep.subr.mxu0 0.0
        %1266 = vmatpush1.xpose.msra.mxu0 0.0
        %1267 = vmatprep.subr.mxu0 0.0
        %1268 = vmatpush1.xpose.msra.mxu0 0.0
        %1269 = vmatprep.subr.mxu0 0.0
        %1270 = vmatpush1.xpose.msra.mxu0 0.0
        %1271 = vmatprep.subr.mxu0 0.0
        %1272 = vmatpush1.xpose.msra.mxu0 0.0
        %1273 = vmatprep.subr.mxu0 0.0
        %1274 = vmatpush1.xpose.msra.mxu0 0.0
        %1275 = vmatprep.subr.mxu0 0.0
        %1276 = vmatpush1.xpose.msra.mxu0 0.0
        %1277 = vmatprep.subr.mxu0 0.0
        %1278 = vmatpush1.xpose.msra.mxu0 0.0
        %1279 = vmatprep.subr.mxu0 0.0
        %1280 = vmatpush1.xpose.msra.mxu0 0.0
        %1281 = vmatprep.subr.mxu0 0.0
        %1282 = vmatpush1.xpose.msra.mxu0 0.0
        %1283 = vmatprep.subr.mxu0 0.0
        %1284 = vmatpush1.xpose.msra.mxu0 0.0
        %1285 = vmatprep.subr.mxu0 0.0
        %1286 = vmatpush1.xpose.msra.mxu0 0.0
        %1287 = vmatprep.subr.mxu0 0.0
        %1288 = vmatpush1.xpose.msra.mxu0 0.0
        %1289 = vmatprep.subr.mxu0 0.0
        %1290 = vmatpush1.xpose.msra.mxu0 %v1257
        %1291 = vmatprep.subr.mxu0 0.0
        %1292 = vmatpush2.xpose.msra.mxu0 0.0
        %1293 = vmatprep.subr.mxu0 0.0
        %1294 = vmatpush2.xpose.msra.mxu0 0.0
        %1295 = vmatprep.subr.mxu0 0.0
        %1296 = vmatpush2.xpose.msra.mxu0 0.0
        %1297 = vmatprep.subr.mxu0 0.0
        %1298 = vmatpush2.xpose.msra.mxu0 0.0
        %1299 = vmatprep.subr.mxu0 0.0
        %1300 = vmatpush2.xpose.msra.mxu0 0.0
        %1301 = vmatprep.subr.mxu0 0.0
        %1302 = vmatpush2.xpose.msra.mxu0 0.0
        %1303 = vmatprep.subr.mxu0 0.0
        %1304 = vmatpush2.xpose.msra.mxu0 0.0
        %1305 = vmatprep.subr.mxu0 0.0
        %1306 = vmatpush2.xpose.msra.mxu0 0.0
        %1307 = vmatprep.subr.mxu0 0.0
        %1308 = vmatpush2.xpose.msra.mxu0 0.0
        %1309 = vmatprep.subr.mxu0 0.0
        %1310 = vmatpush2.xpose.msra.mxu0 0.0
        %1311 = vmatprep.subr.mxu0 0.0
        %1312 = vmatpush2.xpose.msra.mxu0 0.0
        %1313 = vmatprep.subr.mxu0 0.0
        %1314 = vmatpush2.xpose.msra.mxu0 0.0
        %1315 = vmatprep.subr.mxu0 0.0
        %1316 = vmatpush2.xpose.msra.mxu0 0.0
        %1317 = vmatprep.subr.mxu0 0.0
        %1318 = vmatpush2.xpose.msra.mxu0 0.0
        %1319 = vmatprep.subr.mxu0 0.0
        %1320 = vmatpush2.xpose.msra.mxu0 0.0
        %1321 = vmatprep.subr.mxu0 0.0
        %1322 = vmatpush2.xpose.msra.mxu0 0.0
        %1323 = vmatprep.mubr.f32.mxu0 0.0
        %1324 = vmatmul.mubr.f32.gmra.mxu0 %v1253
        %v1325 = vpop.f32.mrf.mxu0
        %v1326 = vadd.f32 0.0, %v1325
        %v1327 = vpop.f32.mrf.mxu0
        %1328 = vmatprep.mubr.f32.mxu0 0.0
        %1329 = vmatmul.mubr.f32.gmra.mxu0 %v1255
        %v1330 = vpop.f32.mrf.mxu0
        %v1331 = vadd.f32 0.0, %v1330
        %v1332 = vpop.f32.mrf.mxu0
        %1333 = vdwg.mxu0
        %v1334 = vmul.f32 %v1326, 0.17677669
        %v1335 = vmul.f32 %v1331, 0.17677669
        %v1336 = vsel %vm1140, %v1334, -1e+09
        %v1337 = vsel %vm1140, %v1335, -1e+09
        %v1338 = vsel %vm1143, %v1336, -inf
        %1339 = vmax.xlane.f32.xlu0 %v1338
        %v1340 = vpop.xlane.xlu0 %1339
        %v1341 = vsel %vm1143, %v1337, -inf
        %1342 = vmax.xlane.f32.xlu0 %v1341
        %v1343 = vpop.xlane.xlu0 %1342
        %v1344 = vsub.f32 %v1336, %v1340
        %v1345 = vsub.f32 %v1337, %v1343
        %v1346 = vmul.f32 %v1344, 1.442695
        %v1347 = vpow.pop %v1346
        %v1348 = vmul.f32 %v1345, 1.442695
        %v1349 = vpow.pop %v1348
        %v1350 = vsel %vm1143, %v1347, 0.0
        %1351 = vadd.xlane.f32.xlu0 %v1350
        %v1352 = vpop.xlane.xlu0 %1351
        %v1353 = vsel %vm1143, %v1349, 0.0
        %1354 = vadd.xlane.f32.xlu0 %v1353
        %v1355 = vpop.xlane.xlu0 %1354
        %v1356 = vrcp.pop %v1352
        %v1357 = vmul.f32 %v1347, %v1356
        %v1358 = vrcp.pop %v1355
        %v1359 = vmul.f32 %v1349, %v1358
        %1361 = vrot.lane.b32.xlu0 %v1044, 96
        %v1362 = vpop.permute.xlu0 %1361
        %v1365 = vsel %vm1143, %v1357, 0
        %v1368 = vsel %vm1143, %v1359, 0
        %1370 = vmatprep.subr.mxu0 0.0
        %1371 = vmatpush1.msra.mxu0 0.0
        %1372 = vmatprep.subr.mxu0 0.0
        %1373 = vmatpush1.msra.mxu0 0.0
        %1374 = vmatprep.subr.mxu0 0.0
        %1375 = vmatpush1.msra.mxu0 0.0
        %1376 = vmatprep.subr.mxu0 0.0
        %1377 = vmatpush1.msra.mxu0 0.0
        %1378 = vmatprep.subr.mxu0 0.0
        %1379 = vmatpush1.msra.mxu0 0.0
        %1380 = vmatprep.subr.mxu0 0.0
        %1381 = vmatpush1.msra.mxu0 0.0
        %1382 = vmatprep.subr.mxu0 0.0
        %1383 = vmatpush1.msra.mxu0 0.0
        %1384 = vmatprep.subr.mxu0 0.0
        %1385 = vmatpush1.msra.mxu0 0.0
        %1386 = vmatprep.subr.mxu0 0.0
        %1387 = vmatpush1.msra.mxu0 0.0
        %1388 = vmatprep.subr.mxu0 0.0
        %1389 = vmatpush1.msra.mxu0 0.0
        %1390 = vmatprep.subr.mxu0 0.0
        %1391 = vmatpush1.msra.mxu0 0.0
        %1392 = vmatprep.subr.mxu0 0.0
        %1393 = vmatpush1.msra.mxu0 0.0
        %1394 = vmatprep.subr.mxu0 0.0
        %1395 = vmatpush1.msra.mxu0 0.0
        %1396 = vmatprep.subr.mxu0 0.0
        %1397 = vmatpush1.msra.mxu0 0.0
        %1398 = vmatprep.subr.mxu0 0.0
        %1399 = vmatpush1.msra.mxu0 0.0
        %1400 = vmatprep.subr.mxu0 0.0
        %1401 = vmatpush1.msra.mxu0 %v1362
        %1402 = vmatprep.subr.mxu0 0.0
        %1403 = vmatpush2.msra.mxu0 0.0
        %1404 = vmatprep.subr.mxu0 0.0
        %1405 = vmatpush2.msra.mxu0 0.0
        %1406 = vmatprep.subr.mxu0 0.0
        %1407 = vmatpush2.msra.mxu0 0.0
        %1408 = vmatprep.subr.mxu0 0.0
        %1409 = vmatpush2.msra.mxu0 0.0
        %1410 = vmatprep.subr.mxu0 0.0
        %1411 = vmatpush2.msra.mxu0 0.0
        %1412 = vmatprep.subr.mxu0 0.0
        %1413 = vmatpush2.msra.mxu0 0.0
        %1414 = vmatprep.subr.mxu0 0.0
        %1415 = vmatpush2.msra.mxu0 0.0
        %1416 = vmatprep.subr.mxu0 0.0
        %1417 = vmatpush2.msra.mxu0 0.0
        %1418 = vmatprep.subr.mxu0 0.0
        %1419 = vmatpush2.msra.mxu0 0.0
        %1420 = vmatprep.subr.mxu0 0.0
        %1421 = vmatpush2.msra.mxu0 0.0
        %1422 = vmatprep.subr.mxu0 0.0
        %1423 = vmatpush2.msra.mxu0 0.0
        %1424 = vmatprep.subr.mxu0 0.0
        %1425 = vmatpush2.msra.mxu0 0.0
        %1426 = vmatprep.subr.mxu0 0.0
        %1427 = vmatpush2.msra.mxu0 0.0
        %1428 = vmatprep.subr.mxu0 0.0
        %1429 = vmatpush2.msra.mxu0 0.0
        %1430 = vmatprep.subr.mxu0 0.0
        %1431 = vmatpush2.msra.mxu0 0.0
        %1432 = vmatprep.subr.mxu0 0.0
        %1433 = vmatpush2.msra.mxu0 0.0
        %1434 = vmatprep.mubr.f32.mxu0 0.0
        %1435 = vmatmul.mubr.f32.gmra.mxu0 %v1365
        %v1436 = vpop.f32.mrf.mxu0
        %v1437 = vadd.f32 0.0, %v1436
        %v1438 = vpop.f32.mrf.mxu0
        %1439 = vmatprep.mubr.f32.mxu0 0.0
        %1440 = vmatmul.mubr.f32.gmra.mxu0 %v1368
        %v1441 = vpop.f32.mrf.mxu0
        %v1442 = vadd.f32 0.0, %v1441
        %v1443 = vpop.f32.mrf.mxu0
        %1444 = vdwg.mxu0
        %1445 = vrot.lane.b32.xlu0 %v853, 64
        %v1446 = vpop.permute.xlu0 %1445
        %1447 = vrot.lane.b32.xlu0 %v858, 64
        %v1448 = vpop.permute.xlu0 %1447
        %1449 = vrot.lane.b32.xlu0 %v951, 64
        %v1450 = vpop.permute.xlu0 %1449
        %v1451 = vsel %vm1047, %v1446, 0
        %v1453 = vsel %vm1047, %v1448, 0
        %v1455 = vsel %vm1047, %v1450, 0
        %1457 = vmatprep.subr.mxu0 0.0
        %1458 = vmatpush1.xpose.msra.mxu0 0.0
        %1459 = vmatprep.subr.mxu0 0.0
        %1460 = vmatpush1.xpose.msra.mxu0 0.0
        %1461 = vmatprep.subr.mxu0 0.0
        %1462 = vmatpush1.xpose.msra.mxu0 0.0
        %1463 = vmatprep.subr.mxu0 0.0
        %1464 = vmatpush1.xpose.msra.mxu0 0.0
        %1465 = vmatprep.subr.mxu0 0.0
        %1466 = vmatpush1.xpose.msra.mxu0 0.0
        %1467 = vmatprep.subr.mxu0 0.0
        %1468 = vmatpush1.xpose.msra.mxu0 0.0
        %1469 = vmatprep.subr.mxu0 0.0
        %1470 = vmatpush1.xpose.msra.mxu0 0.0
        %1471 = vmatprep.subr.mxu0 0.0
        %1472 = vmatpush1.xpose.msra.mxu0 0.0
        %1473 = vmatprep.subr.mxu0 0.0
        %1474 = vmatpush1.xpose.msra.mxu0 0.0
        %1475 = vmatprep.subr.mxu0 0.0
        %1476 = vmatpush1.xpose.msra.mxu0 0.0
        %1477 = vmatprep.subr.mxu0 0.0
        %1478 = vmatpush1.xpose.msra.mxu0 0.0
        %1479 = vmatprep.subr.mxu0 0.0
        %1480 = vmatpush1.xpose.msra.mxu0 0.0
        %1481 = vmatprep.subr.mxu0 0.0
        %1482 = vmatpush1.xpose.msra.mxu0 0.0
        %1483 = vmatprep.subr.mxu0 0.0
        %1484 = vmatpush1.xpose.msra.mxu0 0.0
        %1485 = vmatprep.subr.mxu0 0.0
        %1486 = vmatpush1.xpose.msra.mxu0 0.0
        %1487 = vmatprep.subr.mxu0 0.0
        %1488 = vmatpush1.xpose.msra.mxu0 %v1455
        %1489 = vmatprep.subr.mxu0 0.0
        %1490 = vmatpush2.xpose.msra.mxu0 0.0
        %1491 = vmatprep.subr.mxu0 0.0
        %1492 = vmatpush2.xpose.msra.mxu0 0.0
        %1493 = vmatprep.subr.mxu0 0.0
        %1494 = vmatpush2.xpose.msra.mxu0 0.0
        %1495 = vmatprep.subr.mxu0 0.0
        %1496 = vmatpush2.xpose.msra.mxu0 0.0
        %1497 = vmatprep.subr.mxu0 0.0
        %1498 = vmatpush2.xpose.msra.mxu0 0.0
        %1499 = vmatprep.subr.mxu0 0.0
        %1500 = vmatpush2.xpose.msra.mxu0 0.0
        %1501 = vmatprep.subr.mxu0 0.0
        %1502 = vmatpush2.xpose.msra.mxu0 0.0
        %1503 = vmatprep.subr.mxu0 0.0
        %1504 = vmatpush2.xpose.msra.mxu0 0.0
        %1505 = vmatprep.subr.mxu0 0.0
        %1506 = vmatpush2.xpose.msra.mxu0 0.0
        %1507 = vmatprep.subr.mxu0 0.0
        %1508 = vmatpush2.xpose.msra.mxu0 0.0
        %1509 = vmatprep.subr.mxu0 0.0
        %1510 = vmatpush2.xpose.msra.mxu0 0.0
        %1511 = vmatprep.subr.mxu0 0.0
        %1512 = vmatpush2.xpose.msra.mxu0 0.0
        %1513 = vmatprep.subr.mxu0 0.0
        %1514 = vmatpush2.xpose.msra.mxu0 0.0
        %1515 = vmatprep.subr.mxu0 0.0
        %1516 = vmatpush2.xpose.msra.mxu0 0.0
        %1517 = vmatprep.subr.mxu0 0.0
        %1518 = vmatpush2.xpose.msra.mxu0 0.0
        %1519 = vmatprep.subr.mxu0 0.0
        %1520 = vmatpush2.xpose.msra.mxu0 0.0
        %1521 = vmatprep.mubr.f32.mxu0 0.0
        %1522 = vmatmul.mubr.f32.gmra.mxu0 %v1451
        %v1523 = vpop.f32.mrf.mxu0
        %v1524 = vadd.f32 0.0, %v1523
        %v1525 = vpop.f32.mrf.mxu0
        %1526 = vmatprep.mubr.f32.mxu0 0.0
        %1527 = vmatmul.mubr.f32.gmra.mxu0 %v1453
        %v1528 = vpop.f32.mrf.mxu0
        %v1529 = vadd.f32 0.0, %v1528
        %v1530 = vpop.f32.mrf.mxu0
        %1531 = vdwg.mxu0
        %v1532 = vmul.f32 %v1524, 0.17677669
        %v1533 = vmul.f32 %v1529, 0.17677669
        %v1534 = vsel %vm1140, %v1532, -1e+09
        %v1535 = vsel %vm1140, %v1533, -1e+09
        %v1536 = vsel %vm1143, %v1534, -inf
        %1537 = vmax.xlane.f32.xlu0 %v1536
        %v1538 = vpop.xlane.xlu0 %1537
        %v1539 = vsel %vm1143, %v1535, -inf
        %1540 = vmax.xlane.f32.xlu0 %v1539
        %v1541 = vpop.xlane.xlu0 %1540
        %v1542 = vsub.f32 %v1534, %v1538
        %v1543 = vsub.f32 %v1535, %v1541
        %v1544 = vmul.f32 %v1542, 1.442695
        %v1545 = vpow.pop %v1544
        %v1546 = vmul.f32 %v1543, 1.442695
        %v1547 = vpow.pop %v1546
        %v1548 = vsel %vm1143, %v1545, 0.0
        %1549 = vadd.xlane.f32.xlu0 %v1548
        %v1550 = vpop.xlane.xlu0 %1549
        %v1551 = vsel %vm1143, %v1547, 0.0
        %1552 = vadd.xlane.f32.xlu0 %v1551
        %v1553 = vpop.xlane.xlu0 %1552
        %v1554 = vrcp.pop %v1550
        %v1555 = vmul.f32 %v1545, %v1554
        %v1556 = vrcp.pop %v1553
        %v1557 = vmul.f32 %v1547, %v1556
        %1558 = vrot.lane.b32.xlu0 %v1044, 64
        %v1559 = vpop.permute.xlu0 %1558
        %v1562 = vsel %vm1143, %v1555, 0
        %v1565 = vsel %vm1143, %v1557, 0
        %1567 = vmatprep.subr.mxu0 0.0
        %1568 = vmatpush1.msra.mxu0 0.0
        %1569 = vmatprep.subr.mxu0 0.0
        %1570 = vmatpush1.msra.mxu0 0.0
        %1571 = vmatprep.subr.mxu0 0.0
        %1572 = vmatpush1.msra.mxu0 0.0
        %1573 = vmatprep.subr.mxu0 0.0
        %1574 = vmatpush1.msra.mxu0 0.0
        %1575 = vmatprep.subr.mxu0 0.0
        %1576 = vmatpush1.msra.mxu0 0.0
        %1577 = vmatprep.subr.mxu0 0.0
        %1578 = vmatpush1.msra.mxu0 0.0
        %1579 = vmatprep.subr.mxu0 0.0
        %1580 = vmatpush1.msra.mxu0 0.0
        %1581 = vmatprep.subr.mxu0 0.0
        %1582 = vmatpush1.msra.mxu0 0.0
        %1583 = vmatprep.subr.mxu0 0.0
        %1584 = vmatpush1.msra.mxu0 0.0
        %1585 = vmatprep.subr.mxu0 0.0
        %1586 = vmatpush1.msra.mxu0 0.0
        %1587 = vmatprep.subr.mxu0 0.0
        %1588 = vmatpush1.msra.mxu0 0.0
        %1589 = vmatprep.subr.mxu0 0.0
        %1590 = vmatpush1.msra.mxu0 0.0
        %1591 = vmatprep.subr.mxu0 0.0
        %1592 = vmatpush1.msra.mxu0 0.0
        %1593 = vmatprep.subr.mxu0 0.0
        %1594 = vmatpush1.msra.mxu0 0.0
        %1595 = vmatprep.subr.mxu0 0.0
        %1596 = vmatpush1.msra.mxu0 0.0
        %1597 = vmatprep.subr.mxu0 0.0
        %1598 = vmatpush1.msra.mxu0 %v1559
        %1599 = vmatprep.subr.mxu0 0.0
        %1600 = vmatpush2.msra.mxu0 0.0
        %1601 = vmatprep.subr.mxu0 0.0
        %1602 = vmatpush2.msra.mxu0 0.0
        %1603 = vmatprep.subr.mxu0 0.0
        %1604 = vmatpush2.msra.mxu0 0.0
        %1605 = vmatprep.subr.mxu0 0.0
        %1606 = vmatpush2.msra.mxu0 0.0
        %1607 = vmatprep.subr.mxu0 0.0
        %1608 = vmatpush2.msra.mxu0 0.0
        %1609 = vmatprep.subr.mxu0 0.0
        %1610 = vmatpush2.msra.mxu0 0.0
        %1611 = vmatprep.subr.mxu0 0.0
        %1612 = vmatpush2.msra.mxu0 0.0
        %1613 = vmatprep.subr.mxu0 0.0
        %1614 = vmatpush2.msra.mxu0 0.0
        %1615 = vmatprep.subr.mxu0 0.0
        %1616 = vmatpush2.msra.mxu0 0.0
        %1617 = vmatprep.subr.mxu0 0.0
        %1618 = vmatpush2.msra.mxu0 0.0
        %1619 = vmatprep.subr.mxu0 0.0
        %1620 = vmatpush2.msra.mxu0 0.0
        %1621 = vmatprep.subr.mxu0 0.0
        %1622 = vmatpush2.msra.mxu0 0.0
        %1623 = vmatprep.subr.mxu0 0.0
        %1624 = vmatpush2.msra.mxu0 0.0
        %1625 = vmatprep.subr.mxu0 0.0
        %1626 = vmatpush2.msra.mxu0 0.0
        %1627 = vmatprep.subr.mxu0 0.0
        %1628 = vmatpush2.msra.mxu0 0.0
        %1629 = vmatprep.subr.mxu0 0.0
        %1630 = vmatpush2.msra.mxu0 0.0
        %1631 = vmatprep.mubr.f32.mxu0 0.0
        %1632 = vmatmul.mubr.f32.gmra.mxu0 %v1562
        %v1633 = vpop.f32.mrf.mxu0
        %v1634 = vadd.f32 0.0, %v1633
        %v1635 = vpop.f32.mrf.mxu0
        %1636 = vmatprep.mubr.f32.mxu0 0.0
        %1637 = vmatmul.mubr.f32.gmra.mxu0 %v1565
        %v1638 = vpop.f32.mrf.mxu0
        %v1639 = vadd.f32 0.0, %v1638
        %v1640 = vpop.f32.mrf.mxu0
        %1641 = vdwg.mxu0
        %1642 = vrot.lane.b32.xlu0 %v853, 32
        %v1643 = vpop.permute.xlu0 %1642
        %1644 = vrot.lane.b32.xlu0 %v858, 32
        %v1645 = vpop.permute.xlu0 %1644
        %1646 = vrot.lane.b32.xlu0 %v951, 32
        %v1647 = vpop.permute.xlu0 %1646
        %v1648 = vsel %vm1047, %v1643, 0
        %v1650 = vsel %vm1047, %v1645, 0
        %v1652 = vsel %vm1047, %v1647, 0
        %1654 = vmatprep.subr.mxu0 0.0
        %1655 = vmatpush1.xpose.msra.mxu0 0.0
        %1656 = vmatprep.subr.mxu0 0.0
        %1657 = vmatpush1.xpose.msra.mxu0 0.0
        %1658 = vmatprep.subr.mxu0 0.0
        %1659 = vmatpush1.xpose.msra.mxu0 0.0
        %1660 = vmatprep.subr.mxu0 0.0
        %1661 = vmatpush1.xpose.msra.mxu0 0.0
        %1662 = vmatprep.subr.mxu0 0.0
        %1663 = vmatpush1.xpose.msra.mxu0 0.0
        %1664 = vmatprep.subr.mxu0 0.0
        %1665 = vmatpush1.xpose.msra.mxu0 0.0
        %1666 = vmatprep.subr.mxu0 0.0
        %1667 = vmatpush1.xpose.msra.mxu0 0.0
        %1668 = vmatprep.subr.mxu0 0.0
        %1669 = vmatpush1.xpose.msra.mxu0 0.0
        %1670 = vmatprep.subr.mxu0 0.0
        %1671 = vmatpush1.xpose.msra.mxu0 0.0
        %1672 = vmatprep.subr.mxu0 0.0
        %1673 = vmatpush1.xpose.msra.mxu0 0.0
        %1674 = vmatprep.subr.mxu0 0.0
        %1675 = vmatpush1.xpose.msra.mxu0 0.0
        %1676 = vmatprep.subr.mxu0 0.0
        %1677 = vmatpush1.xpose.msra.mxu0 0.0
        %1678 = vmatprep.subr.mxu0 0.0
        %1679 = vmatpush1.xpose.msra.mxu0 0.0
        %1680 = vmatprep.subr.mxu0 0.0
        %1681 = vmatpush1.xpose.msra.mxu0 0.0
        %1682 = vmatprep.subr.mxu0 0.0
        %1683 = vmatpush1.xpose.msra.mxu0 0.0
        %1684 = vmatprep.subr.mxu0 0.0
        %1685 = vmatpush1.xpose.msra.mxu0 %v1652
        %1686 = vmatprep.subr.mxu0 0.0
        %1687 = vmatpush2.xpose.msra.mxu0 0.0
        %1688 = vmatprep.subr.mxu0 0.0
        %1689 = vmatpush2.xpose.msra.mxu0 0.0
        %1690 = vmatprep.subr.mxu0 0.0
        %1691 = vmatpush2.xpose.msra.mxu0 0.0
        %1692 = vmatprep.subr.mxu0 0.0
        %1693 = vmatpush2.xpose.msra.mxu0 0.0
        %1694 = vmatprep.subr.mxu0 0.0
        %1695 = vmatpush2.xpose.msra.mxu0 0.0
        %1696 = vmatprep.subr.mxu0 0.0
        %1697 = vmatpush2.xpose.msra.mxu0 0.0
        %1698 = vmatprep.subr.mxu0 0.0
        %1699 = vmatpush2.xpose.msra.mxu0 0.0
        %1700 = vmatprep.subr.mxu0 0.0
        %1701 = vmatpush2.xpose.msra.mxu0 0.0
        %1702 = vmatprep.subr.mxu0 0.0
        %1703 = vmatpush2.xpose.msra.mxu0 0.0
        %1704 = vmatprep.subr.mxu0 0.0
        %1705 = vmatpush2.xpose.msra.mxu0 0.0
        %1706 = vmatprep.subr.mxu0 0.0
        %1707 = vmatpush2.xpose.msra.mxu0 0.0
        %1708 = vmatprep.subr.mxu0 0.0
        %1709 = vmatpush2.xpose.msra.mxu0 0.0
        %1710 = vmatprep.subr.mxu0 0.0
        %1711 = vmatpush2.xpose.msra.mxu0 0.0
        %1712 = vmatprep.subr.mxu0 0.0
        %1713 = vmatpush2.xpose.msra.mxu0 0.0
        %1714 = vmatprep.subr.mxu0 0.0
        %1715 = vmatpush2.xpose.msra.mxu0 0.0
        %1716 = vmatprep.subr.mxu0 0.0
        %1717 = vmatpush2.xpose.msra.mxu0 0.0
        %1718 = vmatprep.mubr.f32.mxu0 0.0
        %1719 = vmatmul.mubr.f32.gmra.mxu0 %v1648
        %v1720 = vpop.f32.mrf.mxu0
        %v1721 = vadd.f32 0.0, %v1720
        %v1722 = vpop.f32.mrf.mxu0
        %1723 = vmatprep.mubr.f32.mxu0 0.0
        %1724 = vmatmul.mubr.f32.gmra.mxu0 %v1650
        %v1725 = vpop.f32.mrf.mxu0
        %v1726 = vadd.f32 0.0, %v1725
        %v1727 = vpop.f32.mrf.mxu0
        %1728 = vdwg.mxu0
        %v1729 = vmul.f32 %v1721, 0.17677669
        %v1730 = vmul.f32 %v1726, 0.17677669
        %v1731 = vsel %vm1140, %v1729, -1e+09
        %v1732 = vsel %vm1140, %v1730, -1e+09
        %v1733 = vsel %vm1143, %v1731, -inf
        %1734 = vmax.xlane.f32.xlu0 %v1733
        %v1735 = vpop.xlane.xlu0 %1734
        %v1736 = vsel %vm1143, %v1732, -inf
        %1737 = vmax.xlane.f32.xlu0 %v1736
        %v1738 = vpop.xlane.xlu0 %1737
        %v1739 = vsub.f32 %v1731, %v1735
        %v1740 = vsub.f32 %v1732, %v1738
        %v1741 = vmul.f32 %v1739, 1.442695
        %v1742 = vpow.pop %v1741
        %v1743 = vmul.f32 %v1740, 1.442695
        %v1744 = vpow.pop %v1743
        %v1745 = vsel %vm1143, %v1742, 0.0
        %1746 = vadd.xlane.f32.xlu0 %v1745
        %v1747 = vpop.xlane.xlu0 %1746
        %v1748 = vsel %vm1143, %v1744, 0.0
        %1749 = vadd.xlane.f32.xlu0 %v1748
        %v1750 = vpop.xlane.xlu0 %1749
        %v1751 = vrcp.pop %v1747
        %v1752 = vmul.f32 %v1742, %v1751
        %v1753 = vrcp.pop %v1750
        %v1754 = vmul.f32 %v1744, %v1753
        %1755 = vrot.lane.b32.xlu0 %v1044, 32
        %v1756 = vpop.permute.xlu0 %1755
        %v1759 = vsel %vm1143, %v1752, 0
        %v1762 = vsel %vm1143, %v1754, 0
        %1764 = vmatprep.subr.mxu0 0.0
        %1765 = vmatpush1.msra.mxu0 0.0
        %1766 = vmatprep.subr.mxu0 0.0
        %1767 = vmatpush1.msra.mxu0 0.0
        %1768 = vmatprep.subr.mxu0 0.0
        %1769 = vmatpush1.msra.mxu0 0.0
        %1770 = vmatprep.subr.mxu0 0.0
        %1771 = vmatpush1.msra.mxu0 0.0
        %1772 = vmatprep.subr.mxu0 0.0
        %1773 = vmatpush1.msra.mxu0 0.0
        %1774 = vmatprep.subr.mxu0 0.0
        %1775 = vmatpush1.msra.mxu0 0.0
        %1776 = vmatprep.subr.mxu0 0.0
        %1777 = vmatpush1.msra.mxu0 0.0
        %1778 = vmatprep.subr.mxu0 0.0
        %1779 = vmatpush1.msra.mxu0 0.0
        %1780 = vmatprep.subr.mxu0 0.0
        %1781 = vmatpush1.msra.mxu0 0.0
        %1782 = vmatprep.subr.mxu0 0.0
        %1783 = vmatpush1.msra.mxu0 0.0
        %1784 = vmatprep.subr.mxu0 0.0
        %1785 = vmatpush1.msra.mxu0 0.0
        %1786 = vmatprep.subr.mxu0 0.0
        %1787 = vmatpush1.msra.mxu0 0.0
        %1788 = vmatprep.subr.mxu0 0.0
        %1789 = vmatpush1.msra.mxu0 0.0
        %1790 = vmatprep.subr.mxu0 0.0
        %1791 = vmatpush1.msra.mxu0 0.0
        %1792 = vmatprep.subr.mxu0 0.0
        %1793 = vmatpush1.msra.mxu0 0.0
        %1794 = vmatprep.subr.mxu0 0.0
        %1795 = vmatpush1.msra.mxu0 %v1756
        %1796 = vmatprep.subr.mxu0 0.0
        %1797 = vmatpush2.msra.mxu0 0.0
        %1798 = vmatprep.subr.mxu0 0.0
        %1799 = vmatpush2.msra.mxu0 0.0
        %1800 = vmatprep.subr.mxu0 0.0
        %1801 = vmatpush2.msra.mxu0 0.0
        %1802 = vmatprep.subr.mxu0 0.0
        %1803 = vmatpush2.msra.mxu0 0.0
        %1804 = vmatprep.subr.mxu0 0.0
        %1805 = vmatpush2.msra.mxu0 0.0
        %1806 = vmatprep.subr.mxu0 0.0
        %1807 = vmatpush2.msra.mxu0 0.0
        %1808 = vmatprep.subr.mxu0 0.0
        %1809 = vmatpush2.msra.mxu0 0.0
        %1810 = vmatprep.subr.mxu0 0.0
        %1811 = vmatpush2.msra.mxu0 0.0
        %1812 = vmatprep.subr.mxu0 0.0
        %1813 = vmatpush2.msra.mxu0 0.0
        %1814 = vmatprep.subr.mxu0 0.0
        %1815 = vmatpush2.msra.mxu0 0.0
        %1816 = vmatprep.subr.mxu0 0.0
        %1817 = vmatpush2.msra.mxu0 0.0
        %1818 = vmatprep.subr.mxu0 0.0
        %1819 = vmatpush2.msra.mxu0 0.0
        %1820 = vmatprep.subr.mxu0 0.0
        %1821 = vmatpush2.msra.mxu0 0.0
        %1822 = vmatprep.subr.mxu0 0.0
        %1823 = vmatpush2.msra.mxu0 0.0
        %1824 = vmatprep.subr.mxu0 0.0
        %1825 = vmatpush2.msra.mxu0 0.0
        %1826 = vmatprep.subr.mxu0 0.0
        %1827 = vmatpush2.msra.mxu0 0.0
        %1828 = vmatprep.mubr.f32.mxu0 0.0
        %1829 = vmatmul.mubr.f32.gmra.mxu0 %v1759
        %v1830 = vpop.f32.mrf.mxu0
        %v1831 = vadd.f32 0.0, %v1830
        %v1832 = vpop.f32.mrf.mxu0
        %1833 = vmatprep.mubr.f32.mxu0 0.0
        %1834 = vmatmul.mubr.f32.gmra.mxu0 %v1762
        %v1835 = vpop.f32.mrf.mxu0
        %v1836 = vadd.f32 0.0, %v1835
        %v1837 = vpop.f32.mrf.mxu0
        %1838 = vdwg.mxu0
        %1841 = vrot.lane.b32.xlu0 %v1437, 32
        %v1842 = vpop.permute.xlu0 %1841
        %1843 = vrot.lane.b32.xlu0 %v1442, 32
        %v1844 = vpop.permute.xlu0 %1843
        %1849 = vrot.lane.b32.xlu0 %v1634, 64
        %v1850 = vpop.permute.xlu0 %1849
        %1851 = vrot.lane.b32.xlu0 %v1639, 64
        %v1852 = vpop.permute.xlu0 %1851
        %1857 = vrot.lane.b32.xlu0 %v1831, 96
        %v1858 = vpop.permute.xlu0 %1857
        %1859 = vrot.lane.b32.xlu0 %v1836, 96
        %v1860 = vpop.permute.xlu0 %1859
        %v1863 = vsel %vm1047, %v1239, %v1842
        %v1864 = vsel %vm1047, %v1244, %v1844
        %vm1865 = vcmask 523264
        %v1866 = vsel %vm1865, %v1863, %v1850
        %v1867 = vsel %vm1865, %v1864, %v1852
        %vm1868 = vcmask 785408
        %v1869 = vsel %vm1868, %v1866, %v1858
        %v1870 = vsel %vm1868, %v1867, %v1860
        %v1871 = vld [vmem:[#allocation11] sm:$0xff]
        %v1872 = vld [vmem:[#allocation11 + $0x8] sm:$0xff]
        %v1873 = vld [vmem:[#allocation11 + $0x10] sm:$0xff]
        %v1874 = vld [vmem:[#allocation11 + $0x18] sm:$0xff]
        %v1875 = vld [vmem:[#allocation11 + $0x20] sm:$0xff]
        %v1876 = vld [vmem:[#allocation11 + $0x28] sm:$0xff]
        %v1877 = vld [vmem:[#allocation11 + $0x30] sm:$0xff]
        %v1878 = vld [vmem:[#allocation11 + $0x38] sm:$0xff]
        %v1879 = vld [vmem:[#allocation11 + $0x40] sm:$0xff]
        %v1880 = vld [vmem:[#allocation11 + $0x48] sm:$0xff]
        %v1881 = vld [vmem:[#allocation11 + $0x50] sm:$0xff]
        %v1882 = vld [vmem:[#allocation11 + $0x58] sm:$0xff]
        %v1883 = vld [vmem:[#allocation11 + $0x60] sm:$0xff]
        %v1884 = vld [vmem:[#allocation11 + $0x68] sm:$0xff]
        %v1885 = vld [vmem:[#allocation11 + $0x70] sm:$0xff]
        %v1886 = vld [vmem:[#allocation11 + $0x78] sm:$0xff]
        %v1887 = vld [vmem:[%s10] sm:$0x1]
        %v1889 = vlaneseq
        %v1890 = vshrl.u32 %v1889, 7
        %v1891 = vsub.s32 0, %v1890
        %v1892 = vrot.slane %v1887, %v1891
        %1894 = vmatprep.subr.mxu0 0.0
        %1895 = vmatpush1.msra.mxu0 %v1886
        %1896 = vmatprep.subr.mxu0 0.0
        %1897 = vmatpush1.msra.mxu0 %v1885
        %1898 = vmatprep.subr.mxu0 0.0
        %1899 = vmatpush1.msra.mxu0 %v1884
        %1900 = vmatprep.subr.mxu0 0.0
        %1901 = vmatpush1.msra.mxu0 %v1883
        %1902 = vmatprep.subr.mxu0 0.0
        %1903 = vmatpush1.msra.mxu0 %v1882
        %1904 = vmatprep.subr.mxu0 0.0
        %1905 = vmatpush1.msra.mxu0 %v1881
        %1906 = vmatprep.subr.mxu0 0.0
        %1907 = vmatpush1.msra.mxu0 %v1880
        %1908 = vmatprep.subr.mxu0 0.0
        %1909 = vmatpush1.msra.mxu0 %v1879
        %1910 = vmatprep.subr.mxu0 0.0
        %1911 = vmatpush1.msra.mxu0 %v1878
        %1912 = vmatprep.subr.mxu0 0.0
        %1913 = vmatpush1.msra.mxu0 %v1877
        %1914 = vmatprep.subr.mxu0 0.0
        %1915 = vmatpush1.msra.mxu0 %v1876
        %1916 = vmatprep.subr.mxu0 0.0
        %1917 = vmatpush1.msra.mxu0 %v1875
        %1918 = vmatprep.subr.mxu0 0.0
        %1919 = vmatpush1.msra.mxu0 %v1874
        %1920 = vmatprep.subr.mxu0 0.0
        %1921 = vmatpush1.msra.mxu0 %v1873
        %1922 = vmatprep.subr.mxu0 0.0
        %1923 = vmatpush1.msra.mxu0 %v1872
        %1924 = vmatprep.subr.mxu0 0.0
        %1925 = vmatpush1.msra.mxu0 %v1871
        %1926 = vmatprep.subr.mxu0 0.0
        %1927 = vmatpush2.msra.mxu0 0.0
        %1928 = vmatprep.subr.mxu0 0.0
        %1929 = vmatpush2.msra.mxu0 0.0
        %1930 = vmatprep.subr.mxu0 0.0
        %1931 = vmatpush2.msra.mxu0 0.0
        %1932 = vmatprep.subr.mxu0 0.0
        %1933 = vmatpush2.msra.mxu0 0.0
        %1934 = vmatprep.subr.mxu0 0.0
        %1935 = vmatpush2.msra.mxu0 0.0
        %1936 = vmatprep.subr.mxu0 0.0
        %1937 = vmatpush2.msra.mxu0 0.0
        %1938 = vmatprep.subr.mxu0 0.0
        %1939 = vmatpush2.msra.mxu0 0.0
        %1940 = vmatprep.subr.mxu0 0.0
        %1941 = vmatpush2.msra.mxu0 0.0
        %1942 = vmatprep.subr.mxu0 0.0
        %1943 = vmatpush2.msra.mxu0 0.0
        %1944 = vmatprep.subr.mxu0 0.0
        %1945 = vmatpush2.msra.mxu0 0.0
        %1946 = vmatprep.subr.mxu0 0.0
        %1947 = vmatpush2.msra.mxu0 0.0
        %1948 = vmatprep.subr.mxu0 0.0
        %1949 = vmatpush2.msra.mxu0 0.0
        %1950 = vmatprep.subr.mxu0 0.0
        %1951 = vmatpush2.msra.mxu0 0.0
        %1952 = vmatprep.subr.mxu0 0.0
        %1953 = vmatpush2.msra.mxu0 0.0
        %1954 = vmatprep.subr.mxu0 0.0
        %1955 = vmatpush2.msra.mxu0 0.0
        %1956 = vmatprep.subr.mxu0 0.0
        %1957 = vmatpush2.msra.mxu0 0.0
        %1958 = vmatprep.mubr.f32.mxu0 0.0
        %1959 = vmatmul.mubr.f32.gmra.mxu0 %v1869
        %v1960 = vpop.f32.mrf.mxu0
        %v1961 = vadd.f32 %v1892, %v1960
        %v1962 = vpop.f32.mrf.mxu0
        %1963 = vmatprep.mubr.f32.mxu0 0.0
        %1964 = vmatmul.mubr.f32.gmra.mxu0 %v1870
        %v1965 = vpop.f32.mrf.mxu0
        %v1966 = vadd.f32 %v1892, %v1965
        %v1967 = vpop.f32.mrf.mxu0
        %1968 = vdwg.mxu0
        %v1969 = vadd.f32 %v1961, %v759
        %v1970 = vadd.f32 %v1966, %v760
        %v1971 = vld [vmem:[%s11] sm:$0x1]
        %v1972 = vld [vmem:[%s12] sm:$0x1]
        %1973 = vadd.xlane.f32.xlu0 %v1969
        %v1974 = vpop.xlane.xlu0 %1973
        %1975 = vadd.xlane.f32.xlu0 %v1970
        %v1976 = vpop.xlane.xlu0 %1975
        %v1977 = vrcp.pop 128.0
        %v1978 = vmul.f32 %v1974, %v1977
        %v1979 = vmul.f32 %v1976, %v1977
        %v1980 = vsub.f32 %v1969, %v1978
        %v1981 = vsub.f32 %v1970, %v1979
        %v1982 = vmul.f32 %v1980, %v1980
        %v1983 = vmul.f32 %v1981, %v1981
        %1984 = vadd.xlane.f32.xlu0 %v1982
        %v1985 = vpop.xlane.xlu0 %1984
        %1986 = vadd.xlane.f32.xlu0 %v1983
        %v1987 = vpop.xlane.xlu0 %1986
        %v1988 = vmul.f32 %v1985, %v1977
        %v1989 = vmul.f32 %v1987, %v1977
        %v1990 = vadd.f32 %v1988, 1e-12
        %v1991 = vadd.f32 %v1989, 1e-12
        %v1992 = vrsqrt.pop %v1990
        %v1993 = vrsqrt.pop %v1991
        %v1994 = vmul.f32 %v1980, %v1992
        %v1995 = vmul.f32 %v1981, %v1993
        %v1997 = vlaneseq
        %v1998 = vshrl.u32 %v1997, 7
        %v1999 = vsub.s32 0, %v1998
        %v2000 = vrot.slane %v1971, %v1999
        %v2002 = vmul.f32 %v1994, %v2000
        %v2003 = vmul.f32 %v1995, %v2000
        %v2005 = vlaneseq
        %v2006 = vshrl.u32 %v2005, 7
        %v2007 = vsub.s32 0, %v2006
        %v2008 = vrot.slane %v1972, %v2007
        %v2010 = vadd.f32 %v2002, %v2008
        %v2011 = vadd.f32 %v2003, %v2008
        %v2012 = vld [vmem:[#allocation13] sm:$0xff]
        %v2013 = vld [vmem:[#allocation13 + $0x8] sm:$0xff]
        %v2014 = vld [vmem:[#allocation13 + $0x10] sm:$0xff]
        %v2015 = vld [vmem:[#allocation13 + $0x18] sm:$0xff]
        %v2016 = vld [vmem:[#allocation13 + $0x20] sm:$0xff]
        %v2017 = vld [vmem:[#allocation13 + $0x28] sm:$0xff]
        %v2018 = vld [vmem:[#allocation13 + $0x30] sm:$0xff]
        %v2019 = vld [vmem:[#allocation13 + $0x38] sm:$0xff]
        %v2020 = vld [vmem:[#allocation13 + $0x40] sm:$0xff]
        %v2021 = vld [vmem:[#allocation13 + $0x48] sm:$0xff]
        %v2022 = vld [vmem:[#allocation13 + $0x50] sm:$0xff]
        %v2023 = vld [vmem:[#allocation13 + $0x58] sm:$0xff]
        %v2024 = vld [vmem:[#allocation13 + $0x60] sm:$0xff]
        %v2025 = vld [vmem:[#allocation13 + $0x68] sm:$0xff]
        %v2026 = vld [vmem:[#allocation13 + $0x70] sm:$0xff]
        %v2027 = vld [vmem:[#allocation13 + $0x78] sm:$0xff]
        %v2028 = vld [vmem:[#allocation13 + $0x80] sm:$0xff]
        %v2029 = vld [vmem:[#allocation13 + $0x88] sm:$0xff]
        %v2030 = vld [vmem:[#allocation13 + $0x90] sm:$0xff]
        %v2031 = vld [vmem:[#allocation13 + $0x98] sm:$0xff]
        %v2032 = vld [vmem:[#allocation13 + $0xa0] sm:$0xff]
        %v2033 = vld [vmem:[#allocation13 + $0xa8] sm:$0xff]
        %v2034 = vld [vmem:[#allocation13 + $0xb0] sm:$0xff]
        %v2035 = vld [vmem:[#allocation13 + $0xb8] sm:$0xff]
        %v2036 = vld [vmem:[#allocation13 + $0xc0] sm:$0xff]
        %v2037 = vld [vmem:[#allocation13 + $0xc8] sm:$0xff]
        %v2038 = vld [vmem:[#allocation13 + $0xd0] sm:$0xff]
        %v2039 = vld [vmem:[#allocation13 + $0xd8] sm:$0xff]
        %v2040 = vld [vmem:[#allocation13 + $0xe0] sm:$0xff]
        %v2041 = vld [vmem:[#allocation13 + $0xe8] sm:$0xff]
        %v2042 = vld [vmem:[#allocation13 + $0xf0] sm:$0xff]
        %v2043 = vld [vmem:[#allocation13 + $0xf8] sm:$0xff]
        %v2044 = vld [vmem:[#allocation13 + $0x100] sm:$0xff]
        %v2045 = vld [vmem:[#allocation13 + $0x108] sm:$0xff]
        %v2046 = vld [vmem:[#allocation13 + $0x110] sm:$0xff]
        %v2047 = vld [vmem:[#allocation13 + $0x118] sm:$0xff]
        %v2048 = vld [vmem:[#allocation13 + $0x120] sm:$0xff]
        %v2049 = vld [vmem:[#allocation13 + $0x128] sm:$0xff]
        %v2050 = vld [vmem:[#allocation13 + $0x130] sm:$0xff]
        %v2051 = vld [vmem:[#allocation13 + $0x138] sm:$0xff]
        %v2052 = vld [vmem:[#allocation13 + $0x140] sm:$0xff]
        %v2053 = vld [vmem:[#allocation13 + $0x148] sm:$0xff]
        %v2054 = vld [vmem:[#allocation13 + $0x150] sm:$0xff]
        %v2055 = vld [vmem:[#allocation13 + $0x158] sm:$0xff]
        %v2056 = vld [vmem:[#allocation13 + $0x160] sm:$0xff]
        %v2057 = vld [vmem:[#allocation13 + $0x168] sm:$0xff]
        %v2058 = vld [vmem:[#allocation13 + $0x170] sm:$0xff]
        %v2059 = vld [vmem:[#allocation13 + $0x178] sm:$0xff]
        %v2060 = vld [vmem:[#allocation13 + $0x180] sm:$0xff]
        %v2061 = vld [vmem:[#allocation13 + $0x188] sm:$0xff]
        %v2062 = vld [vmem:[#allocation13 + $0x190] sm:$0xff]
        %v2063 = vld [vmem:[#allocation13 + $0x198] sm:$0xff]
        %v2064 = vld [vmem:[#allocation13 + $0x1a0] sm:$0xff]
        %v2065 = vld [vmem:[#allocation13 + $0x1a8] sm:$0xff]
        %v2066 = vld [vmem:[#allocation13 + $0x1b0] sm:$0xff]
        %v2067 = vld [vmem:[#allocation13 + $0x1b8] sm:$0xff]
        %v2068 = vld [vmem:[#allocation13 + $0x1c0] sm:$0xff]
        %v2069 = vld [vmem:[#allocation13 + $0x1c8] sm:$0xff]
        %v2070 = vld [vmem:[#allocation13 + $0x1d0] sm:$0xff]
        %v2071 = vld [vmem:[#allocation13 + $0x1d8] sm:$0xff]
        %v2072 = vld [vmem:[#allocation13 + $0x1e0] sm:$0xff]
        %v2073 = vld [vmem:[#allocation13 + $0x1e8] sm:$0xff]
        %v2074 = vld [vmem:[#allocation13 + $0x1f0] sm:$0xff]
        %v2075 = vld [vmem:[#allocation13 + $0x1f8] sm:$0xff]
        %v2076 = vld [vmem:[%s14] sm:$0xf]
        %v2078 = vlaneseq
        %v2079 = vshrl.u32 %v2078, 7
        %v2080 = vsub.s32 0, %v2079
        %v2081 = vrot.slane %v2076, %v2080
        %v2082 = vlaneseq
        %v2083 = vshrl.u32 %v2082, 7
        %v2084 = vsub.s32 1, %v2083
        %v2085 = vrot.slane %v2076, %v2084
        %v2086 = vlaneseq
        %v2087 = vshrl.u32 %v2086, 7
        %v2088 = vsub.s32 2, %v2087
        %v2089 = vrot.slane %v2076, %v2088
        %v2090 = vlaneseq
        %v2091 = vshrl.u32 %v2090, 7
        %v2092 = vsub.s32 3, %v2091
        %v2093 = vrot.slane %v2076, %v2092
        %2098 = vmatprep.subr.mxu0 %v2073
        %2099 = vmatpush1.msra.mxu0 %v2072
        %2100 = vmatprep.subr.mxu0 %v2069
        %2101 = vmatpush1.msra.mxu0 %v2068
        %2102 = vmatprep.subr.mxu0 %v2065
        %2103 = vmatpush1.msra.mxu0 %v2064
        %2104 = vmatprep.subr.mxu0 %v2061
        %2105 = vmatpush1.msra.mxu0 %v2060
        %2106 = vmatprep.subr.mxu0 %v2057
        %2107 = vmatpush1.msra.mxu0 %v2056
        %2108 = vmatprep.subr.mxu0 %v2053
        %2109 = vmatpush1.msra.mxu0 %v2052
        %2110 = vmatprep.subr.mxu0 %v2049
        %2111 = vmatpush1.msra.mxu0 %v2048
        %2112 = vmatprep.subr.mxu0 %v2045
        %2113 = vmatpush1.msra.mxu0 %v2044
        %2114 = vmatprep.subr.mxu0 %v2041
        %2115 = vmatpush1.msra.mxu0 %v2040
        %2116 = vmatprep.subr.mxu0 %v2037
        %2117 = vmatpush1.msra.mxu0 %v2036
        %2118 = vmatprep.subr.mxu0 %v2033
        %2119 = vmatpush1.msra.mxu0 %v2032
        %2120 = vmatprep.subr.mxu0 %v2029
        %2121 = vmatpush1.msra.mxu0 %v2028
        %2122 = vmatprep.subr.mxu0 %v2025
        %2123 = vmatpush1.msra.mxu0 %v2024
        %2124 = vmatprep.subr.mxu0 %v2021
        %2125 = vmatpush1.msra.mxu0 %v2020
        %2126 = vmatprep.subr.mxu0 %v2017
        %2127 = vmatpush1.msra.mxu0 %v2016
        %2128 = vmatprep.subr.mxu0 %v2013
        %2129 = vmatpush1.msra.mxu0 %v2012
        %2130 = vmatprep.subr.mxu0 0.0
        %2131 = vmatpush2.msra.mxu0 0.0
        %2132 = vmatprep.subr.mxu0 0.0
        %2133 = vmatpush2.msra.mxu0 0.0
        %2134 = vmatprep.subr.mxu0 0.0
        %2135 = vmatpush2.msra.mxu0 0.0
        %2136 = vmatprep.subr.mxu0 0.0
        %2137 = vmatpush2.msra.mxu0 0.0
        %2138 = vmatprep.subr.mxu0 0.0
        %2139 = vmatpush2.msra.mxu0 0.0
        %2140 = vmatprep.subr.mxu0 0.0
        %2141 = vmatpush2.msra.mxu0 0.0
        %2142 = vmatprep.subr.mxu0 0.0
        %2143 = vmatpush2.msra.mxu0 0.0
        %2144 = vmatprep.subr.mxu0 0.0
        %2145 = vmatpush2.msra.mxu0 0.0
        %2146 = vmatprep.subr.mxu0 0.0
        %2147 = vmatpush2.msra.mxu0 0.0
        %2148 = vmatprep.subr.mxu0 0.0
        %2149 = vmatpush2.msra.mxu0 0.0
        %2150 = vmatprep.subr.mxu0 0.0
        %2151 = vmatpush2.msra.mxu0 0.0
        %2152 = vmatprep.subr.mxu0 0.0
        %2153 = vmatpush2.msra.mxu0 0.0
        %2154 = vmatprep.subr.mxu0 0.0
        %2155 = vmatpush2.msra.mxu0 0.0
        %2156 = vmatprep.subr.mxu0 0.0
        %2157 = vmatpush2.msra.mxu0 0.0
        %2158 = vmatprep.subr.mxu0 0.0
        %2159 = vmatpush2.msra.mxu0 0.0
        %2160 = vmatprep.subr.mxu0 0.0
        %2161 = vmatpush2.msra.mxu0 0.0
        %2162 = vmatprep.mubr.f32.mxu0 0.0
        %2163 = vmatmul.mubr.f32.gmra.mxu0 %v2010
        %v2164 = vpop.f32.mrf.mxu0
        %v2165 = vadd.f32 %v2081, %v2164
        %v2166 = vpop.f32.mrf.mxu0
        %v2167 = vadd.f32 %v2085, %v2166
        %2168 = vmatprep.mubr.f32.mxu0 0.0
        %2169 = vmatmul.mubr.f32.gmra.mxu0 %v2011
        %v2170 = vpop.f32.mrf.mxu0
        %v2171 = vadd.f32 %v2081, %v2170
        %v2172 = vpop.f32.mrf.mxu0
        %v2173 = vadd.f32 %v2085, %v2172
        %2174 = vdwg.mxu0
        %2175 = vmatprep.subr.mxu0 %v2075
        %2176 = vmatpush1.msra.mxu0 %v2074
        %2177 = vmatprep.subr.mxu0 %v2071
        %2178 = vmatpush1.msra.mxu0 %v2070
        %2179 = vmatprep.subr.mxu0 %v2067
        %2180 = vmatpush1.msra.mxu0 %v2066
        %2181 = vmatprep.subr.mxu0 %v2063
        %2182 = vmatpush1.msra.mxu0 %v2062
        %2183 = vmatprep.subr.mxu0 %v2059
        %2184 = vmatpush1.msra.mxu0 %v2058
        %2185 = vmatprep.subr.mxu0 %v2055
        %2186 = vmatpush1.msra.mxu0 %v2054
        %2187 = vmatprep.subr.mxu0 %v2051
        %2188 = vmatpush1.msra.mxu0 %v2050
        %2189 = vmatprep.subr.mxu0 %v2047
        %2190 = vmatpush1.msra.mxu0 %v2046
        %2191 = vmatprep.subr.mxu0 %v2043
        %2192 = vmatpush1.msra.mxu0 %v2042
        %2193 = vmatprep.subr.mxu0 %v2039
        %2194 = vmatpush1.msra.mxu0 %v2038
        %2195 = vmatprep.subr.mxu0 %v2035
        %2196 = vmatpush1.msra.mxu0 %v2034
        %2197 = vmatprep.subr.mxu0 %v2031
        %2198 = vmatpush1.msra.mxu0 %v2030
        %2199 = vmatprep.subr.mxu0 %v2027
        %2200 = vmatpush1.msra.mxu0 %v2026
        %2201 = vmatprep.subr.mxu0 %v2023
        %2202 = vmatpush1.msra.mxu0 %v2022
        %2203 = vmatprep.subr.mxu0 %v2019
        %2204 = vmatpush1.msra.mxu0 %v2018
        %2205 = vmatprep.subr.mxu0 %v2015
        %2206 = vmatpush1.msra.mxu0 %v2014
        %2207 = vmatprep.subr.mxu0 0.0
        %2208 = vmatpush2.msra.mxu0 0.0
        %2209 = vmatprep.subr.mxu0 0.0
        %2210 = vmatpush2.msra.mxu0 0.0
        %2211 = vmatprep.subr.mxu0 0.0
        %2212 = vmatpush2.msra.mxu0 0.0
        %2213 = vmatprep.subr.mxu0 0.0
        %2214 = vmatpush2.msra.mxu0 0.0
        %2215 = vmatprep.subr.mxu0 0.0
        %2216 = vmatpush2.msra.mxu0 0.0
        %2217 = vmatprep.subr.mxu0 0.0
        %2218 = vmatpush2.msra.mxu0 0.0
        %2219 = vmatprep.subr.mxu0 0.0
        %2220 = vmatpush2.msra.mxu0 0.0
        %2221 = vmatprep.subr.mxu0 0.0
        %2222 = vmatpush2.msra.mxu0 0.0
        %2223 = vmatprep.subr.mxu0 0.0
        %2224 = vmatpush2.msra.mxu0 0.0
        %2225 = vmatprep.subr.mxu0 0.0
        %2226 = vmatpush2.msra.mxu0 0.0
        %2227 = vmatprep.subr.mxu0 0.0
        %2228 = vmatpush2.msra.mxu0 0.0
        %2229 = vmatprep.subr.mxu0 0.0
        %2230 = vmatpush2.msra.mxu0 0.0
        %2231 = vmatprep.subr.mxu0 0.0
        %2232 = vmatpush2.msra.mxu0 0.0
        %2233 = vmatprep.subr.mxu0 0.0
        %2234 = vmatpush2.msra.mxu0 0.0
        %2235 = vmatprep.subr.mxu0 0.0
        %2236 = vmatpush2.msra.mxu0 0.0
        %2237 = vmatprep.subr.mxu0 0.0
        %2238 = vmatpush2.msra.mxu0 0.0
        %2239 = vmatprep.mubr.f32.mxu0 0.0
        %2240 = vmatmul.mubr.f32.gmra.mxu0 %v2010
        %v2241 = vpop.f32.mrf.mxu0
        %v2242 = vadd.f32 %v2089, %v2241
        %v2243 = vpop.f32.mrf.mxu0
        %v2244 = vadd.f32 %v2093, %v2243
        %2245 = vmatprep.mubr.f32.mxu0 0.0
        %2246 = vmatmul.mubr.f32.gmra.mxu0 %v2011
        %v2247 = vpop.f32.mrf.mxu0
        %v2248 = vadd.f32 %v2089, %v2247
        %v2249 = vpop.f32.mrf.mxu0
        %v2250 = vadd.f32 %v2093, %v2249
        %2251 = vdwg.mxu0
        %v2252 = vmul.f32 %v2165, 0.5
        %v2253 = vmul.f32 %v2167, 0.5
        %v2254 = vmul.f32 %v2242, 0.5
        %v2255 = vmul.f32 %v2244, 0.5
        %v2256 = vmul.f32 %v2171, 0.5
        %v2257 = vmul.f32 %v2173, 0.5
        %v2258 = vmul.f32 %v2248, 0.5
        %v2259 = vmul.f32 %v2250, 0.5
        %v2260 = vmul.f32 %v2165, 0.70710677
        %v2261 = vmul.f32 %v2167, 0.70710677
        %v2262 = vmul.f32 %v2242, 0.70710677
        %v2263 = vmul.f32 %v2244, 0.70710677
        %v2264 = vmul.f32 %v2171, 0.70710677
        %v2265 = vmul.f32 %v2173, 0.70710677
        %v2266 = vmul.f32 %v2248, 0.70710677
        %v2267 = vmul.f32 %v2250, 0.70710677
        %v2268 = verf.f32.pop %v2260
        %v2269 = verf.f32.pop %v2261
        %v2270 = verf.f32.pop %v2262
        %v2271 = verf.f32.pop %v2263
        %v2272 = verf.f32.pop %v2264
        %v2273 = verf.f32.pop %v2265
        %v2274 = verf.f32.pop %v2266
        %v2275 = verf.f32.pop %v2267
        %v2276 = vadd.f32 %v2268, 1.0
        %v2277 = vadd.f32 %v2269, 1.0
        %v2278 = vadd.f32 %v2270, 1.0
        %v2279 = vadd.f32 %v2271, 1.0
        %v2280 = vadd.f32 %v2272, 1.0
        %v2281 = vadd.f32 %v2273, 1.0
        %v2282 = vadd.f32 %v2274, 1.0
        %v2283 = vadd.f32 %v2275, 1.0
        %v2284 = vmul.f32 %v2252, %v2276
        %v2285 = vmul.f32 %v2253, %v2277
        %v2286 = vmul.f32 %v2254, %v2278
        %v2287 = vmul.f32 %v2255, %v2279
        %v2288 = vmul.f32 %v2256, %v2280
        %v2289 = vmul.f32 %v2257, %v2281
        %v2290 = vmul.f32 %v2258, %v2282
        %v2291 = vmul.f32 %v2259, %v2283
        %v2292 = vld [vmem:[#allocation14] sm:$0xff]
        %v2293 = vld [vmem:[#allocation14 + $0x8] sm:$0xff]
        %v2294 = vld [vmem:[#allocation14 + $0x10] sm:$0xff]
        %v2295 = vld [vmem:[#allocation14 + $0x18] sm:$0xff]
        %v2296 = vld [vmem:[#allocation14 + $0x20] sm:$0xff]
        %v2297 = vld [vmem:[#allocation14 + $0x28] sm:$0xff]
        %v2298 = vld [vmem:[#allocation14 + $0x30] sm:$0xff]
        %v2299 = vld [vmem:[#allocation14 + $0x38] sm:$0xff]
        %v2300 = vld [vmem:[#allocation14 + $0x40] sm:$0xff]
        %v2301 = vld [vmem:[#allocation14 + $0x48] sm:$0xff]
        %v2302 = vld [vmem:[#allocation14 + $0x50] sm:$0xff]
        %v2303 = vld [vmem:[#allocation14 + $0x58] sm:$0xff]
        %v2304 = vld [vmem:[#allocation14 + $0x60] sm:$0xff]
        %v2305 = vld [vmem:[#allocation14 + $0x68] sm:$0xff]
        %v2306 = vld [vmem:[#allocation14 + $0x70] sm:$0xff]
        %v2307 = vld [vmem:[#allocation14 + $0x78] sm:$0xff]
        %v2308 = vld [vmem:[#allocation14 + $0x80] sm:$0xff]
        %v2309 = vld [vmem:[#allocation14 + $0x88] sm:$0xff]
        %v2310 = vld [vmem:[#allocation14 + $0x90] sm:$0xff]
        %v2311 = vld [vmem:[#allocation14 + $0x98] sm:$0xff]
        %v2312 = vld [vmem:[#allocation14 + $0xa0] sm:$0xff]
        %v2313 = vld [vmem:[#allocation14 + $0xa8] sm:$0xff]
        %v2314 = vld [vmem:[#allocation14 + $0xb0] sm:$0xff]
        %v2315 = vld [vmem:[#allocation14 + $0xb8] sm:$0xff]
        %v2316 = vld [vmem:[#allocation14 + $0xc0] sm:$0xff]
        %v2317 = vld [vmem:[#allocation14 + $0xc8] sm:$0xff]
        %v2318 = vld [vmem:[#allocation14 + $0xd0] sm:$0xff]
        %v2319 = vld [vmem:[#allocation14 + $0xd8] sm:$0xff]
        %v2320 = vld [vmem:[#allocation14 + $0xe0] sm:$0xff]
        %v2321 = vld [vmem:[#allocation14 + $0xe8] sm:$0xff]
        %v2322 = vld [vmem:[#allocation14 + $0xf0] sm:$0xff]
        %v2323 = vld [vmem:[#allocation14 + $0xf8] sm:$0xff]
        %v2324 = vld [vmem:[#allocation14 + $0x100] sm:$0xff]
        %v2325 = vld [vmem:[#allocation14 + $0x108] sm:$0xff]
        %v2326 = vld [vmem:[#allocation14 + $0x110] sm:$0xff]
        %v2327 = vld [vmem:[#allocation14 + $0x118] sm:$0xff]
        %v2328 = vld [vmem:[#allocation14 + $0x120] sm:$0xff]
        %v2329 = vld [vmem:[#allocation14 + $0x128] sm:$0xff]
        %v2330 = vld [vmem:[#allocation14 + $0x130] sm:$0xff]
        %v2331 = vld [vmem:[#allocation14 + $0x138] sm:$0xff]
        %v2332 = vld [vmem:[#allocation14 + $0x140] sm:$0xff]
        %v2333 = vld [vmem:[#allocation14 + $0x148] sm:$0xff]
        %v2334 = vld [vmem:[#allocation14 + $0x150] sm:$0xff]
        %v2335 = vld [vmem:[#allocation14 + $0x158] sm:$0xff]
        %v2336 = vld [vmem:[#allocation14 + $0x160] sm:$0xff]
        %v2337 = vld [vmem:[#allocation14 + $0x168] sm:$0xff]
        %v2338 = vld [vmem:[#allocation14 + $0x170] sm:$0xff]
        %v2339 = vld [vmem:[#allocation14 + $0x178] sm:$0xff]
        %v2340 = vld [vmem:[#allocation14 + $0x180] sm:$0xff]
        %v2341 = vld [vmem:[#allocation14 + $0x188] sm:$0xff]
        %v2342 = vld [vmem:[#allocation14 + $0x190] sm:$0xff]
        %v2343 = vld [vmem:[#allocation14 + $0x198] sm:$0xff]
        %v2344 = vld [vmem:[#allocation14 + $0x1a0] sm:$0xff]
        %v2345 = vld [vmem:[#allocation14 + $0x1a8] sm:$0xff]
        %v2346 = vld [vmem:[#allocation14 + $0x1b0] sm:$0xff]
        %v2347 = vld [vmem:[#allocation14 + $0x1b8] sm:$0xff]
        %v2348 = vld [vmem:[#allocation14 + $0x1c0] sm:$0xff]
        %v2349 = vld [vmem:[#allocation14 + $0x1c8] sm:$0xff]
        %v2350 = vld [vmem:[#allocation14 + $0x1d0] sm:$0xff]
        %v2351 = vld [vmem:[#allocation14 + $0x1d8] sm:$0xff]
        %v2352 = vld [vmem:[#allocation14 + $0x1e0] sm:$0xff]
        %v2353 = vld [vmem:[#allocation14 + $0x1e8] sm:$0xff]
        %v2354 = vld [vmem:[#allocation14 + $0x1f0] sm:$0xff]
        %v2355 = vld [vmem:[#allocation14 + $0x1f8] sm:$0xff]
        %v2356 = vld [vmem:[%s16] sm:$0x1]
        %v2358 = vlaneseq
        %v2359 = vshrl.u32 %v2358, 7
        %v2360 = vsub.s32 0, %v2359
        %v2361 = vrot.slane %v2356, %v2360
        %2363 = vmatprep.subr.mxu0 0.0
        %2364 = vmatpush1.msra.mxu0 %v2307
        %2365 = vmatprep.subr.mxu0 0.0
        %2366 = vmatpush1.msra.mxu0 %v2306
        %2367 = vmatprep.subr.mxu0 0.0
        %2368 = vmatpush1.msra.mxu0 %v2305
        %2369 = vmatprep.subr.mxu0 0.0
        %2370 = vmatpush1.msra.mxu0 %v2304
        %2371 = vmatprep.subr.mxu0 0.0
        %2372 = vmatpush1.msra.mxu0 %v2303
        %2373 = vmatprep.subr.mxu0 0.0
        %2374 = vmatpush1.msra.mxu0 %v2302
        %2375 = vmatprep.subr.mxu0 0.0
        %2376 = vmatpush1.msra.mxu0 %v2301
        %2377 = vmatprep.subr.mxu0 0.0
        %2378 = vmatpush1.msra.mxu0 %v2300
        %2379 = vmatprep.subr.mxu0 0.0
        %2380 = vmatpush1.msra.mxu0 %v2299
        %2381 = vmatprep.subr.mxu0 0.0
        %2382 = vmatpush1.msra.mxu0 %v2298
        %2383 = vmatprep.subr.mxu0 0.0
        %2384 = vmatpush1.msra.mxu0 %v2297
        %2385 = vmatprep.subr.mxu0 0.0
        %2386 = vmatpush1.msra.mxu0 %v2296
        %2387 = vmatprep.subr.mxu0 0.0
        %2388 = vmatpush1.msra.mxu0 %v2295
        %2389 = vmatprep.subr.mxu0 0.0
        %2390 = vmatpush1.msra.mxu0 %v2294
        %2391 = vmatprep.subr.mxu0 0.0
        %2392 = vmatpush1.msra.mxu0 %v2293
        %2393 = vmatprep.subr.mxu0 0.0
        %2394 = vmatpush1.msra.mxu0 %v2292
        %2395 = vmatprep.subr.mxu0 0.0
        %2396 = vmatpush2.msra.mxu0 %v2323
        %2397 = vmatprep.subr.mxu0 0.0
        %2398 = vmatpush2.msra.mxu0 %v2322
        %2399 = vmatprep.subr.mxu0 0.0
        %2400 = vmatpush2.msra.mxu0 %v2321
        %2401 = vmatprep.subr.mxu0 0.0
        %2402 = vmatpush2.msra.mxu0 %v2320
        %2403 = vmatprep.subr.mxu0 0.0
        %2404 = vmatpush2.msra.mxu0 %v2319
        %2405 = vmatprep.subr.mxu0 0.0
        %2406 = vmatpush2.msra.mxu0 %v2318
        %2407 = vmatprep.subr.mxu0 0.0
        %2408 = vmatpush2.msra.mxu0 %v2317
        %2409 = vmatprep.subr.mxu0 0.0
        %2410 = vmatpush2.msra.mxu0 %v2316
        %2411 = vmatprep.subr.mxu0 0.0
        %2412 = vmatpush2.msra.mxu0 %v2315
        %2413 = vmatprep.subr.mxu0 0.0
        %2414 = vmatpush2.msra.mxu0 %v2314
        %2415 = vmatprep.subr.mxu0 0.0
        %2416 = vmatpush2.msra.mxu0 %v2313
        %2417 = vmatprep.subr.mxu0 0.0
        %2418 = vmatpush2.msra.mxu0 %v2312
        %2419 = vmatprep.subr.mxu0 0.0
        %2420 = vmatpush2.msra.mxu0 %v2311
        %2421 = vmatprep.subr.mxu0 0.0
        %2422 = vmatpush2.msra.mxu0 %v2310
        %2423 = vmatprep.subr.mxu0 0.0
        %2424 = vmatpush2.msra.mxu0 %v2309
        %2425 = vmatprep.subr.mxu0 0.0
        %2426 = vmatpush2.msra.mxu0 %v2308
        %2427 = vmatprep.mubr.f32.mxu0 %v2285
        %2428 = vmatmul.mubr.f32.gmra.mxu0 %v2284
        %v2429 = vpop.f32.mrf.mxu0
        %v2430 = vadd.f32 %v2361, %v2429
        %v2431 = vpop.f32.mrf.mxu0
        %2432 = vmatprep.mubr.f32.mxu0 %v2289
        %2433 = vmatmul.mubr.f32.gmra.mxu0 %v2288
        %v2434 = vpop.f32.mrf.mxu0
        %v2435 = vadd.f32 %v2361, %v2434
        %v2436 = vpop.f32.mrf.mxu0
        %2437 = vdwg.mxu0
        %2438 = vmatprep.subr.mxu0 0.0
        %2439 = vmatpush1.msra.mxu0 %v2339
        %2440 = vmatprep.subr.mxu0 0.0
        %2441 = vmatpush1.msra.mxu0 %v2338
        %2442 = vmatprep.subr.mxu0 0.0
        %2443 = vmatpush1.msra.mxu0 %v2337
        %2444 = vmatprep.subr.mxu0 0.0
        %2445 = vmatpush1.msra.mxu0 %v2336
        %2446 = vmatprep.subr.mxu0 0.0
        %2447 = vmatpush1.msra.mxu0 %v2335
        %2448 = vmatprep.subr.mxu0 0.0
        %2449 = vmatpush1.msra.mxu0 %v2334
        %2450 = vmatprep.subr.mxu0 0.0
        %2451 = vmatpush1.msra.mxu0 %v2333
        %2452 = vmatprep.subr.mxu0 0.0
        %2453 = vmatpush1.msra.mxu0 %v2332
        %2454 = vmatprep.subr.mxu0 0.0
        %2455 = vmatpush1.msra.mxu0 %v2331
        %2456 = vmatprep.subr.mxu0 0.0
        %2457 = vmatpush1.msra.mxu0 %v2330
        %2458 = vmatprep.subr.mxu0 0.0
        %2459 = vmatpush1.msra.mxu0 %v2329
        %2460 = vmatprep.subr.mxu0 0.0
        %2461 = vmatpush1.msra.mxu0 %v2328
        %2462 = vmatprep.subr.mxu0 0.0
        %2463 = vmatpush1.msra.mxu0 %v2327
        %2464 = vmatprep.subr.mxu0 0.0
        %2465 = vmatpush1.msra.mxu0 %v2326
        %2466 = vmatprep.subr.mxu0 0.0
        %2467 = vmatpush1.msra.mxu0 %v2325
        %2468 = vmatprep.subr.mxu0 0.0
        %2469 = vmatpush1.msra.mxu0 %v2324
        %2470 = vmatprep.subr.mxu0 0.0
        %2471 = vmatpush2.msra.mxu0 %v2355
        %2472 = vmatprep.subr.mxu0 0.0
        %2473 = vmatpush2.msra.mxu0 %v2354
        %2474 = vmatprep.subr.mxu0 0.0
        %2475 = vmatpush2.msra.mxu0 %v2353
        %2476 = vmatprep.subr.mxu0 0.0
        %2477 = vmatpush2.msra.mxu0 %v2352
        %2478 = vmatprep.subr.mxu0 0.0
        %2479 = vmatpush2.msra.mxu0 %v2351
        %2480 = vmatprep.subr.mxu0 0.0
        %2481 = vmatpush2.msra.mxu0 %v2350
        %2482 = vmatprep.subr.mxu0 0.0
        %2483 = vmatpush2.msra.mxu0 %v2349
        %2484 = vmatprep.subr.mxu0 0.0
        %2485 = vmatpush2.msra.mxu0 %v2348
        %2486 = vmatprep.subr.mxu0 0.0
        %2487 = vmatpush2.msra.mxu0 %v2347
        %2488 = vmatprep.subr.mxu0 0.0
        %2489 = vmatpush2.msra.mxu0 %v2346
        %2490 = vmatprep.subr.mxu0 0.0
        %2491 = vmatpush2.msra.mxu0 %v2345
        %2492 = vmatprep.subr.mxu0 0.0
        %2493 = vmatpush2.msra.mxu0 %v2344
        %2494 = vmatprep.subr.mxu0 0.0
        %2495 = vmatpush2.msra.mxu0 %v2343
        %2496 = vmatprep.subr.mxu0 0.0
        %2497 = vmatpush2.msra.mxu0 %v2342
        %2498 = vmatprep.subr.mxu0 0.0
        %2499 = vmatpush2.msra.mxu0 %v2341
        %2500 = vmatprep.subr.mxu0 0.0
        %2501 = vmatpush2.msra.mxu0 %v2340
        %2502 = vmatprep.mubr.f32.mxu0 %v2287
        %2503 = vmatmul.mubr.f32.gmra.mxu0 %v2286
        %v2504 = vpop.f32.mrf.mxu0
        %v2505 = vadd.f32 %v2430, %v2504
        %v2506 = vpop.f32.mrf.mxu0
        %2507 = vmatprep.mubr.f32.mxu0 %v2291
        %2508 = vmatmul.mubr.f32.gmra.mxu0 %v2290
        %v2509 = vpop.f32.mrf.mxu0
        %v2510 = vadd.f32 %v2435, %v2509
        %v2511 = vpop.f32.mrf.mxu0
        %2512 = vdwg.mxu0
        %v2513 = vadd.f32 %v2505, %v2010
        %v2514 = vadd.f32 %v2510, %v2011
        %v2515 = vld [vmem:[%s17] sm:$0x1]
        %v2516 = vld [vmem:[%s18] sm:$0x1]
        %2517 = vadd.xlane.f32.xlu0 %v2513
        %v2518 = vpop.xlane.xlu0 %2517
        %2519 = vadd.xlane.f32.xlu0 %v2514
        %v2520 = vpop.xlane.xlu0 %2519
        %v2521 = vmul.f32 %v2518, %v1977
        %v2522 = vmul.f32 %v2520, %v1977
        %v2523 = vsub.f32 %v2513, %v2521
        %v2524 = vsub.f32 %v2514, %v2522
        %v2525 = vmul.f32 %v2523, %v2523
        %v2526 = vmul.f32 %v2524, %v2524
        %2527 = vadd.xlane.f32.xlu0 %v2525
        %v2528 = vpop.xlane.xlu0 %2527
        %2529 = vadd.xlane.f32.xlu0 %v2526
        %v2530 = vpop.xlane.xlu0 %2529
        %v2531 = vmul.f32 %v2528, %v1977
        %v2532 = vmul.f32 %v2530, %v1977
        %v2533 = vadd.f32 %v2531, 1e-12
        %v2534 = vadd.f32 %v2532, 1e-12
        %v2535 = vrsqrt.pop %v2533
        %v2536 = vrsqrt.pop %v2534
        %v2537 = vmul.f32 %v2523, %v2535
        %v2538 = vmul.f32 %v2524, %v2536
        %v2540 = vlaneseq
        %v2541 = vshrl.u32 %v2540, 7
        %v2542 = vsub.s32 0, %v2541
        %v2543 = vrot.slane %v2515, %v2542
        %v2545 = vmul.f32 %v2537, %v2543
        %v2546 = vmul.f32 %v2538, %v2543
        %v2548 = vlaneseq
        %v2549 = vshrl.u32 %v2548, 7
        %v2550 = vsub.s32 0, %v2549
        %v2551 = vrot.slane %v2516, %v2550
        %v2553 = vadd.f32 %v2545, %v2551
        %v2554 = vadd.f32 %v2546, %v2551
        %2555 = vst [vmem:[%s755] sm:$0xff] %v2553
        %2556 = vst [vmem:[%s755 + $0x8] sm:$0xff] %v2554
        %s2557 = sand.u32 %s464, 1
        %s2558 = scalar_lea.sflag [#allocation4], %s2557
        %s2559 = sand.u32 %s464, 1
        %s2560 = smul.addr %s2559, 16
        %s2561 = scalar_lea.vmem [#allocation16], %s2560
        // Predicated region
        $region129: #{tpu_custom_call.1} parent=95 // pred_check
          %p2562 = pneg %p474
        $region130: #{tpu_custom_call.1} parent=95 // pred_check_branch
          %2564 = sbr.rel (%p2562) target = $region132
        $region131: #{tpu_custom_call.1} parent=95 // pred_region
          %s2566 = ssub.s32 256, 256
          %2567 = vsyncadd %s2558, %s2566
          %s2568 = smul.addr %s42, 2
          %s2569 = smul.addr %s2568, 128
          %s2570 = scalar_lea.hbm %s19, %s2569
          %s2571 = sshll.u32 %s2561, 4
          %s2572 = int_to_ptr.vmem [resolvable:$true] %s2571
          %2577 = dma.vmem_to_hbm [thread:$0]  %s2572, 256, %s2570, %s2558, 128, 128, 8
        $region132: #{tpu_custom_call.1} parent=95 // pred_fallthru
          _
      $region96: #{tpu_custom_call.1} parent=5 // pred_fallthru
        _
      %p2578 = scmp.le.s32.totalorder 2, %s37
      // Predicated region
      $region133: #{tpu_custom_call.1} parent=5 // pred_check
        %p2579 = pneg %p2578
      $region134: #{tpu_custom_call.1} parent=5 // pred_check_branch
        %2581 = sbr.rel (%p2579) target = $region136
      $region135: #{tpu_custom_call.1} parent=5 // pred_region
        %s2582 = ssub.s32 %s37, 2
        // Predicated region
        $region137: #{tpu_custom_call.1} parent=135 // pred_check
          %p2583 = pneg %p480
        $region138: #{tpu_custom_call.1} parent=135 // pred_check_branch
          %2585 = sbr.rel (%p2583) target = $region140
        $region139: #{tpu_custom_call.1} parent=135 // pred_region
          %s2586 = sand.u32 %s465, 1
          %s2587 = scalar_lea.sflag [#allocation4], %s2586
          %s2588 = sand.u32 %s465, 1
          %s2589 = smul.addr %s2588, 16
          %s2590 = scalar_lea.vmem [#allocation16], %s2589
          %2591 = dma.done %s2587, 256
        $region140: #{tpu_custom_call.1} parent=135 // pred_fallthru
          _
      $region136: #{tpu_custom_call.1} parent=5 // pred_fallthru
        _
    $region6: #{tpu_custom_call.1} parent=1 // loop_footer
      %s41 = sadd.s32 1, %s37
    $region7: #{tpu_custom_call.1} parent=1 // loop_footer_branch
      %36 = sbr.rel target = $region3
    $region8: #{tpu_custom_call.1} parent=1 // loop_exit
      _
    %2592 = vsyncpa [#allocation3], 1
    %s2593 = scalar_lea.sflag [#allocation3], 1
    %2594 = vsyncpa %s2593, 1
    %2595 = vsyncpa [#allocation6], 1
    %s2596 = scalar_lea.sflag [#allocation6], 1
    %2597 = vsyncpa %s2596, 1
    %2598 = vsyncpa [#allocation9], 1
    %2599 = vsyncpa [#allocation12], 1
    %2600 = vsyncpa [#allocation15], 1
    %2601 = vsyncpa [#allocation4], 1
    %s2602 = scalar_lea.sflag [#allocation4], 1
    %2603 = vsyncpa %s2602, 1

</llo_original>
